<compile_context>
chip_gen: v7x
topology: tpu7x:2x2x1
jax: 0.10.0
libtpu: 0.0.40
codegen_flags: <defaults>
</compile_context>

<pallas_src>
import functools

import jax
import jax.numpy as jnp
from jax.experimental import pallas as pl
from jax.experimental.pallas import tpu as pltpu

# --------------------------- model hyper-parameters ---------------------------

HIDDEN = 32        # sub-model hidden size (stands in for 768)
FFN = 4 * HIDDEN
SEQ = 8
VOCAB = 64
N_LAYERS = 2
NUM_LABELS = HIDDEN   # sub-model heads output HIDDEN "logits" so the ensemble
                      # classifier in_features = (HIDDEN + HIDDEN)/2 = HIDDEN,
                      # matching the PyTorch module's Linear construction.
N_CLASSES = 3

# Order in which per-model weight arrays are passed to the fused encoder kernel.
PARAM_ORDER = (
    "emb_g", "emb_b",
    "wqkv", "bqkv", "wo", "bo", "ln1_g", "ln1_b",
    "wff1", "bff1", "wff2", "bff2", "ln2_g", "ln2_b",
    "head_w1", "head_b1", "head_w2", "head_b2",
)


# ------------------------------ Pallas kernels --------------------------------


def _encoder_kernel(emb_ref, mask_ref,
                    emb_g_ref, emb_b_ref,
                    wqkv_ref, bqkv_ref, wo_ref, bo_ref,
                    ln1_g_ref, ln1_b_ref,
                    wff1_ref, bff1_ref, wff2_ref, bff2_ref,
                    ln2_g_ref, ln2_b_ref,
                    hw1_ref, hb1_ref, hw2_ref, hb2_ref,
                    out_ref, *, n_layers, eps, scale):
    """Fused forward of one stand-in encoder for one model (grid axis = model)."""

    def layernorm(h, g, b):
        mu = jnp.mean(h, axis=-1, keepdims=True)
        var = jnp.mean((h - mu) ** 2, axis=-1, keepdims=True)
        return (h - mu) * jax.lax.rsqrt(var + eps) * g + b

    def gelu(x):
        # tanh-approximate GELU (matches jax.nn.gelu(approximate=True))
        c = 0.7978845608028654  # sqrt(2/pi)
        return 0.5 * x * (1.0 + jnp.tanh(c * (x + 0.044715 * x * x * x)))

    H = emb_ref.shape[-1]
    mask_add = mask_ref[...]                              # [B, 1, S] additive (0 / -1e9)

    # embeddings LayerNorm (word + pos already summed outside, gather is glue)
    h = layernorm(emb_ref[...], emb_g_ref[...], emb_b_ref[...])     # [B, S, H]

    for l in range(n_layers):
        # --- fused QKV projection: one [H, 3H] matmul, sliced in-kernel ---
        qkv = jnp.einsum('bsh,hd->bsd', h, wqkv_ref[l],
                         preferred_element_type=jnp.float32) + bqkv_ref[l]   # [B,S,3H]
        q = qkv[..., :H]
        k = qkv[..., H:2 * H]
        v = qkv[..., 2 * H:]

        # --- batched single-head scaled dot-product attention ---
        s = jnp.einsum('bqd,bkd->bqk', q, k,
                       preferred_element_type=jnp.float32) * scale           # [B,S,S]
        s = s + mask_add
        s = s - jnp.max(s, axis=-1, keepdims=True)
        p = jnp.exp(s)
        p = p * pl.reciprocal(jnp.sum(p, axis=-1, keepdims=True), approx=True)
        attn = jnp.einsum('bqk,bkd->bqd', p, v,
                          preferred_element_type=jnp.float32)                # [B,S,H]

        # output projection + residual LayerNorm
        attn = jnp.einsum('bsh,hd->bsd', attn, wo_ref[l],
                          preferred_element_type=jnp.float32) + bo_ref[l]
        h = layernorm(h + attn, ln1_g_ref[l], ln1_b_ref[l])

        # --- FFN with fused GELU + residual LayerNorm ---
        ff = jnp.einsum('bsh,hf->bsf', h, wff1_ref[l],
                        preferred_element_type=jnp.float32) + bff1_ref[l]    # [B,S,F]
        ff = gelu(ff)
        ff = jnp.einsum('bsf,fh->bsh', ff, wff2_ref[l],
                        preferred_element_type=jnp.float32) + bff2_ref[l]
        h = layernorm(h + ff, ln2_g_ref[l], ln2_b_ref[l])

    # --- CLS pooling + 2-layer classification head (fused epilogue) ---
    cls = h[:, 0, :]                                                         # [B, H]
    x = jnp.dot(cls, hw1_ref[...], preferred_element_type=jnp.float32) + hb1_ref[...]
    # model 0 ("distilbert"): ReLU pre_classifier; model 1 ("roberta"): tanh dense
    x = jnp.where(pl.program_id(0) == 0, jnp.maximum(x, 0.0), jnp.tanh(x))
    out_ref[...] = (
        jnp.dot(x, hw2_ref[...], preferred_element_type=jnp.float32) + hb2_ref[...]
    )


def _model_block_spec(arr):
    """BlockSpec: squeeze the leading model axis, full array otherwise."""
    nd = arr.ndim

    def index_map(m):
        return (m,) + (0,) * (nd - 1)

    return pl.BlockSpec((pl.Squeezed(),) + tuple(arr.shape[1:]), index_map)


def ensemble_encoders_pallas(enc_params, emb, mask_add):
    """Run both encoders in one pallas_call.

    enc_params: pytree of weights, each with leading model axis of size 2.
    emb:        [2, B, S, H] f32 (word + pos embeddings, pre-gathered)
    mask_add:   [2, B, 1, S] f32 additive attention mask (0 keep / -1e9 masked)
    returns:    [2, B, NUM_LABELS] f32 per-model logits
    """
    M, B, S, H = emb.shape
    n_layers = enc_params["wqkv"].shape[1]
    num_labels = enc_params["head_w2"].shape[-1]
    scale = 1.0 / float(H) ** 0.5

    weights = [enc_params[k] for k in PARAM_ORDER]
    inputs = [emb, mask_add] + weights
    in_specs = [_model_block_spec(a) for a in inputs]

    return pl.pallas_call(
        functools.partial(_encoder_kernel, n_layers=n_layers, eps=1e-12, scale=scale),
        out_shape=jax.ShapeDtypeStruct((M, B, num_labels), jnp.float32),
        grid=(M,),
        in_specs=in_specs,
        out_specs=pl.BlockSpec((pl.Squeezed(), B, num_labels), lambda m: (m, 0, 0)),
        compiler_params=pltpu.CompilerParams(dimension_semantics=("parallel",)),
    )(*inputs)


def _ensemble_head_kernel(l_ref, w_ref, b_ref, o_ref):
    # combined = (logits1 + logits2)/2 ; dropout(p=0.5) is identity in eval mode
    l = l_ref[...]                                   # [2, B, L]
    combined = (l[0] + l[1]) * 0.5                   # [B, L]
    o_ref[...] = (
        jnp.dot(combined, w_ref[...], preferred_element_type=jnp.float32) + b_ref[...]
    )


def ensemble_head_pallas(logits, w, b):
    """logits: [2, B, L]; w: [L, C]; b: [C] -> [B, C]."""
    M, B, L = logits.shape
    _, C = w.shape
    return pl.pallas_call(
        _ensemble_head_kernel,
        out_shape=jax.ShapeDtypeStruct((B, C), jnp.float32),
        grid=(1,),
        in_specs=[
            pl.BlockSpec((M, B, L), lambda i: (0, 0, 0)),
            pl.BlockSpec((L, C), lambda i: (0, 0)),
            pl.BlockSpec((1, C), lambda i: (0, 0)),
        ],
        out_specs=pl.BlockSpec((B, C), lambda i: (0, 0)),
    )(logits, w, b.reshape(1, C))


# --------------------------- model construction -------------------------------


def _init_encoder_params(key, hidden, ffn, seq, vocab, n_layers, num_labels):
    def w(k, shape):
        return 0.02 * jax.random.normal(k, shape, jnp.float32)

    ks = jax.random.split(key, 8)
    return {
        "word_emb": w(ks[0], (vocab, hidden)),
        "pos_emb": w(ks[1], (seq, hidden)),
        "emb_g": jnp.ones((1, hidden), jnp.float32),
        "emb_b": jnp.zeros((1, hidden), jnp.float32),
        # fused QKV weight: concat of wq|wk|wv along the output dim
        "wqkv": w(ks[2], (n_layers, hidden, 3 * hidden)),
        "bqkv": jnp.zeros((n_layers, 1, 3 * hidden), jnp.float32),
        "wo": w(ks[3], (n_layers, hidden, hidden)),
        "bo": jnp.zeros((n_layers, 1, hidden), jnp.float32),
        "ln1_g": jnp.ones((n_layers, 1, hidden), jnp.float32),
        "ln1_b": jnp.zeros((n_layers, 1, hidden), jnp.float32),
        "wff1": w(ks[4], (n_layers, hidden, ffn)),
        "bff1": jnp.zeros((n_layers, 1, ffn), jnp.float32),
        "wff2": w(ks[5], (n_layers, ffn, hidden)),
        "bff2": jnp.zeros((n_layers, 1, hidden), jnp.float32),
        "ln2_g": jnp.ones((n_layers, 1, hidden), jnp.float32),
        "ln2_b": jnp.zeros((n_layers, 1, hidden), jnp.float32),
        # classification head (pre_classifier/dense + classifier/out_proj)
        "head_w1": w(ks[6], (hidden, hidden)),
        "head_b1": jnp.zeros((1, hidden), jnp.float32),
        "head_w2": w(ks[7], (hidden, num_labels)),
        "head_b2": jnp.zeros((1, num_labels), jnp.float32),
    }


def sentiment_classifier_forward(params, input_ids_1, attention_mask_1,
                                 input_ids_2, attention_mask_2):
    enc = params["encoders"]              # each leaf has leading model axis of size 2
    B, S = input_ids_1.shape

    # embedding gather is glue (data-dependent gather has no clean BlockSpec form)
    emb1 = enc["word_emb"][0][input_ids_1] + enc["pos_emb"][0][None, :S, :]
    emb2 = enc["word_emb"][1][input_ids_2] + enc["pos_emb"][1][None, :S, :]
    emb = jnp.stack([emb1, emb2])                                  # [2, B, S, H]

    # precomputed additive attention mask (0 = attend, -1e9 = masked)
    mask = jnp.stack([attention_mask_1, attention_mask_2]).astype(jnp.float32)
    mask_add = ((1.0 - mask) * -1e9).reshape(2, B, 1, S)           # [2, B, 1, S]

    # both encoders fused into one pallas_call, parallel over the model axis
    logits = ensemble_encoders_pallas(enc, emb, mask_add)          # [2, B, NUM_LABELS]

    # fused: (l1 + l2)/2 -> dropout(p=0.5, identity in eval) -> Linear(L -> n_classes)
    return ensemble_head_pallas(logits, params["cls_w"], params["cls_b"])


# ---------------------------------- main --------------------------------------

if __name__ == "__main__":
    key = jax.random.PRNGKey(0)
    k_db, k_rb, k_cls, k_ids1, k_ids2 = jax.random.split(key, 5)

    p_db = _init_encoder_params(k_db, HIDDEN, FFN, SEQ, VOCAB, N_LAYERS, NUM_LABELS)
    p_rb = _init_encoder_params(k_rb, HIDDEN, FFN, SEQ, VOCAB, N_LAYERS, NUM_LABELS)
    # stack the two sub-models along a leading model axis (grid axis of the fused kernel)
    encoders = jax.tree_util.tree_map(lambda a, b: jnp.stack([a, b]), p_db, p_rb)

    params = {
        "encoders": encoders,
        # classifier: Linear((768+768)/2 -> n_classes) scaled down to HIDDEN
        "cls_w": 0.02 * jax.random.normal(k_cls, (NUM_LABELS, N_CLASSES), jnp.float32),
        "cls_b": jnp.zeros((N_CLASSES,), jnp.float32),
    }

    B = 2
    input_ids_1 = jax.random.randint(k_ids1, (B, SEQ), 0, VOCAB, dtype=jnp.int32)
    input_ids_2 = jax.random.randint(k_ids2, (B, SEQ), 0, VOCAB, dtype=jnp.int32)
    attention_mask_1 = jnp.ones((B, SEQ), jnp.int32)
    attention_mask_2 = jnp.ones((B, SEQ), jnp.int32).at[:, SEQ - 2:].set(0)

    # TODO(synk): gradient checkpointing (torch.utils.checkpoint) is a training-time
    # memory optimization with no effect on forward semantics; not reproduced here.
    fwd = jax.jit(sentiment_classifier_forward)
    out = fwd(params, input_ids_1, attention_mask_1, input_ids_2, attention_mask_2)
    out = jax.block_until_ready(out)
    assert out.shape == (B, N_CLASSES) and out.dtype == jnp.float32
    print("KERNEL_OK")
</pallas_src>

<mosaic_0001>
module attributes {stable_mosaic.version = 11 : i64} {
  func.func @_ensemble_head_kernel(%arg0: i32, %arg1: memref<2x2x32xf32, #tpu.memory_space<vmem>>, %arg2: memref<32x3xf32, #tpu.memory_space<vmem>>, %arg3: memref<1x3xf32, #tpu.memory_space<vmem>>, %arg4: memref<2x3xf32, #tpu.memory_space<vmem>>) attributes {dimension_semantics = [#tpu.dimension_semantics<arbitrary>], iteration_bounds = array<i64: 1>, scalar_prefetch = 0 : i64, scratch_operands = 0 : i64, tpu.core_type = #tpu.core_type<tc>, window_params = [{pipeline_mode = #tpu.pipeline_mode<synchronous>, transform_indices = @transform_0, window_bounds = array<i64: 2, 2, 32>}, {pipeline_mode = #tpu.pipeline_mode<synchronous>, transform_indices = @transform_1, window_bounds = array<i64: 32, 3>}, {pipeline_mode = #tpu.pipeline_mode<synchronous>, transform_indices = @transform_2, window_bounds = array<i64: 1, 3>}, {pipeline_mode = #tpu.pipeline_mode<synchronous>, transform_indices = @transform_3, window_bounds = array<i64: 2, 3>}]} {
    %c0 = arith.constant 0 : index
    %c0_0 = arith.constant 0 : index
    %c0_1 = arith.constant 0 : index
    %0 = vector.load %arg1[%c0, %c0_0, %c0_1] : memref<2x2x32xf32, #tpu.memory_space<vmem>>, vector<2x2x32xf32>
    %1 = vector.extract_strided_slice %0 {offsets = [0, 0, 0], sizes = [1, 2, 32], strides = [1, 1, 1]} : vector<2x2x32xf32> to vector<1x2x32xf32>
    %2 = vector.shape_cast %1 : vector<1x2x32xf32> to vector<2x32xf32>
    %3 = vector.extract_strided_slice %0 {offsets = [1, 0, 0], sizes = [1, 2, 32], strides = [1, 1, 1]} : vector<2x2x32xf32> to vector<1x2x32xf32>
    %4 = vector.shape_cast %3 : vector<1x2x32xf32> to vector<2x32xf32>
    %5 = arith.addf %2, %4 : vector<2x32xf32>
    %cst = arith.constant 5.000000e-01 : f32
    %6 = vector.broadcast %cst : f32 to vector<2x32xf32>
    %7 = arith.mulf %5, %6 : vector<2x32xf32>
    %c0_2 = arith.constant 0 : index
    %c0_3 = arith.constant 0 : index
    %8 = vector.load %arg2[%c0_2, %c0_3] : memref<32x3xf32, #tpu.memory_space<vmem>>, vector<32x3xf32>
    %cst_4 = arith.constant dense<0.000000e+00> : vector<2x3xf32>
    %9 = tpu.matmul %7, %8, %cst_4 {dimension_numbers = #tpu.dot_dimension_numbers<[1], [0], [0], [1], [0, 0, 1, 1], [], []>} : vector<2x32xf32>, vector<32x3xf32>, vector<2x3xf32> -> vector<2x3xf32>
    %c0_5 = arith.constant 0 : index
    %c0_6 = arith.constant 0 : index
    %10 = vector.load %arg3[%c0_5, %c0_6] : memref<1x3xf32, #tpu.memory_space<vmem>>, vector<1x3xf32>
    %11 = vector.broadcast %10 : vector<1x3xf32> to vector<2x3xf32>
    %12 = arith.addf %9, %11 : vector<2x3xf32>
    %c0_7 = arith.constant 0 : index
    %c0_8 = arith.constant 0 : index
    %13 = vector.load %arg4[%c0_7, %c0_8] : memref<2x3xf32, #tpu.memory_space<vmem>>, vector<2x3xf32>
    tpu.vector_store %arg4[%c0_7, %c0_8], %12 {strides = array<i32>} : memref<2x3xf32, #tpu.memory_space<vmem>>, vector<2x3xf32>,
    return
  }
  func.func @transform_0(%arg0: i32) -> (i32, i32, i32) {
    %c0_i32 = arith.constant 0 : i32
    %c0_i32_0 = arith.constant 0 : i32
    %c0_i32_1 = arith.constant 0 : i32
    %c0_i32_2 = arith.constant 0 : i32
    return %c0_i32, %c0_i32_0, %c0_i32_1 : i32, i32, i32
  }
  func.func @transform_1(%arg0: i32) -> (i32, i32) {
    %c0_i32 = arith.constant 0 : i32
    %c0_i32_0 = arith.constant 0 : i32
    %c0_i32_1 = arith.constant 0 : i32
    return %c0_i32, %c0_i32_0 : i32, i32
  }
  func.func @transform_2(%arg0: i32) -> (i32, i32) {
    %c0_i32 = arith.constant 0 : i32
    %c0_i32_0 = arith.constant 0 : i32
    %c0_i32_1 = arith.constant 0 : i32
    return %c0_i32, %c0_i32_0 : i32, i32
  }
  func.func @transform_3(%arg0: i32) -> (i32, i32) {
    %c0_i32 = arith.constant 0 : i32
    %c0_i32_0 = arith.constant 0 : i32
    %c0_i32_1 = arith.constant 0 : i32
    return %c0_i32, %c0_i32_0 : i32, i32
  }
}

module attributes {stable_mosaic.version = 11 : i64} {
  func.func @_encoder_kernel(%arg0: i32, %arg1: memref<1x2x8x32xf32, #tpu.memory_space<vmem>>, %arg2: memref<1x2x1x8xf32, #tpu.memory_space<vmem>>, %arg3: memref<1x1x32xf32, #tpu.memory_space<vmem>>, %arg4: memref<1x1x32xf32, #tpu.memory_space<vmem>>, %arg5: memref<1x2x32x96xf32, #tpu.memory_space<vmem>>, %arg6: memref<1x2x1x96xf32, #tpu.memory_space<vmem>>, %arg7: memref<1x2x32x32xf32, #tpu.memory_space<vmem>>, %arg8: memref<1x2x1x32xf32, #tpu.memory_space<vmem>>, %arg9: memref<1x2x1x32xf32, #tpu.memory_space<vmem>>, %arg10: memref<1x2x1x32xf32, #tpu.memory_space<vmem>>, %arg11: memref<1x2x32x128xf32, #tpu.memory_space<vmem>>, %arg12: memref<1x2x1x128xf32, #tpu.memory_space<vmem>>, %arg13: memref<1x2x128x32xf32, #tpu.memory_space<vmem>>, %arg14: memref<1x2x1x32xf32, #tpu.memory_space<vmem>>, %arg15: memref<1x2x1x32xf32, #tpu.memory_space<vmem>>, %arg16: memref<1x2x1x32xf32, #tpu.memory_space<vmem>>, %arg17: memref<1x32x32xf32, #tpu.memory_space<vmem>>, %arg18: memref<1x1x32xf32, #tpu.memory_space<vmem>>, %arg19: memref<1x32x32xf32, #tpu.memory_space<vmem>>, %arg20: memref<1x1x32xf32, #tpu.memory_space<vmem>>, %arg21: memref<1x2x32xf32, #tpu.memory_space<vmem>>) attributes {dimension_semantics = [#tpu.dimension_semantics<parallel>], iteration_bounds = array<i64: 2>, scalar_prefetch = 0 : i64, scratch_operands = 0 : i64, tpu.core_type = #tpu.core_type<tc>, window_params = [{transform_indices = @transform_0, window_bounds = array<i64: 1, 2, 8, 32>}, {transform_indices = @transform_1, window_bounds = array<i64: 1, 2, 1, 8>}, {transform_indices = @transform_2, window_bounds = array<i64: 1, 1, 32>}, {transform_indices = @transform_3, window_bounds = array<i64: 1, 1, 32>}, {transform_indices = @transform_4, window_bounds = array<i64: 1, 2, 32, 96>}, {transform_indices = @transform_5, window_bounds = array<i64: 1, 2, 1, 96>}, {transform_indices = @transform_6, window_bounds = array<i64: 1, 2, 32, 32>}, {transform_indices = @transform_7, window_bounds = array<i64: 1, 2, 1, 32>}, {transform_indices = @transform_8, window_bounds = array<i64: 1, 2, 1, 32>}, {transform_indices = @transform_9, window_bounds = array<i64: 1, 2, 1, 32>}, {transform_indices = @transform_10, window_bounds = array<i64: 1, 2, 32, 128>}, {transform_indices = @transform_11, window_bounds = array<i64: 1, 2, 1, 128>}, {transform_indices = @transform_12, window_bounds = array<i64: 1, 2, 128, 32>}, {transform_indices = @transform_13, window_bounds = array<i64: 1, 2, 1, 32>}, {transform_indices = @transform_14, window_bounds = array<i64: 1, 2, 1, 32>}, {transform_indices = @transform_15, window_bounds = array<i64: 1, 2, 1, 32>}, {transform_indices = @transform_16, window_bounds = array<i64: 1, 32, 32>}, {transform_indices = @transform_17, window_bounds = array<i64: 1, 1, 32>}, {transform_indices = @transform_18, window_bounds = array<i64: 1, 32, 32>}, {transform_indices = @transform_19, window_bounds = array<i64: 1, 1, 32>}, {transform_indices = @transform_20, window_bounds = array<i64: 1, 2, 32>}]} {
    %c0 = arith.constant 0 : index
    %c0_0 = arith.constant 0 : index
    %c0_1 = arith.constant 0 : index
    %c0_2 = arith.constant 0 : index
    %0 = vector.load %arg2[%c0, %c0_0, %c0_1, %c0_2] : memref<1x2x1x8xf32, #tpu.memory_space<vmem>>, vector<1x2x1x8xf32>
    %1 = vector.shape_cast %0 : vector<1x2x1x8xf32> to vector<2x1x8xf32>
    %c0_3 = arith.constant 0 : index
    %c0_4 = arith.constant 0 : index
    %c0_5 = arith.constant 0 : index
    %c0_6 = arith.constant 0 : index
    %2 = vector.load %arg1[%c0_3, %c0_4, %c0_5, %c0_6] : memref<1x2x8x32xf32, #tpu.memory_space<vmem>>, vector<1x2x8x32xf32>
    %3 = vector.shape_cast %2 : vector<1x2x8x32xf32> to vector<2x8x32xf32>
    %c0_7 = arith.constant 0 : index
    %c0_8 = arith.constant 0 : index
    %c0_9 = arith.constant 0 : index
    %4 = vector.load %arg3[%c0_7, %c0_8, %c0_9] : memref<1x1x32xf32, #tpu.memory_space<vmem>>, vector<1x1x32xf32>
    %5 = vector.shape_cast %4 : vector<1x1x32xf32> to vector<1x32xf32>
    %c0_10 = arith.constant 0 : index
    %c0_11 = arith.constant 0 : index
    %c0_12 = arith.constant 0 : index
    %6 = vector.load %arg4[%c0_10, %c0_11, %c0_12] : memref<1x1x32xf32, #tpu.memory_space<vmem>>, vector<1x1x32xf32>
    %7 = vector.shape_cast %6 : vector<1x1x32xf32> to vector<1x32xf32>
    %cst = arith.constant dense<0.000000e+00> : vector<2x8xf32>
    %8 = vector.multi_reduction <add>, %3, %cst [2] : vector<2x8x32xf32> to vector<2x8xf32>
    %9 = vector.shape_cast %8 : vector<2x8xf32> to vector<2x8x1xf32>
    %cst_13 = arith.constant 3.200000e+01 : f32
    %10 = vector.broadcast %cst_13 : f32 to vector<2x8x1xf32>
    %11 = arith.divf %9, %10 : vector<2x8x1xf32>
    %12 = vector.broadcast %11 : vector<2x8x1xf32> to vector<2x8x32xf32>
    %13 = arith.subf %3, %12 : vector<2x8x32xf32>
    %14 = arith.mulf %13, %13 : vector<2x8x32xf32>
    %cst_14 = arith.constant dense<0.000000e+00> : vector<2x8xf32>
    %15 = vector.multi_reduction <add>, %14, %cst_14 [2] : vector<2x8x32xf32> to vector<2x8xf32>
    %16 = vector.shape_cast %15 : vector<2x8xf32> to vector<2x8x1xf32>
    %cst_15 = arith.constant 3.200000e+01 : f32
    %17 = vector.broadcast %cst_15 : f32 to vector<2x8x1xf32>
    %18 = arith.divf %16, %17 : vector<2x8x1xf32>
    %19 = vector.broadcast %11 : vector<2x8x1xf32> to vector<2x8x32xf32>
    %20 = arith.subf %3, %19 : vector<2x8x32xf32>
    %cst_16 = arith.constant 9.99999996E-13 : f32
    %21 = vector.broadcast %cst_16 : f32 to vector<2x8x1xf32>
    %22 = arith.addf %18, %21 : vector<2x8x1xf32>
    %23 = math.rsqrt %22 : vector<2x8x1xf32>
    %24 = vector.broadcast %23 : vector<2x8x1xf32> to vector<2x8x32xf32>
    %25 = arith.mulf %20, %24 : vector<2x8x32xf32>
    %26 = vector.shape_cast %5 : vector<1x32xf32> to vector<1x1x32xf32>
    %27 = vector.broadcast %26 : vector<1x1x32xf32> to vector<2x8x32xf32>
    %28 = arith.mulf %25, %27 : vector<2x8x32xf32>
    %29 = vector.shape_cast %7 : vector<1x32xf32> to vector<1x1x32xf32>
    %30 = vector.broadcast %29 : vector<1x1x32xf32> to vector<2x8x32xf32>
    %31 = arith.addf %28, %30 : vector<2x8x32xf32>
    %c0_17 = arith.constant 0 : index
    %c0_18 = arith.constant 0 : index
    %c0_19 = arith.constant 0 : index
    %c0_20 = arith.constant 0 : index
    %32 = vector.load %arg5[%c0_17, %c0_18, %c0_19, %c0_20] : memref<1x2x32x96xf32, #tpu.memory_space<vmem>>, vector<1x1x32x96xf32>
    %33 = vector.shape_cast %32 : vector<1x1x32x96xf32> to vector<32x96xf32>
    "tpu.trace_start"() <{level = 10 : i32, message = "bsh,hd->bsd"}> : () -> ()
    %cst_21 = arith.constant dense<0.000000e+00> : vector<2x8x96xf32>
    %34 = tpu.matmul %31, %33, %cst_21 {dimension_numbers = #tpu.dot_dimension_numbers<[2], [0], [0, 1], [1], [0, 0, 0, 1, 1, 1], [], []>} : vector<2x8x32xf32>, vector<32x96xf32>, vector<2x8x96xf32> -> vector<2x8x96xf32>
    "tpu.trace_stop"() : () -> ()
    %c0_22 = arith.constant 0 : index
    %c0_23 = arith.constant 0 : index
    %c0_24 = arith.constant 0 : index
    %c0_25 = arith.constant 0 : index
    %35 = vector.load %arg6[%c0_22, %c0_23, %c0_24, %c0_25] : memref<1x2x1x96xf32, #tpu.memory_space<vmem>>, vector<1x1x1x96xf32>
    %36 = vector.shape_cast %35 : vector<1x1x1x96xf32> to vector<1x96xf32>
    %37 = vector.shape_cast %36 : vector<1x96xf32> to vector<1x1x96xf32>
    %38 = vector.broadcast %37 : vector<1x1x96xf32> to vector<2x8x96xf32>
    %39 = arith.addf %34, %38 : vector<2x8x96xf32>
    %40 = vector.extract_strided_slice %39 {offsets = [0, 0, 0], sizes = [2, 8, 32], strides = [1, 1, 1]} : vector<2x8x96xf32> to vector<2x8x32xf32>
    %41 = vector.extract_strided_slice %39 {offsets = [0, 0, 32], sizes = [2, 8, 32], strides = [1, 1, 1]} : vector<2x8x96xf32> to vector<2x8x32xf32>
    %42 = vector.extract_strided_slice %39 {offsets = [0, 0, 64], sizes = [2, 8, 32], strides = [1, 1, 1]} : vector<2x8x96xf32> to vector<2x8x32xf32>
    "tpu.trace_start"() <{level = 10 : i32, message = "bqd,bkd->bqk"}> : () -> ()
    %cst_26 = arith.constant dense<0.000000e+00> : vector<2x8x8xf32>
    %43 = tpu.matmul %40, %41, %cst_26 {dimension_numbers = #tpu.dot_dimension_numbers<[2], [2], [1], [1], [0, 0, 0, 1, 1, 1], [0], [0]>} : vector<2x8x32xf32>, vector<2x8x32xf32>, vector<2x8x8xf32> -> vector<2x8x8xf32>
    "tpu.trace_stop"() : () -> ()
    %cst_27 = arith.constant 0.176776692 : f32
    %44 = vector.broadcast %cst_27 : f32 to vector<2x8x8xf32>
    %45 = arith.mulf %43, %44 : vector<2x8x8xf32>
    %46 = vector.broadcast %1 : vector<2x1x8xf32> to vector<2x8x8xf32>
    %47 = arith.addf %45, %46 : vector<2x8x8xf32>
    %cst_28 = arith.constant dense<0xFF800000> : vector<2x8xf32>
    %48 = vector.multi_reduction <maximumf>, %47, %cst_28 [2] : vector<2x8x8xf32> to vector<2x8xf32>
    %49 = vector.shape_cast %48 : vector<2x8xf32> to vector<2x8x1xf32>
    %50 = vector.broadcast %49 : vector<2x8x1xf32> to vector<2x8x8xf32>
    %51 = arith.subf %47, %50 : vector<2x8x8xf32>
    %52 = math.exp %51 : vector<2x8x8xf32>
    %cst_29 = arith.constant dense<0.000000e+00> : vector<2x8xf32>
    %53 = vector.multi_reduction <add>, %52, %cst_29 [2] : vector<2x8x8xf32> to vector<2x8xf32>
    %54 = vector.shape_cast %53 : vector<2x8xf32> to vector<2x8x1xf32>
    %55 = tpu.reciprocal %54 {approx = true} : vector<2x8x1xf32> -> vector<2x8x1xf32>
    %56 = vector.broadcast %55 : vector<2x8x1xf32> to vector<2x8x8xf32>
    %57 = arith.mulf %52, %56 : vector<2x8x8xf32>
    "tpu.trace_start"() <{level = 10 : i32, message = "bqk,bkd->bqd"}> : () -> ()
    %cst_30 = arith.constant dense<0.000000e+00> : vector<2x8x32xf32>
    %58 = tpu.matmul %57, %42, %cst_30 {dimension_numbers = #tpu.dot_dimension_numbers<[2], [1], [1], [2], [0, 0, 0, 1, 1, 2], [0], [0]>} : vector<2x8x8xf32>, vector<2x8x32xf32>, vector<2x8x32xf32> -> vector<2x8x32xf32>
    "tpu.trace_stop"() : () -> ()
    %c0_31 = arith.constant 0 : index
    %c0_32 = arith.constant 0 : index
    %c0_33 = arith.constant 0 : index
    %c0_34 = arith.constant 0 : index
    %59 = vector.load %arg7[%c0_31, %c0_32, %c0_33, %c0_34] : memref<1x2x32x32xf32, #tpu.memory_space<vmem>>, vector<1x1x32x32xf32>
    %60 = vector.shape_cast %59 : vector<1x1x32x32xf32> to vector<32x32xf32>
    "tpu.trace_start"() <{level = 10 : i32, message = "bsh,hd->bsd"}> : () -> ()
    %cst_35 = arith.constant dense<0.000000e+00> : vector<2x8x32xf32>
    %61 = tpu.matmul %58, %60, %cst_35 {dimension_numbers = #tpu.dot_dimension_numbers<[2], [0], [0, 1], [1], [0, 0, 0, 1, 1, 1], [], []>} : vector<2x8x32xf32>, vector<32x32xf32>, vector<2x8x32xf32> -> vector<2x8x32xf32>
    "tpu.trace_stop"() : () -> ()
    %c0_36 = arith.constant 0 : index
    %c0_37 = arith.constant 0 : index
    %c0_38 = arith.constant 0 : index
    %c0_39 = arith.constant 0 : index
    %62 = vector.load %arg8[%c0_36, %c0_37, %c0_38, %c0_39] : memref<1x2x1x32xf32, #tpu.memory_space<vmem>>, vector<1x1x1x32xf32>
    %63 = vector.shape_cast %62 : vector<1x1x1x32xf32> to vector<1x32xf32>
    %64 = vector.shape_cast %63 : vector<1x32xf32> to vector<1x1x32xf32>
    %65 = vector.broadcast %64 : vector<1x1x32xf32> to vector<2x8x32xf32>
    %66 = arith.addf %61, %65 : vector<2x8x32xf32>
    %67 = arith.addf %31, %66 : vector<2x8x32xf32>
    %c0_40 = arith.constant 0 : index
    %c0_41 = arith.constant 0 : index
    %c0_42 = arith.constant 0 : index
    %c0_43 = arith.constant 0 : index
    %68 = vector.load %arg9[%c0_40, %c0_41, %c0_42, %c0_43] : memref<1x2x1x32xf32, #tpu.memory_space<vmem>>, vector<1x1x1x32xf32>
    %69 = vector.shape_cast %68 : vector<1x1x1x32xf32> to vector<1x32xf32>
    %c0_44 = arith.constant 0 : index
    %c0_45 = arith.constant 0 : index
    %c0_46 = arith.constant 0 : index
    %c0_47 = arith.constant 0 : index
    %70 = vector.load %arg10[%c0_44, %c0_45, %c0_46, %c0_47] : memref<1x2x1x32xf32, #tpu.memory_space<vmem>>, vector<1x1x1x32xf32>
    %71 = vector.shape_cast %70 : vector<1x1x1x32xf32> to vector<1x32xf32>
    %cst_48 = arith.constant dense<0.000000e+00> : vector<2x8xf32>
    %72 = vector.multi_reduction <add>, %67, %cst_48 [2] : vector<2x8x32xf32> to vector<2x8xf32>
    %73 = vector.shape_cast %72 : vector<2x8xf32> to vector<2x8x1xf32>
    %cst_49 = arith.constant 3.200000e+01 : f32
    %74 = vector.broadcast %cst_49 : f32 to vector<2x8x1xf32>
    %75 = arith.divf %73, %74 : vector<2x8x1xf32>
    %76 = vector.broadcast %75 : vector<2x8x1xf32> to vector<2x8x32xf32>
    %77 = arith.subf %67, %76 : vector<2x8x32xf32>
    %78 = arith.mulf %77, %77 : vector<2x8x32xf32>
    %cst_50 = arith.constant dense<0.000000e+00> : vector<2x8xf32>
    %79 = vector.multi_reduction <add>, %78, %cst_50 [2] : vector<2x8x32xf32> to vector<2x8xf32>
    %80 = vector.shape_cast %79 : vector<2x8xf32> to vector<2x8x1xf32>
    %cst_51 = arith.constant 3.200000e+01 : f32
    %81 = vector.broadcast %cst_51 : f32 to vector<2x8x1xf32>
    %82 = arith.divf %80, %81 : vector<2x8x1xf32>
    %83 = vector.broadcast %75 : vector<2x8x1xf32> to vector<2x8x32xf32>
    %84 = arith.subf %67, %83 : vector<2x8x32xf32>
    %cst_52 = arith.constant 9.99999996E-13 : f32
    %85 = vector.broadcast %cst_52 : f32 to vector<2x8x1xf32>
    %86 = arith.addf %82, %85 : vector<2x8x1xf32>
    %87 = math.rsqrt %86 : vector<2x8x1xf32>
    %88 = vector.broadcast %87 : vector<2x8x1xf32> to vector<2x8x32xf32>
    %89 = arith.mulf %84, %88 : vector<2x8x32xf32>
    %90 = vector.shape_cast %69 : vector<1x32xf32> to vector<1x1x32xf32>
    %91 = vector.broadcast %90 : vector<1x1x32xf32> to vector<2x8x32xf32>
    %92 = arith.mulf %89, %91 : vector<2x8x32xf32>
    %93 = vector.shape_cast %71 : vector<1x32xf32> to vector<1x1x32xf32>
    %94 = vector.broadcast %93 : vector<1x1x32xf32> to vector<2x8x32xf32>
    %95 = arith.addf %92, %94 : vector<2x8x32xf32>
    %c0_53 = arith.constant 0 : index
    %c0_54 = arith.constant 0 : index
    %c0_55 = arith.constant 0 : index
    %c0_56 = arith.constant 0 : index
    %96 = vector.load %arg11[%c0_53, %c0_54, %c0_55, %c0_56] : memref<1x2x32x128xf32, #tpu.memory_space<vmem>>, vector<1x1x32x128xf32>
    %97 = vector.shape_cast %96 : vector<1x1x32x128xf32> to vector<32x128xf32>
    "tpu.trace_start"() <{level = 10 : i32, message = "bsh,hf->bsf"}> : () -> ()
    %cst_57 = arith.constant dense<0.000000e+00> : vector<2x8x128xf32>
    %98 = tpu.matmul %95, %97, %cst_57 {dimension_numbers = #tpu.dot_dimension_numbers<[2], [0], [0, 1], [1], [0, 0, 0, 1, 1, 1], [], []>} : vector<2x8x32xf32>, vector<32x128xf32>, vector<2x8x128xf32> -> vector<2x8x128xf32>
    "tpu.trace_stop"() : () -> ()
    %c0_58 = arith.constant 0 : index
    %c0_59 = arith.constant 0 : index
    %c0_60 = arith.constant 0 : index
    %c0_61 = arith.constant 0 : index
    %99 = vector.load %arg12[%c0_58, %c0_59, %c0_60, %c0_61] : memref<1x2x1x128xf32, #tpu.memory_space<vmem>>, vector<1x1x1x128xf32>
    %100 = vector.shape_cast %99 : vector<1x1x1x128xf32> to vector<1x128xf32>
    %101 = vector.shape_cast %100 : vector<1x128xf32> to vector<1x1x128xf32>
    %102 = vector.broadcast %101 : vector<1x1x128xf32> to vector<2x8x128xf32>
    %103 = arith.addf %98, %102 : vector<2x8x128xf32>
    %cst_62 = arith.constant 5.000000e-01 : f32
    %104 = vector.broadcast %cst_62 : f32 to vector<2x8x128xf32>
    %105 = arith.mulf %104, %103 : vector<2x8x128xf32>
    %cst_63 = arith.constant 4.471500e-02 : f32
    %106 = vector.broadcast %cst_63 : f32 to vector<2x8x128xf32>
    %107 = arith.mulf %106, %103 : vector<2x8x128xf32>
    %108 = arith.mulf %107, %103 : vector<2x8x128xf32>
    %109 = arith.mulf %108, %103 : vector<2x8x128xf32>
    %110 = arith.addf %103, %109 : vector<2x8x128xf32>
    %cst_64 = arith.constant 0.797884583 : f32
    %111 = vector.broadcast %cst_64 : f32 to vector<2x8x128xf32>
    %112 = arith.mulf %111, %110 : vector<2x8x128xf32>
    %113 = math.tanh %112 : vector<2x8x128xf32>
    %cst_65 = arith.constant 1.000000e+00 : f32
    %114 = vector.broadcast %cst_65 : f32 to vector<2x8x128xf32>
    %115 = arith.addf %114, %113 : vector<2x8x128xf32>
    %116 = arith.mulf %105, %115 : vector<2x8x128xf32>
    %c0_66 = arith.constant 0 : index
    %c0_67 = arith.constant 0 : index
    %c0_68 = arith.constant 0 : index
    %c0_69 = arith.constant 0 : index
    %117 = vector.load %arg13[%c0_66, %c0_67, %c0_68, %c0_69] : memref<1x2x128x32xf32, #tpu.memory_space<vmem>>, vector<1x1x128x32xf32>
    %118 = vector.shape_cast %117 : vector<1x1x128x32xf32> to vector<128x32xf32>
    "tpu.trace_start"() <{level = 10 : i32, message = "bsf,fh->bsh"}> : () -> ()
    %cst_70 = arith.constant dense<0.000000e+00> : vector<2x8x32xf32>
    %119 = tpu.matmul %116, %118, %cst_70 {dimension_numbers = #tpu.dot_dimension_numbers<[2], [0], [0, 1], [1], [0, 0, 0, 1, 1, 1], [], []>} : vector<2x8x128xf32>, vector<128x32xf32>, vector<2x8x32xf32> -> vector<2x8x32xf32>
    "tpu.trace_stop"() : () -> ()
    %c0_71 = arith.constant 0 : index
    %c0_72 = arith.constant 0 : index
    %c0_73 = arith.constant 0 : index
    %c0_74 = arith.constant 0 : index
    %120 = vector.load %arg14[%c0_71, %c0_72, %c0_73, %c0_74] : memref<1x2x1x32xf32, #tpu.memory_space<vmem>>, vector<1x1x1x32xf32>
    %121 = vector.shape_cast %120 : vector<1x1x1x32xf32> to vector<1x32xf32>
    %122 = vector.shape_cast %121 : vector<1x32xf32> to vector<1x1x32xf32>
    %123 = vector.broadcast %122 : vector<1x1x32xf32> to vector<2x8x32xf32>
    %124 = arith.addf %119, %123 : vector<2x8x32xf32>
    %125 = arith.addf %95, %124 : vector<2x8x32xf32>
    %c0_75 = arith.constant 0 : index
    %c0_76 = arith.constant 0 : index
    %c0_77 = arith.constant 0 : index
    %c0_78 = arith.constant 0 : index
    %126 = vector.load %arg15[%c0_75, %c0_76, %c0_77, %c0_78] : memref<1x2x1x32xf32, #tpu.memory_space<vmem>>, vector<1x1x1x32xf32>
    %127 = vector.shape_cast %126 : vector<1x1x1x32xf32> to vector<1x32xf32>
    %c0_79 = arith.constant 0 : index
    %c0_80 = arith.constant 0 : index
    %c0_81 = arith.constant 0 : index
    %c0_82 = arith.constant 0 : index
    %128 = vector.load %arg16[%c0_79, %c0_80, %c0_81, %c0_82] : memref<1x2x1x32xf32, #tpu.memory_space<vmem>>, vector<1x1x1x32xf32>
    %129 = vector.shape_cast %128 : vector<1x1x1x32xf32> to vector<1x32xf32>
    %cst_83 = arith.constant dense<0.000000e+00> : vector<2x8xf32>
    %130 = vector.multi_reduction <add>, %125, %cst_83 [2] : vector<2x8x32xf32> to vector<2x8xf32>
    %131 = vector.shape_cast %130 : vector<2x8xf32> to vector<2x8x1xf32>
    %cst_84 = arith.constant 3.200000e+01 : f32
    %132 = vector.broadcast %cst_84 : f32 to vector<2x8x1xf32>
    %133 = arith.divf %131, %132 : vector<2x8x1xf32>
    %134 = vector.broadcast %133 : vector<2x8x1xf32> to vector<2x8x32xf32>
    %135 = arith.subf %125, %134 : vector<2x8x32xf32>
    %136 = arith.mulf %135, %135 : vector<2x8x32xf32>
    %cst_85 = arith.constant dense<0.000000e+00> : vector<2x8xf32>
    %137 = vector.multi_reduction <add>, %136, %cst_85 [2] : vector<2x8x32xf32> to vector<2x8xf32>
    %138 = vector.shape_cast %137 : vector<2x8xf32> to vector<2x8x1xf32>
    %cst_86 = arith.constant 3.200000e+01 : f32
    %139 = vector.broadcast %cst_86 : f32 to vector<2x8x1xf32>
    %140 = arith.divf %138, %139 : vector<2x8x1xf32>
    %141 = vector.broadcast %133 : vector<2x8x1xf32> to vector<2x8x32xf32>
    %142 = arith.subf %125, %141 : vector<2x8x32xf32>
    %cst_87 = arith.constant 9.99999996E-13 : f32
    %143 = vector.broadcast %cst_87 : f32 to vector<2x8x1xf32>
    %144 = arith.addf %140, %143 : vector<2x8x1xf32>
    %145 = math.rsqrt %144 : vector<2x8x1xf32>
    %146 = vector.broadcast %145 : vector<2x8x1xf32> to vector<2x8x32xf32>
    %147 = arith.mulf %142, %146 : vector<2x8x32xf32>
    %148 = vector.shape_cast %127 : vector<1x32xf32> to vector<1x1x32xf32>
    %149 = vector.broadcast %148 : vector<1x1x32xf32> to vector<2x8x32xf32>
    %150 = arith.mulf %147, %149 : vector<2x8x32xf32>
    %151 = vector.shape_cast %129 : vector<1x32xf32> to vector<1x1x32xf32>
    %152 = vector.broadcast %151 : vector<1x1x32xf32> to vector<2x8x32xf32>
    %153 = arith.addf %150, %152 : vector<2x8x32xf32>
    %c0_88 = arith.constant 0 : index
    %c1 = arith.constant 1 : index
    %c0_89 = arith.constant 0 : index
    %c0_90 = arith.constant 0 : index
    %154 = vector.load %arg5[%c0_88, %c1, %c0_89, %c0_90] : memref<1x2x32x96xf32, #tpu.memory_space<vmem>>, vector<1x1x32x96xf32>
    %155 = vector.shape_cast %154 : vector<1x1x32x96xf32> to vector<32x96xf32>
    "tpu.trace_start"() <{level = 10 : i32, message = "bsh,hd->bsd"}> : () -> ()
    %cst_91 = arith.constant dense<0.000000e+00> : vector<2x8x96xf32>
    %156 = tpu.matmul %153, %155, %cst_91 {dimension_numbers = #tpu.dot_dimension_numbers<[2], [0], [0, 1], [1], [0, 0, 0, 1, 1, 1], [], []>} : vector<2x8x32xf32>, vector<32x96xf32>, vector<2x8x96xf32> -> vector<2x8x96xf32>
    "tpu.trace_stop"() : () -> ()
    %c0_92 = arith.constant 0 : index
    %c1_93 = arith.constant 1 : index
    %c0_94 = arith.constant 0 : index
    %c0_95 = arith.constant 0 : index
    %157 = vector.load %arg6[%c0_92, %c1_93, %c0_94, %c0_95] : memref<1x2x1x96xf32, #tpu.memory_space<vmem>>, vector<1x1x1x96xf32>
    %158 = vector.shape_cast %157 : vector<1x1x1x96xf32> to vector<1x96xf32>
    %159 = vector.shape_cast %158 : vector<1x96xf32> to vector<1x1x96xf32>
    %160 = vector.broadcast %159 : vector<1x1x96xf32> to vector<2x8x96xf32>
    %161 = arith.addf %156, %160 : vector<2x8x96xf32>
    %162 = vector.extract_strided_slice %161 {offsets = [0, 0, 0], sizes = [2, 8, 32], strides = [1, 1, 1]} : vector<2x8x96xf32> to vector<2x8x32xf32>
    %163 = vector.extract_strided_slice %161 {offsets = [0, 0, 32], sizes = [2, 8, 32], strides = [1, 1, 1]} : vector<2x8x96xf32> to vector<2x8x32xf32>
    %164 = vector.extract_strided_slice %161 {offsets = [0, 0, 64], sizes = [2, 8, 32], strides = [1, 1, 1]} : vector<2x8x96xf32> to vector<2x8x32xf32>
    "tpu.trace_start"() <{level = 10 : i32, message = "bqd,bkd->bqk"}> : () -> ()
    %cst_96 = arith.constant dense<0.000000e+00> : vector<2x8x8xf32>
    %165 = tpu.matmul %162, %163, %cst_96 {dimension_numbers = #tpu.dot_dimension_numbers<[2], [2], [1], [1], [0, 0, 0, 1, 1, 1], [0], [0]>} : vector<2x8x32xf32>, vector<2x8x32xf32>, vector<2x8x8xf32> -> vector<2x8x8xf32>
    "tpu.trace_stop"() : () -> ()
    %cst_97 = arith.constant 0.176776692 : f32
    %166 = vector.broadcast %cst_97 : f32 to vector<2x8x8xf32>
    %167 = arith.mulf %165, %166 : vector<2x8x8xf32>
    %168 = vector.broadcast %1 : vector<2x1x8xf32> to vector<2x8x8xf32>
    %169 = arith.addf %167, %168 : vector<2x8x8xf32>
    %cst_98 = arith.constant dense<0xFF800000> : vector<2x8xf32>
    %170 = vector.multi_reduction <maximumf>, %169, %cst_98 [2] : vector<2x8x8xf32> to vector<2x8xf32>
    %171 = vector.shape_cast %170 : vector<2x8xf32> to vector<2x8x1xf32>
    %172 = vector.broadcast %171 : vector<2x8x1xf32> to vector<2x8x8xf32>
    %173 = arith.subf %169, %172 : vector<2x8x8xf32>
    %174 = math.exp %173 : vector<2x8x8xf32>
    %cst_99 = arith.constant dense<0.000000e+00> : vector<2x8xf32>
    %175 = vector.multi_reduction <add>, %174, %cst_99 [2] : vector<2x8x8xf32> to vector<2x8xf32>
    %176 = vector.shape_cast %175 : vector<2x8xf32> to vector<2x8x1xf32>
    %177 = tpu.reciprocal %176 {approx = true} : vector<2x8x1xf32> -> vector<2x8x1xf32>
    %178 = vector.broadcast %177 : vector<2x8x1xf32> to vector<2x8x8xf32>
    %179 = arith.mulf %174, %178 : vector<2x8x8xf32>
    "tpu.trace_start"() <{level = 10 : i32, message = "bqk,bkd->bqd"}> : () -> ()
    %cst_100 = arith.constant dense<0.000000e+00> : vector<2x8x32xf32>
    %180 = tpu.matmul %179, %164, %cst_100 {dimension_numbers = #tpu.dot_dimension_numbers<[2], [1], [1], [2], [0, 0, 0, 1, 1, 2], [0], [0]>} : vector<2x8x8xf32>, vector<2x8x32xf32>, vector<2x8x32xf32> -> vector<2x8x32xf32>
    "tpu.trace_stop"() : () -> ()
    %c0_101 = arith.constant 0 : index
    %c1_102 = arith.constant 1 : index
    %c0_103 = arith.constant 0 : index
    %c0_104 = arith.constant 0 : index
    %181 = vector.load %arg7[%c0_101, %c1_102, %c0_103, %c0_104] : memref<1x2x32x32xf32, #tpu.memory_space<vmem>>, vector<1x1x32x32xf32>
    %182 = vector.shape_cast %181 : vector<1x1x32x32xf32> to vector<32x32xf32>
    "tpu.trace_start"() <{level = 10 : i32, message = "bsh,hd->bsd"}> : () -> ()
    %cst_105 = arith.constant dense<0.000000e+00> : vector<2x8x32xf32>
    %183 = tpu.matmul %180, %182, %cst_105 {dimension_numbers = #tpu.dot_dimension_numbers<[2], [0], [0, 1], [1], [0, 0, 0, 1, 1, 1], [], []>} : vector<2x8x32xf32>, vector<32x32xf32>, vector<2x8x32xf32> -> vector<2x8x32xf32>
    "tpu.trace_stop"() : () -> ()
    %c0_106 = arith.constant 0 : index
    %c1_107 = arith.constant 1 : index
    %c0_108 = arith.constant 0 : index
    %c0_109 = arith.constant 0 : index
    %184 = vector.load %arg8[%c0_106, %c1_107, %c0_108, %c0_109] : memref<1x2x1x32xf32, #tpu.memory_space<vmem>>, vector<1x1x1x32xf32>
    %185 = vector.shape_cast %184 : vector<1x1x1x32xf32> to vector<1x32xf32>
    %186 = vector.shape_cast %185 : vector<1x32xf32> to vector<1x1x32xf32>
    %187 = vector.broadcast %186 : vector<1x1x32xf32> to vector<2x8x32xf32>
    %188 = arith.addf %183, %187 : vector<2x8x32xf32>
    %189 = arith.addf %153, %188 : vector<2x8x32xf32>
    %c0_110 = arith.constant 0 : index
    %c1_111 = arith.constant 1 : index
    %c0_112 = arith.constant 0 : index
    %c0_113 = arith.constant 0 : index
    %190 = vector.load %arg9[%c0_110, %c1_111, %c0_112, %c0_113] : memref<1x2x1x32xf32, #tpu.memory_space<vmem>>, vector<1x1x1x32xf32>
    %191 = vector.shape_cast %190 : vector<1x1x1x32xf32> to vector<1x32xf32>
    %c0_114 = arith.constant 0 : index
    %c1_115 = arith.constant 1 : index
    %c0_116 = arith.constant 0 : index
    %c0_117 = arith.constant 0 : index
    %192 = vector.load %arg10[%c0_114, %c1_115, %c0_116, %c0_117] : memref<1x2x1x32xf32, #tpu.memory_space<vmem>>, vector<1x1x1x32xf32>
    %193 = vector.shape_cast %192 : vector<1x1x1x32xf32> to vector<1x32xf32>
    %cst_118 = arith.constant dense<0.000000e+00> : vector<2x8xf32>
    %194 = vector.multi_reduction <add>, %189, %cst_118 [2] : vector<2x8x32xf32> to vector<2x8xf32>
    %195 = vector.shape_cast %194 : vector<2x8xf32> to vector<2x8x1xf32>
    %cst_119 = arith.constant 3.200000e+01 : f32
    %196 = vector.broadcast %cst_119 : f32 to vector<2x8x1xf32>
    %197 = arith.divf %195, %196 : vector<2x8x1xf32>
    %198 = vector.broadcast %197 : vector<2x8x1xf32> to vector<2x8x32xf32>
    %199 = arith.subf %189, %198 : vector<2x8x32xf32>
    %200 = arith.mulf %199, %199 : vector<2x8x32xf32>
    %cst_120 = arith.constant dense<0.000000e+00> : vector<2x8xf32>
    %201 = vector.multi_reduction <add>, %200, %cst_120 [2] : vector<2x8x32xf32> to vector<2x8xf32>
    %202 = vector.shape_cast %201 : vector<2x8xf32> to vector<2x8x1xf32>
    %cst_121 = arith.constant 3.200000e+01 : f32
    %203 = vector.broadcast %cst_121 : f32 to vector<2x8x1xf32>
    %204 = arith.divf %202, %203 : vector<2x8x1xf32>
    %205 = vector.broadcast %197 : vector<2x8x1xf32> to vector<2x8x32xf32>
    %206 = arith.subf %189, %205 : vector<2x8x32xf32>
    %cst_122 = arith.constant 9.99999996E-13 : f32
    %207 = vector.broadcast %cst_122 : f32 to vector<2x8x1xf32>
    %208 = arith.addf %204, %207 : vector<2x8x1xf32>
    %209 = math.rsqrt %208 : vector<2x8x1xf32>
    %210 = vector.broadcast %209 : vector<2x8x1xf32> to vector<2x8x32xf32>
    %211 = arith.mulf %206, %210 : vector<2x8x32xf32>
    %212 = vector.shape_cast %191 : vector<1x32xf32> to vector<1x1x32xf32>
    %213 = vector.broadcast %212 : vector<1x1x32xf32> to vector<2x8x32xf32>
    %214 = arith.mulf %211, %213 : vector<2x8x32xf32>
    %215 = vector.shape_cast %193 : vector<1x32xf32> to vector<1x1x32xf32>
    %216 = vector.broadcast %215 : vector<1x1x32xf32> to vector<2x8x32xf32>
    %217 = arith.addf %214, %216 : vector<2x8x32xf32>
    %c0_123 = arith.constant 0 : index
    %c1_124 = arith.constant 1 : index
    %c0_125 = arith.constant 0 : index
    %c0_126 = arith.constant 0 : index
    %218 = vector.load %arg11[%c0_123, %c1_124, %c0_125, %c0_126] : memref<1x2x32x128xf32, #tpu.memory_space<vmem>>, vector<1x1x32x128xf32>
    %219 = vector.shape_cast %218 : vector<1x1x32x128xf32> to vector<32x128xf32>
    "tpu.trace_start"() <{level = 10 : i32, message = "bsh,hf->bsf"}> : () -> ()
    %cst_127 = arith.constant dense<0.000000e+00> : vector<2x8x128xf32>
    %220 = tpu.matmul %217, %219, %cst_127 {dimension_numbers = #tpu.dot_dimension_numbers<[2], [0], [0, 1], [1], [0, 0, 0, 1, 1, 1], [], []>} : vector<2x8x32xf32>, vector<32x128xf32>, vector<2x8x128xf32> -> vector<2x8x128xf32>
    "tpu.trace_stop"() : () -> ()
    %c0_128 = arith.constant 0 : index
    %c1_129 = arith.constant 1 : index
    %c0_130 = arith.constant 0 : index
    %c0_131 = arith.constant 0 : index
    %221 = vector.load %arg12[%c0_128, %c1_129, %c0_130, %c0_131] : memref<1x2x1x128xf32, #tpu.memory_space<vmem>>, vector<1x1x1x128xf32>
    %222 = vector.shape_cast %221 : vector<1x1x1x128xf32> to vector<1x128xf32>
    %223 = vector.shape_cast %222 : vector<1x128xf32> to vector<1x1x128xf32>
    %224 = vector.broadcast %223 : vector<1x1x128xf32> to vector<2x8x128xf32>
    %225 = arith.addf %220, %224 : vector<2x8x128xf32>
    %cst_132 = arith.constant 5.000000e-01 : f32
    %226 = vector.broadcast %cst_132 : f32 to vector<2x8x128xf32>
    %227 = arith.mulf %226, %225 : vector<2x8x128xf32>
    %cst_133 = arith.constant 4.471500e-02 : f32
    %228 = vector.broadcast %cst_133 : f32 to vector<2x8x128xf32>
    %229 = arith.mulf %228, %225 : vector<2x8x128xf32>
    %230 = arith.mulf %229, %225 : vector<2x8x128xf32>
    %231 = arith.mulf %230, %225 : vector<2x8x128xf32>
    %232 = arith.addf %225, %231 : vector<2x8x128xf32>
    %cst_134 = arith.constant 0.797884583 : f32
    %233 = vector.broadcast %cst_134 : f32 to vector<2x8x128xf32>
    %234 = arith.mulf %233, %232 : vector<2x8x128xf32>
    %235 = math.tanh %234 : vector<2x8x128xf32>
    %cst_135 = arith.constant 1.000000e+00 : f32
    %236 = vector.broadcast %cst_135 : f32 to vector<2x8x128xf32>
    %237 = arith.addf %236, %235 : vector<2x8x128xf32>
    %238 = arith.mulf %227, %237 : vector<2x8x128xf32>
    %c0_136 = arith.constant 0 : index
    %c1_137 = arith.constant 1 : index
    %c0_138 = arith.constant 0 : index
    %c0_139 = arith.constant 0 : index
    %239 = vector.load %arg13[%c0_136, %c1_137, %c0_138, %c0_139] : memref<1x2x128x32xf32, #tpu.memory_space<vmem>>, vector<1x1x128x32xf32>
    %240 = vector.shape_cast %239 : vector<1x1x128x32xf32> to vector<128x32xf32>
    "tpu.trace_start"() <{level = 10 : i32, message = "bsf,fh->bsh"}> : () -> ()
    %cst_140 = arith.constant dense<0.000000e+00> : vector<2x8x32xf32>
    %241 = tpu.matmul %238, %240, %cst_140 {dimension_numbers = #tpu.dot_dimension_numbers<[2], [0], [0, 1], [1], [0, 0, 0, 1, 1, 1], [], []>} : vector<2x8x128xf32>, vector<128x32xf32>, vector<2x8x32xf32> -> vector<2x8x32xf32>
    "tpu.trace_stop"() : () -> ()
    %c0_141 = arith.constant 0 : index
    %c1_142 = arith.constant 1 : index
    %c0_143 = arith.constant 0 : index
    %c0_144 = arith.constant 0 : index
    %242 = vector.load %arg14[%c0_141, %c1_142, %c0_143, %c0_144] : memref<1x2x1x32xf32, #tpu.memory_space<vmem>>, vector<1x1x1x32xf32>
    %243 = vector.shape_cast %242 : vector<1x1x1x32xf32> to vector<1x32xf32>
    %244 = vector.shape_cast %243 : vector<1x32xf32> to vector<1x1x32xf32>
    %245 = vector.broadcast %244 : vector<1x1x32xf32> to vector<2x8x32xf32>
    %246 = arith.addf %241, %245 : vector<2x8x32xf32>
    %247 = arith.addf %217, %246 : vector<2x8x32xf32>
    %c0_145 = arith.constant 0 : index
    %c1_146 = arith.constant 1 : index
    %c0_147 = arith.constant 0 : index
    %c0_148 = arith.constant 0 : index
    %248 = vector.load %arg15[%c0_145, %c1_146, %c0_147, %c0_148] : memref<1x2x1x32xf32, #tpu.memory_space<vmem>>, vector<1x1x1x32xf32>
    %249 = vector.shape_cast %248 : vector<1x1x1x32xf32> to vector<1x32xf32>
    %c0_149 = arith.constant 0 : index
    %c1_150 = arith.constant 1 : index
    %c0_151 = arith.constant 0 : index
    %c0_152 = arith.constant 0 : index
    %250 = vector.load %arg16[%c0_149, %c1_150, %c0_151, %c0_152] : memref<1x2x1x32xf32, #tpu.memory_space<vmem>>, vector<1x1x1x32xf32>
    %251 = vector.shape_cast %250 : vector<1x1x1x32xf32> to vector<1x32xf32>
    %cst_153 = arith.constant dense<0.000000e+00> : vector<2x8xf32>
    %252 = vector.multi_reduction <add>, %247, %cst_153 [2] : vector<2x8x32xf32> to vector<2x8xf32>
    %253 = vector.shape_cast %252 : vector<2x8xf32> to vector<2x8x1xf32>
    %cst_154 = arith.constant 3.200000e+01 : f32
    %254 = vector.broadcast %cst_154 : f32 to vector<2x8x1xf32>
    %255 = arith.divf %253, %254 : vector<2x8x1xf32>
    %256 = vector.broadcast %255 : vector<2x8x1xf32> to vector<2x8x32xf32>
    %257 = arith.subf %247, %256 : vector<2x8x32xf32>
    %258 = arith.mulf %257, %257 : vector<2x8x32xf32>
    %cst_155 = arith.constant dense<0.000000e+00> : vector<2x8xf32>
    %259 = vector.multi_reduction <add>, %258, %cst_155 [2] : vector<2x8x32xf32> to vector<2x8xf32>
    %260 = vector.shape_cast %259 : vector<2x8xf32> to vector<2x8x1xf32>
    %cst_156 = arith.constant 3.200000e+01 : f32
    %261 = vector.broadcast %cst_156 : f32 to vector<2x8x1xf32>
    %262 = arith.divf %260, %261 : vector<2x8x1xf32>
    %263 = vector.broadcast %255 : vector<2x8x1xf32> to vector<2x8x32xf32>
    %264 = arith.subf %247, %263 : vector<2x8x32xf32>
    %cst_157 = arith.constant 9.99999996E-13 : f32
    %265 = vector.broadcast %cst_157 : f32 to vector<2x8x1xf32>
    %266 = arith.addf %262, %265 : vector<2x8x1xf32>
    %267 = math.rsqrt %266 : vector<2x8x1xf32>
    %268 = vector.broadcast %267 : vector<2x8x1xf32> to vector<2x8x32xf32>
    %269 = arith.mulf %264, %268 : vector<2x8x32xf32>
    %270 = vector.shape_cast %249 : vector<1x32xf32> to vector<1x1x32xf32>
    %271 = vector.broadcast %270 : vector<1x1x32xf32> to vector<2x8x32xf32>
    %272 = arith.mulf %269, %271 : vector<2x8x32xf32>
    %273 = vector.shape_cast %251 : vector<1x32xf32> to vector<1x1x32xf32>
    %274 = vector.broadcast %273 : vector<1x1x32xf32> to vector<2x8x32xf32>
    %275 = arith.addf %272, %274 : vector<2x8x32xf32>
    %276 = vector.extract_strided_slice %275 {offsets = [0, 0, 0], sizes = [2, 1, 32], strides = [1, 1, 1]} : vector<2x8x32xf32> to vector<2x1x32xf32>
    %277 = vector.shape_cast %276 : vector<2x1x32xf32> to vector<2x32xf32>
    %c0_158 = arith.constant 0 : index
    %c0_159 = arith.constant 0 : index
    %c0_160 = arith.constant 0 : index
    %278 = vector.load %arg17[%c0_158, %c0_159, %c0_160] : memref<1x32x32xf32, #tpu.memory_space<vmem>>, vector<1x32x32xf32>
    %279 = vector.shape_cast %278 : vector<1x32x32xf32> to vector<32x32xf32>
    %cst_161 = arith.constant dense<0.000000e+00> : vector<2x32xf32>
    %280 = tpu.matmul %277, %279, %cst_161 {dimension_numbers = #tpu.dot_dimension_numbers<[1], [0], [0], [1], [0, 0, 1, 1], [], []>} : vector<2x32xf32>, vector<32x32xf32>, vector<2x32xf32> -> vector<2x32xf32>
    %c0_162 = arith.constant 0 : index
    %c0_163 = arith.constant 0 : index
    %c0_164 = arith.constant 0 : index
    %281 = vector.load %arg18[%c0_162, %c0_163, %c0_164] : memref<1x1x32xf32, #tpu.memory_space<vmem>>, vector<1x1x32xf32>
    %282 = vector.shape_cast %281 : vector<1x1x32xf32> to vector<1x32xf32>
    %283 = vector.broadcast %282 : vector<1x32xf32> to vector<2x32xf32>
    %284 = arith.addf %280, %283 : vector<2x32xf32>
    %c0_i32 = arith.constant 0 : i32
    %285 = arith.cmpi eq, %arg0, %c0_i32 : i32
    %cst_165 = arith.constant 0.000000e+00 : f32
    %286 = vector.broadcast %cst_165 : f32 to vector<2x32xf32>
    %287 = arith.maximumf %284, %286 : vector<2x32xf32>
    %288 = math.tanh %284 : vector<2x32xf32>
    %289 = arith.select %285, %287, %288 : vector<2x32xf32>
    %c0_166 = arith.constant 0 : index
    %c0_167 = arith.constant 0 : index
    %c0_168 = arith.constant 0 : index
    %290 = vector.load %arg19[%c0_166, %c0_167, %c0_168] : memref<1x32x32xf32, #tpu.memory_space<vmem>>, vector<1x32x32xf32>
    %291 = vector.shape_cast %290 : vector<1x32x32xf32> to vector<32x32xf32>
    %cst_169 = arith.constant dense<0.000000e+00> : vector<2x32xf32>
    %292 = tpu.matmul %289, %291, %cst_169 {dimension_numbers = #tpu.dot_dimension_numbers<[1], [0], [0], [1], [0, 0, 1, 1], [], []>} : vector<2x32xf32>, vector<32x32xf32>, vector<2x32xf32> -> vector<2x32xf32>
    %c0_170 = arith.constant 0 : index
    %c0_171 = arith.constant 0 : index
    %c0_172 = arith.constant 0 : index
    %293 = vector.load %arg20[%c0_170, %c0_171, %c0_172] : memref<1x1x32xf32, #tpu.memory_space<vmem>>, vector<1x1x32xf32>
    %294 = vector.shape_cast %293 : vector<1x1x32xf32> to vector<1x32xf32>
    %295 = vector.broadcast %294 : vector<1x32xf32> to vector<2x32xf32>
    %296 = arith.addf %292, %295 : vector<2x32xf32>
    %c0_173 = arith.constant 0 : index
    %c0_174 = arith.constant 0 : index
    %c0_175 = arith.constant 0 : index
    %297 = vector.load %arg21[%c0_173, %c0_174, %c0_175] : memref<1x2x32xf32, #tpu.memory_space<vmem>>, vector<1x2x32xf32>
    %298 = vector.shape_cast %297 : vector<1x2x32xf32> to vector<2x32xf32>
    %299 = vector.shape_cast %296 : vector<2x32xf32> to vector<1x2x32xf32>
    tpu.vector_store %arg21[%c0_173, %c0_174, %c0_175], %299 {strides = array<i32>} : memref<1x2x32xf32, #tpu.memory_space<vmem>>, vector<1x2x32xf32>,
    return
  }
  func.func @transform_0(%arg0: i32) -> (i32, i32, i32, i32) {
    %c0_i32 = arith.constant 0 : i32
    %c0_i32_0 = arith.constant 0 : i32
    %c0_i32_1 = arith.constant 0 : i32
    %c0_i32_2 = arith.constant 0 : i32
    return %arg0, %c0_i32, %c0_i32_0, %c0_i32_1 : i32, i32, i32, i32
  }
  func.func @transform_1(%arg0: i32) -> (i32, i32, i32, i32) {
    %c0_i32 = arith.constant 0 : i32
    %c0_i32_0 = arith.constant 0 : i32
    %c0_i32_1 = arith.constant 0 : i32
    %c0_i32_2 = arith.constant 0 : i32
    return %arg0, %c0_i32, %c0_i32_0, %c0_i32_1 : i32, i32, i32, i32
  }
  func.func @transform_2(%arg0: i32) -> (i32, i32, i32) {
    %c0_i32 = arith.constant 0 : i32
    %c0_i32_0 = arith.constant 0 : i32
    %c0_i32_1 = arith.constant 0 : i32
    return %arg0, %c0_i32, %c0_i32_0 : i32, i32, i32
  }
  func.func @transform_3(%arg0: i32) -> (i32, i32, i32) {
    %c0_i32 = arith.constant 0 : i32
    %c0_i32_0 = arith.constant 0 : i32
    %c0_i32_1 = arith.constant 0 : i32
    return %arg0, %c0_i32, %c0_i32_0 : i32, i32, i32
  }
  func.func @transform_4(%arg0: i32) -> (i32, i32, i32, i32) {
    %c0_i32 = arith.constant 0 : i32
    %c0_i32_0 = arith.constant 0 : i32
    %c0_i32_1 = arith.constant 0 : i32
    %c0_i32_2 = arith.constant 0 : i32
    return %arg0, %c0_i32, %c0_i32_0, %c0_i32_1 : i32, i32, i32, i32
  }
  func.func @transform_5(%arg0: i32) -> (i32, i32, i32, i32) {
    %c0_i32 = arith.constant 0 : i32
    %c0_i32_0 = arith.constant 0 : i32
    %c0_i32_1 = arith.constant 0 : i32
    %c0_i32_2 = arith.constant 0 : i32
    return %arg0, %c0_i32, %c0_i32_0, %c0_i32_1 : i32, i32, i32, i32
  }
  func.func @transform_6(%arg0: i32) -> (i32, i32, i32, i32) {
    %c0_i32 = arith.constant 0 : i32
    %c0_i32_0 = arith.constant 0 : i32
    %c0_i32_1 = arith.constant 0 : i32
    %c0_i32_2 = arith.constant 0 : i32
    return %arg0, %c0_i32, %c0_i32_0, %c0_i32_1 : i32, i32, i32, i32
  }
  func.func @transform_7(%arg0: i32) -> (i32, i32, i32, i32) {
    %c0_i32 = arith.constant 0 : i32
    %c0_i32_0 = arith.constant 0 : i32
    %c0_i32_1 = arith.constant 0 : i32
    %c0_i32_2 = arith.constant 0 : i32
    return %arg0, %c0_i32, %c0_i32_0, %c0_i32_1 : i32, i32, i32, i32
  }
  func.func @transform_8(%arg0: i32) -> (i32, i32, i32, i32) {
    %c0_i32 = arith.constant 0 : i32
    %c0_i32_0 = arith.constant 0 : i32
    %c0_i32_1 = arith.constant 0 : i32
    %c0_i32_2 = arith.constant 0 : i32
    return %arg0, %c0_i32, %c0_i32_0, %c0_i32_1 : i32, i32, i32, i32
  }
  func.func @transform_9(%arg0: i32) -> (i32, i32, i32, i32) {
    %c0_i32 = arith.constant 0 : i32
    %c0_i32_0 = arith.constant 0 : i32
    %c0_i32_1 = arith.constant 0 : i32
    %c0_i32_2 = arith.constant 0 : i32
    return %arg0, %c0_i32, %c0_i32_0, %c0_i32_1 : i32, i32, i32, i32
  }
  func.func @transform_10(%arg0: i32) -> (i32, i32, i32, i32) {
    %c0_i32 = arith.constant 0 : i32
    %c0_i32_0 = arith.constant 0 : i32
    %c0_i32_1 = arith.constant 0 : i32
    %c0_i32_2 = arith.constant 0 : i32
    return %arg0, %c0_i32, %c0_i32_0, %c0_i32_1 : i32, i32, i32, i32
  }
  func.func @transform_11(%arg0: i32) -> (i32, i32, i32, i32) {
    %c0_i32 = arith.constant 0 : i32
    %c0_i32_0 = arith.constant 0 : i32
    %c0_i32_1 = arith.constant 0 : i32
    %c0_i32_2 = arith.constant 0 : i32
    return %arg0, %c0_i32, %c0_i32_0, %c0_i32_1 : i32, i32, i32, i32
  }
  func.func @transform_12(%arg0: i32) -> (i32, i32, i32, i32) {
    %c0_i32 = arith.constant 0 : i32
    %c0_i32_0 = arith.constant 0 : i32
    %c0_i32_1 = arith.constant 0 : i32
    %c0_i32_2 = arith.constant 0 : i32
    return %arg0, %c0_i32, %c0_i32_0, %c0_i32_1 : i32, i32, i32, i32
  }
  func.func @transform_13(%arg0: i32) -> (i32, i32, i32, i32) {
    %c0_i32 = arith.constant 0 : i32
    %c0_i32_0 = arith.constant 0 : i32
    %c0_i32_1 = arith.constant 0 : i32
    %c0_i32_2 = arith.constant 0 : i32
    return %arg0, %c0_i32, %c0_i32_0, %c0_i32_1 : i32, i32, i32, i32
  }
  func.func @transform_14(%arg0: i32) -> (i32, i32, i32, i32) {
    %c0_i32 = arith.constant 0 : i32
    %c0_i32_0 = arith.constant 0 : i32
    %c0_i32_1 = arith.constant 0 : i32
    %c0_i32_2 = arith.constant 0 : i32
    return %arg0, %c0_i32, %c0_i32_0, %c0_i32_1 : i32, i32, i32, i32
  }
  func.func @transform_15(%arg0: i32) -> (i32, i32, i32, i32) {
    %c0_i32 = arith.constant 0 : i32
    %c0_i32_0 = arith.constant 0 : i32
    %c0_i32_1 = arith.constant 0 : i32
    %c0_i32_2 = arith.constant 0 : i32
    return %arg0, %c0_i32, %c0_i32_0, %c0_i32_1 : i32, i32, i32, i32
  }
  func.func @transform_16(%arg0: i32) -> (i32, i32, i32) {
    %c0_i32 = arith.constant 0 : i32
    %c0_i32_0 = arith.constant 0 : i32
    %c0_i32_1 = arith.constant 0 : i32
    return %arg0, %c0_i32, %c0_i32_0 : i32, i32, i32
  }
  func.func @transform_17(%arg0: i32) -> (i32, i32, i32) {
    %c0_i32 = arith.constant 0 : i32
    %c0_i32_0 = arith.constant 0 : i32
    %c0_i32_1 = arith.constant 0 : i32
    return %arg0, %c0_i32, %c0_i32_0 : i32, i32, i32
  }
  func.func @transform_18(%arg0: i32) -> (i32, i32, i32) {
    %c0_i32 = arith.constant 0 : i32
    %c0_i32_0 = arith.constant 0 : i32
    %c0_i32_1 = arith.constant 0 : i32
    return %arg0, %c0_i32, %c0_i32_0 : i32, i32, i32
  }
  func.func @transform_19(%arg0: i32) -> (i32, i32, i32) {
    %c0_i32 = arith.constant 0 : i32
    %c0_i32_0 = arith.constant 0 : i32
    %c0_i32_1 = arith.constant 0 : i32
    return %arg0, %c0_i32, %c0_i32_0 : i32, i32, i32
  }
  func.func @transform_20(%arg0: i32) -> (i32, i32, i32) {
    %c0_i32 = arith.constant 0 : i32
    %c0_i32_0 = arith.constant 0 : i32
    %c0_i32_1 = arith.constant 0 : i32
    return %arg0, %c0_i32, %c0_i32_0 : i32, i32, i32
  }
}

</mosaic_0001>

<llo_original>
// kernel: sentiment_classifier_forward.3
$region0: #{sentiment_classifier_forward.3}
  #allocation0 [shape = 'u32[]', space=smem, size = 0x4, offset = 0x4, fixed_abs, tag = 'smem constant byte address 0x4 - core index']
  #allocation1 [shape = 'u32[144,128]{1,0:T(1,128)}', space=vmem, size = 0x12000, scoped, tag = 'internal scratch']
  %s0 = inlined_call_operand.vmem [shape: f32[2,2,32], index: 0, kind: input, shape index: {}]
  %s1 = inlined_call_operand.vmem [shape: f32[32,3], index: 1, kind: input, shape index: {}]
  %s2 = inlined_call_operand.vmem [shape: f32[1,3], index: 2, kind: input, shape index: {}]
  %s3 = inlined_call_operand.hbm [shape: f32[2,3], index: 3, kind: output, shape index: {}]
  %s4 = sld [smem:[#allocation0]]
  $region22: #{sentiment_classifier_forward.3} parent=0
    _
  %s6 = ssub.s32 1, %s4
  %s7 = scalar_select 0, %s6, %s4
  $region1: #{sentiment_classifier_forward.3} parent=0
    #allocation2 [shape = 'u8[1024]{0}', space=vmem, size = 0x400, scoped, tag = 'output window, operand 0, single buffered']
    #allocation3 [shape = 's32[1]{0}', space=sflag, size = 0x4, scoped, tag = 'scoped memory for sentiment_classifier_forward.3']
    %8 = vsyncpa [#allocation3], 0
    // Predicated region
    $region2: #{sentiment_classifier_forward.3} parent=1 // pred_check
      _
    $region3: #{sentiment_classifier_forward.3} parent=1 // pred_check_branch
      %10 = sbr.rel (0) target = $region5
    $region4: #{sentiment_classifier_forward.3} parent=1 // pred_region
      _
    $region5: #{sentiment_classifier_forward.3} parent=1 // pred_fallthru
      _
    // Predicated region
    $region6: #{sentiment_classifier_forward.3} parent=1 // pred_check
      _
    $region7: #{sentiment_classifier_forward.3} parent=1 // pred_check_branch
      %12 = sbr.rel (0) target = $region9
    $region8: #{sentiment_classifier_forward.3} parent=1 // pred_region
      _
    $region9: #{sentiment_classifier_forward.3} parent=1 // pred_fallthru
      _
    // Predicated region
    $region10: #{sentiment_classifier_forward.3} parent=1 // pred_check
      _
    $region11: #{sentiment_classifier_forward.3} parent=1 // pred_check_branch
      %14 = sbr.rel (0) target = $region13
    $region12: #{sentiment_classifier_forward.3} parent=1 // pred_region
      _
    $region13: #{sentiment_classifier_forward.3} parent=1 // pred_fallthru
      _
    %v15 = vld [vmem:[%s0] sm:$0x3]
    %v16 = vld [vmem:[%s0 + $0x2] sm:$0x3]
    %v17 = vadd.f32 %v15, %v16
    %v18 = vmul.f32 %v17, 0.5
    %v19 = vld [vmem:[%s1] sm:$0xff]
    %v20 = vld [vmem:[%s1 + $0x8] sm:$0xff]
    %v21 = vld [vmem:[%s1 + $0x10] sm:$0xff]
    %v22 = vld [vmem:[%s1 + $0x18] sm:$0xff]
    %v23 = vld [vmem:[%s2] sm:$0x1]
    %v25 = vlaneseq
    %v26 = vshrl.u32 %v25, 7
    %v27 = vsub.s32 0, %v26
    %v28 = vrot.slane %v23, %v27
    %vm30 = vcmask 261120
    %v32 = vsel %vm30, %v18, 0
    %34 = vmatprep.subr.mxu0 0.0
    %35 = vmatpush1.msra.mxu0 %v19
    %36 = vmatprep.subr.mxu0 0.0
    %37 = vmatpush1.msra.mxu0 %v20
    %38 = vmatprep.subr.mxu0 0.0
    %39 = vmatpush1.msra.mxu0 %v21
    %40 = vmatprep.subr.mxu0 0.0
    %41 = vmatpush1.msra.mxu0 %v22
    %42 = vmatprep.subr.mxu0 0.0
    %43 = vmatpush1.msra.mxu0 0.0
    %44 = vmatprep.subr.mxu0 0.0
    %45 = vmatpush1.msra.mxu0 0.0
    %46 = vmatprep.subr.mxu0 0.0
    %47 = vmatpush1.msra.mxu0 0.0
    %48 = vmatprep.subr.mxu0 0.0
    %49 = vmatpush1.msra.mxu0 0.0
    %50 = vmatprep.subr.mxu0 0.0
    %51 = vmatpush1.msra.mxu0 0.0
    %52 = vmatprep.subr.mxu0 0.0
    %53 = vmatpush1.msra.mxu0 0.0
    %54 = vmatprep.subr.mxu0 0.0
    %55 = vmatpush1.msra.mxu0 0.0
    %56 = vmatprep.subr.mxu0 0.0
    %57 = vmatpush1.msra.mxu0 0.0
    %58 = vmatprep.subr.mxu0 0.0
    %59 = vmatpush1.msra.mxu0 0.0
    %60 = vmatprep.subr.mxu0 0.0
    %61 = vmatpush1.msra.mxu0 0.0
    %62 = vmatprep.subr.mxu0 0.0
    %63 = vmatpush1.msra.mxu0 0.0
    %64 = vmatprep.subr.mxu0 0.0
    %65 = vmatpush1.msra.mxu0 0.0
    %66 = vmatprep.subr.mxu0 0.0
    %67 = vmatpush1.msra.mxu0 0.0
    %68 = vmatprep.subr.mxu0 0.0
    %69 = vmatpush1.msra.mxu0 0.0
    %70 = vmatprep.subr.mxu0 0.0
    %71 = vmatpush1.msra.mxu0 0.0
    %72 = vmatprep.subr.mxu0 0.0
    %73 = vmatpush1.msra.mxu0 0.0
    %74 = vmatprep.subr.mxu0 0.0
    %75 = vmatpush1.msra.mxu0 0.0
    %76 = vmatprep.subr.mxu0 0.0
    %77 = vmatpush1.msra.mxu0 0.0
    %78 = vmatprep.subr.mxu0 0.0
    %79 = vmatpush1.msra.mxu0 0.0
    %80 = vmatprep.subr.mxu0 0.0
    %81 = vmatpush1.msra.mxu0 0.0
    %82 = vmatprep.subr.mxu0 0.0
    %83 = vmatpush1.msra.mxu0 0.0
    %84 = vmatprep.subr.mxu0 0.0
    %85 = vmatpush1.msra.mxu0 0.0
    %86 = vmatprep.subr.mxu0 0.0
    %87 = vmatpush1.msra.mxu0 0.0
    %88 = vmatprep.subr.mxu0 0.0
    %89 = vmatpush1.msra.mxu0 0.0
    %90 = vmatprep.subr.mxu0 0.0
    %91 = vmatpush1.msra.mxu0 0.0
    %92 = vmatprep.subr.mxu0 0.0
    %93 = vmatpush1.msra.mxu0 0.0
    %94 = vmatprep.subr.mxu0 0.0
    %95 = vmatpush1.msra.mxu0 0.0
    %96 = vmatprep.subr.mxu0 0.0
    %97 = vmatpush1.msra.mxu0 0.0
    %98 = vmatprep.mubr.f32.mxu0 0.0
    %99 = vmatmul.mubr.f32.gmra.mrb[0].mxu0 %v32
    %v100 = vpop.f32.mrb[0].mxu0
    %v101 = vadd.f32 %v28, %v100
    %v102 = vpop.f32.mrb[0].mxu0
    %103 = vdwg.mxu0
    %vm104 = vcmask 17408
    %105 = vst.msk [vmem:[#allocation2] sm:$0x3] %vm104, %v101
    // Predicated region
    $region14: #{sentiment_classifier_forward.3} parent=1 // pred_check
      _
    $region15: #{sentiment_classifier_forward.3} parent=1 // pred_check_branch
      %107 = sbr.rel (0) target = $region17
    $region16: #{sentiment_classifier_forward.3} parent=1 // pred_region
      %s109 = ssub.s32 32, 32
      %110 = vsyncadd [#allocation3], %s109
      %s112 = sshll.u32 [#allocation2], 4
      %s113 = int_to_ptr.vmem [resolvable:$true] %s112
      %115 = dma.vmem_to_hbm [thread:$0]  %s113, 32, %s3, [#allocation3]
    $region17: #{sentiment_classifier_forward.3} parent=1 // pred_fallthru
      _
    // Predicated region
    $region18: #{sentiment_classifier_forward.3} parent=1 // pred_check
      _
    $region19: #{sentiment_classifier_forward.3} parent=1 // pred_check_branch
      %117 = sbr.rel (0) target = $region21
    $region20: #{sentiment_classifier_forward.3} parent=1 // pred_region
      %118 = dma.done [#allocation3], 32
    $region21: #{sentiment_classifier_forward.3} parent=1 // pred_fallthru
      _
    %119 = vsyncpa [#allocation3], 1

// kernel: sentiment_classifier_forward.2
$region0: #{sentiment_classifier_forward.2}
  #allocation0 [shape = 'u32[]', space=smem, size = 0x4, offset = 0x4, fixed_abs, tag = 'smem constant byte address 0x4 - core index']
  #allocation1 [shape = 'u32[144,128]{1,0:T(1,128)}', space=vmem, size = 0x12000, scoped, tag = 'internal scratch']
  %s0 = inlined_call_operand.vmem [shape: f32[2,2,8,32], index: 0, kind: input, shape index: {}]
  %s1 = inlined_call_operand.vmem [shape: f32[2,2,1,8], index: 1, kind: input, shape index: {}]
  %s2 = inlined_call_operand.vmem [shape: f32[2,1,32], index: 2, kind: input, shape index: {}]
  %s3 = inlined_call_operand.vmem [shape: f32[2,1,32], index: 3, kind: input, shape index: {}]
  %s4 = inlined_call_operand.vmem [shape: f32[2,2,32,96], index: 4, kind: input, shape index: {}]
  %s5 = inlined_call_operand.vmem [shape: f32[2,2,1,96], index: 5, kind: input, shape index: {}]
  %s6 = inlined_call_operand.vmem [shape: f32[2,2,32,32], index: 6, kind: input, shape index: {}]
  %s7 = inlined_call_operand.vmem [shape: f32[2,2,1,32], index: 7, kind: input, shape index: {}]
  %s8 = inlined_call_operand.vmem [shape: f32[2,2,1,32], index: 8, kind: input, shape index: {}]
  %s9 = inlined_call_operand.vmem [shape: f32[2,2,1,32], index: 9, kind: input, shape index: {}]
  %s10 = inlined_call_operand.vmem [shape: f32[2,2,32,128], index: 10, kind: input, shape index: {}]
  %s11 = inlined_call_operand.vmem [shape: f32[2,2,1,128], index: 11, kind: input, shape index: {}]
  %s12 = inlined_call_operand.vmem [shape: f32[2,2,128,32], index: 12, kind: input, shape index: {}]
  %s13 = inlined_call_operand.vmem [shape: f32[2,2,1,32], index: 13, kind: input, shape index: {}]
  %s14 = inlined_call_operand.vmem [shape: f32[2,2,1,32], index: 14, kind: input, shape index: {}]
  %s15 = inlined_call_operand.vmem [shape: f32[2,2,1,32], index: 15, kind: input, shape index: {}]
  %s16 = inlined_call_operand.vmem [shape: f32[2,32,32], index: 16, kind: input, shape index: {}]
  %s17 = inlined_call_operand.vmem [shape: f32[2,1,32], index: 17, kind: input, shape index: {}]
  %s18 = inlined_call_operand.vmem [shape: f32[2,32,32], index: 18, kind: input, shape index: {}]
  %s19 = inlined_call_operand.vmem [shape: f32[2,1,32], index: 19, kind: input, shape index: {}]
  %s20 = inlined_call_operand.vmem [shape: f32[2,2,32], index: 20, kind: output, shape index: {}]
  %s21 = sld [smem:[#allocation0]]
  $region113: #{sentiment_classifier_forward.2} parent=0
    _
  %s23 = ssub.s32 1, %s21
  %s24 = scalar_select 0, %s23, %s21
  loop: start=0, step=1, limit=4
  $region2: #{sentiment_classifier_forward.2} parent=0 // loop_pre_header
    _
  $region3: #{sentiment_classifier_forward.2} parent=0 // loop_header
    %s26 = sphi 0, %s30
    %p27 = scmp.ge.s32.totalorder %s26, 4
    %s36 = sphi 0, %s38
    %s39 = sphi 0, %s36
    %s40 = sphi 0, %s39
    %s56 = sphi 0, %s40
    %s62 = sphi 0, %s64
    %s65 = sphi 0, %s62
    %s66 = sphi 0, %s65
    %s82 = sphi 0, %s66
    %s88 = sphi 0, %s90
    %s91 = sphi 0, %s88
    %s92 = sphi 0, %s91
    %s108 = sphi 0, %s92
    %s114 = sphi 0, %s116
    %s117 = sphi 0, %s114
    %s118 = sphi 0, %s117
    %s134 = sphi 0, %s118
    %s140 = sphi 0, %s142
    %s143 = sphi 0, %s140
    %s144 = sphi 0, %s143
    %s160 = sphi 0, %s144
    %s166 = sphi 0, %s168
    %s169 = sphi 0, %s166
    %s170 = sphi 0, %s169
    %s186 = sphi 0, %s170
    %s192 = sphi 0, %s194
    %s195 = sphi 0, %s192
    %s196 = sphi 0, %s195
    %s212 = sphi 0, %s196
    %s218 = sphi 0, %s220
    %s221 = sphi 0, %s218
    %s222 = sphi 0, %s221
    %s238 = sphi 0, %s222
    %s244 = sphi 0, %s246
    %s247 = sphi 0, %s244
    %s248 = sphi 0, %s247
    %s264 = sphi 0, %s248
    %s270 = sphi 0, %s272
    %s273 = sphi 0, %s270
    %s274 = sphi 0, %s273
    %s290 = sphi 0, %s274
    %s296 = sphi 0, %s298
    %s299 = sphi 0, %s296
    %s300 = sphi 0, %s299
    %s316 = sphi 0, %s300
    %s322 = sphi 0, %s324
    %s325 = sphi 0, %s322
    %s326 = sphi 0, %s325
    %s342 = sphi 0, %s326
    %s348 = sphi 0, %s350
    %s351 = sphi 0, %s348
    %s352 = sphi 0, %s351
    %s368 = sphi 0, %s352
    %s374 = sphi 0, %s376
    %s377 = sphi 0, %s374
    %s378 = sphi 0, %s377
    %s394 = sphi 0, %s378
    %s400 = sphi 0, %s402
    %s403 = sphi 0, %s400
    %s404 = sphi 0, %s403
    %s420 = sphi 0, %s404
    %s426 = sphi 0, %s428
    %s429 = sphi 0, %s426
    %s430 = sphi 0, %s429
    %s446 = sphi 0, %s430
    %s452 = sphi 0, %s454
    %s455 = sphi 0, %s452
    %s456 = sphi 0, %s455
    %s472 = sphi 0, %s456
    %s478 = sphi 0, %s480
    %s481 = sphi 0, %s478
    %s482 = sphi 0, %s481
    %s498 = sphi 0, %s482
    %s504 = sphi 0, %s506
    %s507 = sphi 0, %s504
    %s508 = sphi 0, %s507
    %s524 = sphi 0, %s508
    %s530 = sphi 0, %s532
    %s533 = sphi 0, %s530
    %s534 = sphi 0, %s533
    %s550 = sphi 0, %s534
    %s556 = sphi 0, %s558
    %s559 = sphi 0, %s556
    %s560 = sphi 0, %s559
    %s576 = sphi 0, %s560
  $region4: #{sentiment_classifier_forward.2} parent=0 // loop_header_branch
    %29 = sbr.rel (%p27) target = $region8
  $region5: #{sentiment_classifier_forward.2} parent=0 // loop_body
    %s31 = ssub.s32 %s26, 1
    %s32 = ssub.s32 %s26, 2
    %s33 = sadd.s32 %s26, 1
    %s34 = ssub.s32 %s26, %s33
    %p35 = scmp.eq.s32.totalorder %s34, 0
    %s37 = sadd.s32 %s36, 1
    %s38 = scalar_select %p35, %s36, %s37
    %p41 = pneg %p35
    %p42 = scmp.eq.s32.totalorder %s26, 1
    %p43 = por %p41, %p42
    %p44 = scmp.ne.s32.totalorder %s36, %s39
    %p45 = scmp.eq.s32.totalorder %s26, 0
    %p46 = por %p44, %p45
    %p47 = scmp.ne.s32.totalorder %s36, %s39
    %p48 = scmp.eq.s32.totalorder %s31, 1
    %p49 = por %p47, %p48
    %p50 = scmp.ne.s32.totalorder %s39, %s40
    %p51 = scmp.eq.s32.totalorder %s31, 0
    %p52 = por %p50, %p51
    %p53 = scmp.ne.s32.totalorder %s39, %s40
    %p54 = scmp.eq.s32.totalorder %s32, 1
    %p55 = por %p53, %p54
    %p57 = scmp.ne.s32.totalorder %s40, %s56
    %p58 = scmp.eq.s32.totalorder %s32, 0
    %p59 = por %p57, %p58
    %s60 = ssub.s32 %s26, %s33
    %p61 = scmp.eq.s32.totalorder %s60, 0
    %s63 = sadd.s32 %s62, 1
    %s64 = scalar_select %p61, %s62, %s63
    %p67 = pneg %p61
    %p68 = scmp.eq.s32.totalorder %s26, 1
    %p69 = por %p67, %p68
    %p70 = scmp.ne.s32.totalorder %s62, %s65
    %p71 = scmp.eq.s32.totalorder %s26, 0
    %p72 = por %p70, %p71
    %p73 = scmp.ne.s32.totalorder %s62, %s65
    %p74 = scmp.eq.s32.totalorder %s31, 1
    %p75 = por %p73, %p74
    %p76 = scmp.ne.s32.totalorder %s65, %s66
    %p77 = scmp.eq.s32.totalorder %s31, 0
    %p78 = por %p76, %p77
    %p79 = scmp.ne.s32.totalorder %s65, %s66
    %p80 = scmp.eq.s32.totalorder %s32, 1
    %p81 = por %p79, %p80
    %p83 = scmp.ne.s32.totalorder %s66, %s82
    %p84 = scmp.eq.s32.totalorder %s32, 0
    %p85 = por %p83, %p84
    %s86 = ssub.s32 %s26, %s33
    %p87 = scmp.eq.s32.totalorder %s86, 0
    %s89 = sadd.s32 %s88, 1
    %s90 = scalar_select %p87, %s88, %s89
    %p93 = pneg %p87
    %p94 = scmp.eq.s32.totalorder %s26, 1
    %p95 = por %p93, %p94
    %p96 = scmp.ne.s32.totalorder %s88, %s91
    %p97 = scmp.eq.s32.totalorder %s26, 0
    %p98 = por %p96, %p97
    %p99 = scmp.ne.s32.totalorder %s88, %s91
    %p100 = scmp.eq.s32.totalorder %s31, 1
    %p101 = por %p99, %p100
    %p102 = scmp.ne.s32.totalorder %s91, %s92
    %p103 = scmp.eq.s32.totalorder %s31, 0
    %p104 = por %p102, %p103
    %p105 = scmp.ne.s32.totalorder %s91, %s92
    %p106 = scmp.eq.s32.totalorder %s32, 1
    %p107 = por %p105, %p106
    %p109 = scmp.ne.s32.totalorder %s92, %s108
    %p110 = scmp.eq.s32.totalorder %s32, 0
    %p111 = por %p109, %p110
    %s112 = ssub.s32 %s26, %s33
    %p113 = scmp.eq.s32.totalorder %s112, 0
    %s115 = sadd.s32 %s114, 1
    %s116 = scalar_select %p113, %s114, %s115
    %p119 = pneg %p113
    %p120 = scmp.eq.s32.totalorder %s26, 1
    %p121 = por %p119, %p120
    %p122 = scmp.ne.s32.totalorder %s114, %s117
    %p123 = scmp.eq.s32.totalorder %s26, 0
    %p124 = por %p122, %p123
    %p125 = scmp.ne.s32.totalorder %s114, %s117
    %p126 = scmp.eq.s32.totalorder %s31, 1
    %p127 = por %p125, %p126
    %p128 = scmp.ne.s32.totalorder %s117, %s118
    %p129 = scmp.eq.s32.totalorder %s31, 0
    %p130 = por %p128, %p129
    %p131 = scmp.ne.s32.totalorder %s117, %s118
    %p132 = scmp.eq.s32.totalorder %s32, 1
    %p133 = por %p131, %p132
    %p135 = scmp.ne.s32.totalorder %s118, %s134
    %p136 = scmp.eq.s32.totalorder %s32, 0
    %p137 = por %p135, %p136
    %s138 = ssub.s32 %s26, %s33
    %p139 = scmp.eq.s32.totalorder %s138, 0
    %s141 = sadd.s32 %s140, 1
    %s142 = scalar_select %p139, %s140, %s141
    %p145 = pneg %p139
    %p146 = scmp.eq.s32.totalorder %s26, 1
    %p147 = por %p145, %p146
    %p148 = scmp.ne.s32.totalorder %s140, %s143
    %p149 = scmp.eq.s32.totalorder %s26, 0
    %p150 = por %p148, %p149
    %p151 = scmp.ne.s32.totalorder %s140, %s143
    %p152 = scmp.eq.s32.totalorder %s31, 1
    %p153 = por %p151, %p152
    %p154 = scmp.ne.s32.totalorder %s143, %s144
    %p155 = scmp.eq.s32.totalorder %s31, 0
    %p156 = por %p154, %p155
    %p157 = scmp.ne.s32.totalorder %s143, %s144
    %p158 = scmp.eq.s32.totalorder %s32, 1
    %p159 = por %p157, %p158
    %p161 = scmp.ne.s32.totalorder %s144, %s160
    %p162 = scmp.eq.s32.totalorder %s32, 0
    %p163 = por %p161, %p162
    %s164 = ssub.s32 %s26, %s33
    %p165 = scmp.eq.s32.totalorder %s164, 0
    %s167 = sadd.s32 %s166, 1
    %s168 = scalar_select %p165, %s166, %s167
    %p171 = pneg %p165
    %p172 = scmp.eq.s32.totalorder %s26, 1
    %p173 = por %p171, %p172
    %p174 = scmp.ne.s32.totalorder %s166, %s169
    %p175 = scmp.eq.s32.totalorder %s26, 0
    %p176 = por %p174, %p175
    %p177 = scmp.ne.s32.totalorder %s166, %s169
    %p178 = scmp.eq.s32.totalorder %s31, 1
    %p179 = por %p177, %p178
    %p180 = scmp.ne.s32.totalorder %s169, %s170
    %p181 = scmp.eq.s32.totalorder %s31, 0
    %p182 = por %p180, %p181
    %p183 = scmp.ne.s32.totalorder %s169, %s170
    %p184 = scmp.eq.s32.totalorder %s32, 1
    %p185 = por %p183, %p184
    %p187 = scmp.ne.s32.totalorder %s170, %s186
    %p188 = scmp.eq.s32.totalorder %s32, 0
    %p189 = por %p187, %p188
    %s190 = ssub.s32 %s26, %s33
    %p191 = scmp.eq.s32.totalorder %s190, 0
    %s193 = sadd.s32 %s192, 1
    %s194 = scalar_select %p191, %s192, %s193
    %p197 = pneg %p191
    %p198 = scmp.eq.s32.totalorder %s26, 1
    %p199 = por %p197, %p198
    %p200 = scmp.ne.s32.totalorder %s192, %s195
    %p201 = scmp.eq.s32.totalorder %s26, 0
    %p202 = por %p200, %p201
    %p203 = scmp.ne.s32.totalorder %s192, %s195
    %p204 = scmp.eq.s32.totalorder %s31, 1
    %p205 = por %p203, %p204
    %p206 = scmp.ne.s32.totalorder %s195, %s196
    %p207 = scmp.eq.s32.totalorder %s31, 0
    %p208 = por %p206, %p207
    %p209 = scmp.ne.s32.totalorder %s195, %s196
    %p210 = scmp.eq.s32.totalorder %s32, 1
    %p211 = por %p209, %p210
    %p213 = scmp.ne.s32.totalorder %s196, %s212
    %p214 = scmp.eq.s32.totalorder %s32, 0
    %p215 = por %p213, %p214
    %s216 = ssub.s32 %s26, %s33
    %p217 = scmp.eq.s32.totalorder %s216, 0
    %s219 = sadd.s32 %s218, 1
    %s220 = scalar_select %p217, %s218, %s219
    %p223 = pneg %p217
    %p224 = scmp.eq.s32.totalorder %s26, 1
    %p225 = por %p223, %p224
    %p226 = scmp.ne.s32.totalorder %s218, %s221
    %p227 = scmp.eq.s32.totalorder %s26, 0
    %p228 = por %p226, %p227
    %p229 = scmp.ne.s32.totalorder %s218, %s221
    %p230 = scmp.eq.s32.totalorder %s31, 1
    %p231 = por %p229, %p230
    %p232 = scmp.ne.s32.totalorder %s221, %s222
    %p233 = scmp.eq.s32.totalorder %s31, 0
    %p234 = por %p232, %p233
    %p235 = scmp.ne.s32.totalorder %s221, %s222
    %p236 = scmp.eq.s32.totalorder %s32, 1
    %p237 = por %p235, %p236
    %p239 = scmp.ne.s32.totalorder %s222, %s238
    %p240 = scmp.eq.s32.totalorder %s32, 0
    %p241 = por %p239, %p240
    %s242 = ssub.s32 %s26, %s33
    %p243 = scmp.eq.s32.totalorder %s242, 0
    %s245 = sadd.s32 %s244, 1
    %s246 = scalar_select %p243, %s244, %s245
    %p249 = pneg %p243
    %p250 = scmp.eq.s32.totalorder %s26, 1
    %p251 = por %p249, %p250
    %p252 = scmp.ne.s32.totalorder %s244, %s247
    %p253 = scmp.eq.s32.totalorder %s26, 0
    %p254 = por %p252, %p253
    %p255 = scmp.ne.s32.totalorder %s244, %s247
    %p256 = scmp.eq.s32.totalorder %s31, 1
    %p257 = por %p255, %p256
    %p258 = scmp.ne.s32.totalorder %s247, %s248
    %p259 = scmp.eq.s32.totalorder %s31, 0
    %p260 = por %p258, %p259
    %p261 = scmp.ne.s32.totalorder %s247, %s248
    %p262 = scmp.eq.s32.totalorder %s32, 1
    %p263 = por %p261, %p262
    %p265 = scmp.ne.s32.totalorder %s248, %s264
    %p266 = scmp.eq.s32.totalorder %s32, 0
    %p267 = por %p265, %p266
    %s268 = ssub.s32 %s26, %s33
    %p269 = scmp.eq.s32.totalorder %s268, 0
    %s271 = sadd.s32 %s270, 1
    %s272 = scalar_select %p269, %s270, %s271
    %p275 = pneg %p269
    %p276 = scmp.eq.s32.totalorder %s26, 1
    %p277 = por %p275, %p276
    %p278 = scmp.ne.s32.totalorder %s270, %s273
    %p279 = scmp.eq.s32.totalorder %s26, 0
    %p280 = por %p278, %p279
    %p281 = scmp.ne.s32.totalorder %s270, %s273
    %p282 = scmp.eq.s32.totalorder %s31, 1
    %p283 = por %p281, %p282
    %p284 = scmp.ne.s32.totalorder %s273, %s274
    %p285 = scmp.eq.s32.totalorder %s31, 0
    %p286 = por %p284, %p285
    %p287 = scmp.ne.s32.totalorder %s273, %s274
    %p288 = scmp.eq.s32.totalorder %s32, 1
    %p289 = por %p287, %p288
    %p291 = scmp.ne.s32.totalorder %s274, %s290
    %p292 = scmp.eq.s32.totalorder %s32, 0
    %p293 = por %p291, %p292
    %s294 = ssub.s32 %s26, %s33
    %p295 = scmp.eq.s32.totalorder %s294, 0
    %s297 = sadd.s32 %s296, 1
    %s298 = scalar_select %p295, %s296, %s297
    %p301 = pneg %p295
    %p302 = scmp.eq.s32.totalorder %s26, 1
    %p303 = por %p301, %p302
    %p304 = scmp.ne.s32.totalorder %s296, %s299
    %p305 = scmp.eq.s32.totalorder %s26, 0
    %p306 = por %p304, %p305
    %p307 = scmp.ne.s32.totalorder %s296, %s299
    %p308 = scmp.eq.s32.totalorder %s31, 1
    %p309 = por %p307, %p308
    %p310 = scmp.ne.s32.totalorder %s299, %s300
    %p311 = scmp.eq.s32.totalorder %s31, 0
    %p312 = por %p310, %p311
    %p313 = scmp.ne.s32.totalorder %s299, %s300
    %p314 = scmp.eq.s32.totalorder %s32, 1
    %p315 = por %p313, %p314
    %p317 = scmp.ne.s32.totalorder %s300, %s316
    %p318 = scmp.eq.s32.totalorder %s32, 0
    %p319 = por %p317, %p318
    %s320 = ssub.s32 %s26, %s33
    %p321 = scmp.eq.s32.totalorder %s320, 0
    %s323 = sadd.s32 %s322, 1
    %s324 = scalar_select %p321, %s322, %s323
    %p327 = pneg %p321
    %p328 = scmp.eq.s32.totalorder %s26, 1
    %p329 = por %p327, %p328
    %p330 = scmp.ne.s32.totalorder %s322, %s325
    %p331 = scmp.eq.s32.totalorder %s26, 0
    %p332 = por %p330, %p331
    %p333 = scmp.ne.s32.totalorder %s322, %s325
    %p334 = scmp.eq.s32.totalorder %s31, 1
    %p335 = por %p333, %p334
    %p336 = scmp.ne.s32.totalorder %s325, %s326
    %p337 = scmp.eq.s32.totalorder %s31, 0
    %p338 = por %p336, %p337
    %p339 = scmp.ne.s32.totalorder %s325, %s326
    %p340 = scmp.eq.s32.totalorder %s32, 1
    %p341 = por %p339, %p340
    %p343 = scmp.ne.s32.totalorder %s326, %s342
    %p344 = scmp.eq.s32.totalorder %s32, 0
    %p345 = por %p343, %p344
    %s346 = ssub.s32 %s26, %s33
    %p347 = scmp.eq.s32.totalorder %s346, 0
    %s349 = sadd.s32 %s348, 1
    %s350 = scalar_select %p347, %s348, %s349
    %p353 = pneg %p347
    %p354 = scmp.eq.s32.totalorder %s26, 1
    %p355 = por %p353, %p354
    %p356 = scmp.ne.s32.totalorder %s348, %s351
    %p357 = scmp.eq.s32.totalorder %s26, 0
    %p358 = por %p356, %p357
    %p359 = scmp.ne.s32.totalorder %s348, %s351
    %p360 = scmp.eq.s32.totalorder %s31, 1
    %p361 = por %p359, %p360
    %p362 = scmp.ne.s32.totalorder %s351, %s352
    %p363 = scmp.eq.s32.totalorder %s31, 0
    %p364 = por %p362, %p363
    %p365 = scmp.ne.s32.totalorder %s351, %s352
    %p366 = scmp.eq.s32.totalorder %s32, 1
    %p367 = por %p365, %p366
    %p369 = scmp.ne.s32.totalorder %s352, %s368
    %p370 = scmp.eq.s32.totalorder %s32, 0
    %p371 = por %p369, %p370
    %s372 = ssub.s32 %s26, %s33
    %p373 = scmp.eq.s32.totalorder %s372, 0
    %s375 = sadd.s32 %s374, 1
    %s376 = scalar_select %p373, %s374, %s375
    %p379 = pneg %p373
    %p380 = scmp.eq.s32.totalorder %s26, 1
    %p381 = por %p379, %p380
    %p382 = scmp.ne.s32.totalorder %s374, %s377
    %p383 = scmp.eq.s32.totalorder %s26, 0
    %p384 = por %p382, %p383
    %p385 = scmp.ne.s32.totalorder %s374, %s377
    %p386 = scmp.eq.s32.totalorder %s31, 1
    %p387 = por %p385, %p386
    %p388 = scmp.ne.s32.totalorder %s377, %s378
    %p389 = scmp.eq.s32.totalorder %s31, 0
    %p390 = por %p388, %p389
    %p391 = scmp.ne.s32.totalorder %s377, %s378
    %p392 = scmp.eq.s32.totalorder %s32, 1
    %p393 = por %p391, %p392
    %p395 = scmp.ne.s32.totalorder %s378, %s394
    %p396 = scmp.eq.s32.totalorder %s32, 0
    %p397 = por %p395, %p396
    %s398 = ssub.s32 %s26, %s33
    %p399 = scmp.eq.s32.totalorder %s398, 0
    %s401 = sadd.s32 %s400, 1
    %s402 = scalar_select %p399, %s400, %s401
    %p405 = pneg %p399
    %p406 = scmp.eq.s32.totalorder %s26, 1
    %p407 = por %p405, %p406
    %p408 = scmp.ne.s32.totalorder %s400, %s403
    %p409 = scmp.eq.s32.totalorder %s26, 0
    %p410 = por %p408, %p409
    %p411 = scmp.ne.s32.totalorder %s400, %s403
    %p412 = scmp.eq.s32.totalorder %s31, 1
    %p413 = por %p411, %p412
    %p414 = scmp.ne.s32.totalorder %s403, %s404
    %p415 = scmp.eq.s32.totalorder %s31, 0
    %p416 = por %p414, %p415
    %p417 = scmp.ne.s32.totalorder %s403, %s404
    %p418 = scmp.eq.s32.totalorder %s32, 1
    %p419 = por %p417, %p418
    %p421 = scmp.ne.s32.totalorder %s404, %s420
    %p422 = scmp.eq.s32.totalorder %s32, 0
    %p423 = por %p421, %p422
    %s424 = ssub.s32 %s26, %s33
    %p425 = scmp.eq.s32.totalorder %s424, 0
    %s427 = sadd.s32 %s426, 1
    %s428 = scalar_select %p425, %s426, %s427
    %p431 = pneg %p425
    %p432 = scmp.eq.s32.totalorder %s26, 1
    %p433 = por %p431, %p432
    %p434 = scmp.ne.s32.totalorder %s426, %s429
    %p435 = scmp.eq.s32.totalorder %s26, 0
    %p436 = por %p434, %p435
    %p437 = scmp.ne.s32.totalorder %s426, %s429
    %p438 = scmp.eq.s32.totalorder %s31, 1
    %p439 = por %p437, %p438
    %p440 = scmp.ne.s32.totalorder %s429, %s430
    %p441 = scmp.eq.s32.totalorder %s31, 0
    %p442 = por %p440, %p441
    %p443 = scmp.ne.s32.totalorder %s429, %s430
    %p444 = scmp.eq.s32.totalorder %s32, 1
    %p445 = por %p443, %p444
    %p447 = scmp.ne.s32.totalorder %s430, %s446
    %p448 = scmp.eq.s32.totalorder %s32, 0
    %p449 = por %p447, %p448
    %s450 = ssub.s32 %s26, %s33
    %p451 = scmp.eq.s32.totalorder %s450, 0
    %s453 = sadd.s32 %s452, 1
    %s454 = scalar_select %p451, %s452, %s453
    %p457 = pneg %p451
    %p458 = scmp.eq.s32.totalorder %s26, 1
    %p459 = por %p457, %p458
    %p460 = scmp.ne.s32.totalorder %s452, %s455
    %p461 = scmp.eq.s32.totalorder %s26, 0
    %p462 = por %p460, %p461
    %p463 = scmp.ne.s32.totalorder %s452, %s455
    %p464 = scmp.eq.s32.totalorder %s31, 1
    %p465 = por %p463, %p464
    %p466 = scmp.ne.s32.totalorder %s455, %s456
    %p467 = scmp.eq.s32.totalorder %s31, 0
    %p468 = por %p466, %p467
    %p469 = scmp.ne.s32.totalorder %s455, %s456
    %p470 = scmp.eq.s32.totalorder %s32, 1
    %p471 = por %p469, %p470
    %p473 = scmp.ne.s32.totalorder %s456, %s472
    %p474 = scmp.eq.s32.totalorder %s32, 0
    %p475 = por %p473, %p474
    %s476 = ssub.s32 %s26, %s33
    %p477 = scmp.eq.s32.totalorder %s476, 0
    %s479 = sadd.s32 %s478, 1
    %s480 = scalar_select %p477, %s478, %s479
    %p483 = pneg %p477
    %p484 = scmp.eq.s32.totalorder %s26, 1
    %p485 = por %p483, %p484
    %p486 = scmp.ne.s32.totalorder %s478, %s481
    %p487 = scmp.eq.s32.totalorder %s26, 0
    %p488 = por %p486, %p487
    %p489 = scmp.ne.s32.totalorder %s478, %s481
    %p490 = scmp.eq.s32.totalorder %s31, 1
    %p491 = por %p489, %p490
    %p492 = scmp.ne.s32.totalorder %s481, %s482
    %p493 = scmp.eq.s32.totalorder %s31, 0
    %p494 = por %p492, %p493
    %p495 = scmp.ne.s32.totalorder %s481, %s482
    %p496 = scmp.eq.s32.totalorder %s32, 1
    %p497 = por %p495, %p496
    %p499 = scmp.ne.s32.totalorder %s482, %s498
    %p500 = scmp.eq.s32.totalorder %s32, 0
    %p501 = por %p499, %p500
    %s502 = ssub.s32 %s26, %s33
    %p503 = scmp.eq.s32.totalorder %s502, 0
    %s505 = sadd.s32 %s504, 1
    %s506 = scalar_select %p503, %s504, %s505
    %p509 = pneg %p503
    %p510 = scmp.eq.s32.totalorder %s26, 1
    %p511 = por %p509, %p510
    %p512 = scmp.ne.s32.totalorder %s504, %s507
    %p513 = scmp.eq.s32.totalorder %s26, 0
    %p514 = por %p512, %p513
    %p515 = scmp.ne.s32.totalorder %s504, %s507
    %p516 = scmp.eq.s32.totalorder %s31, 1
    %p517 = por %p515, %p516
    %p518 = scmp.ne.s32.totalorder %s507, %s508
    %p519 = scmp.eq.s32.totalorder %s31, 0
    %p520 = por %p518, %p519
    %p521 = scmp.ne.s32.totalorder %s507, %s508
    %p522 = scmp.eq.s32.totalorder %s32, 1
    %p523 = por %p521, %p522
    %p525 = scmp.ne.s32.totalorder %s508, %s524
    %p526 = scmp.eq.s32.totalorder %s32, 0
    %p527 = por %p525, %p526
    %s528 = ssub.s32 %s26, %s33
    %p529 = scmp.eq.s32.totalorder %s528, 0
    %s531 = sadd.s32 %s530, 1
    %s532 = scalar_select %p529, %s530, %s531
    %p535 = pneg %p529
    %p536 = scmp.eq.s32.totalorder %s26, 1
    %p537 = por %p535, %p536
    %p538 = scmp.ne.s32.totalorder %s530, %s533
    %p539 = scmp.eq.s32.totalorder %s26, 0
    %p540 = por %p538, %p539
    %p541 = scmp.ne.s32.totalorder %s530, %s533
    %p542 = scmp.eq.s32.totalorder %s31, 1
    %p543 = por %p541, %p542
    %p544 = scmp.ne.s32.totalorder %s533, %s534
    %p545 = scmp.eq.s32.totalorder %s31, 0
    %p546 = por %p544, %p545
    %p547 = scmp.ne.s32.totalorder %s533, %s534
    %p548 = scmp.eq.s32.totalorder %s32, 1
    %p549 = por %p547, %p548
    %p551 = scmp.ne.s32.totalorder %s534, %s550
    %p552 = scmp.eq.s32.totalorder %s32, 0
    %p553 = por %p551, %p552
    %s554 = ssub.s32 %s26, %s33
    %p555 = scmp.eq.s32.totalorder %s554, 0
    %s557 = sadd.s32 %s556, 1
    %s558 = scalar_select %p555, %s556, %s557
    %p561 = pneg %p555
    %p562 = scmp.eq.s32.totalorder %s26, 1
    %p563 = por %p561, %p562
    %p564 = scmp.ne.s32.totalorder %s556, %s559
    %p565 = scmp.eq.s32.totalorder %s26, 0
    %p566 = por %p564, %p565
    %p567 = scmp.ne.s32.totalorder %s556, %s559
    %p568 = scmp.eq.s32.totalorder %s31, 1
    %p569 = por %p567, %p568
    %p570 = scmp.ne.s32.totalorder %s559, %s560
    %p571 = scmp.eq.s32.totalorder %s31, 0
    %p572 = por %p570, %p571
    %p573 = scmp.ne.s32.totalorder %s559, %s560
    %p574 = scmp.eq.s32.totalorder %s32, 1
    %p575 = por %p573, %p574
    %p577 = scmp.ne.s32.totalorder %s560, %s576
    %p578 = scmp.eq.s32.totalorder %s32, 0
    %p579 = por %p577, %p578
    %p580 = scmp.le.s32.totalorder 1, %s26
    %p581 = scmp.lt.s32.totalorder %s26, 3
    %p582 = pnand %p580, %p581
    %p583 = pneg %p582
    // Predicated region
    $region9: #{sentiment_classifier_forward.2} parent=5 // pred_check
      _
    $region10: #{sentiment_classifier_forward.2} parent=5 // pred_check_branch
      %585 = sbr.rel (%p582) target = $region12
    $region11: #{sentiment_classifier_forward.2} parent=5 // pred_region
      %s586 = ssub.s32 %s26, 1
    $region12: #{sentiment_classifier_forward.2} parent=5 // pred_fallthru
      _
    %p587 = scmp.lt.s32.totalorder %s26, 2
    // Predicated region
    $region13: #{sentiment_classifier_forward.2} parent=5 // pred_check
      %p588 = pneg %p587
    $region14: #{sentiment_classifier_forward.2} parent=5 // pred_check_branch
      %590 = sbr.rel (%p588) target = $region16
    $region15: #{sentiment_classifier_forward.2} parent=5 // pred_region
      // Predicated region
      $region17: #{sentiment_classifier_forward.2} parent=15 // pred_check
        %p591 = pneg %p46
      $region18: #{sentiment_classifier_forward.2} parent=15 // pred_check_branch
        %593 = sbr.rel (%p591) target = $region20
      $region19: #{sentiment_classifier_forward.2} parent=15 // pred_region
        %p594 = scmp.lt.s32.totalorder %s26, 1
        %s595 = scalar_select %p594, %s26, 1
        %s596 = smul.addr %s595, 2
        %s597 = smul.addr %s596, 8
        %s598 = scalar_lea.vmem %s0, %s597
      $region20: #{sentiment_classifier_forward.2} parent=15 // pred_fallthru
        _
      // Predicated region
      $region21: #{sentiment_classifier_forward.2} parent=15 // pred_check
        %p599 = pneg %p72
      $region22: #{sentiment_classifier_forward.2} parent=15 // pred_check_branch
        %601 = sbr.rel (%p599) target = $region24
      $region23: #{sentiment_classifier_forward.2} parent=15 // pred_region
        %p602 = scmp.lt.s32.totalorder %s26, 1
        %s603 = scalar_select %p602, %s26, 1
        %s604 = smul.addr %s603, 2
        %s605 = scalar_lea.vmem %s1, %s604
      $region24: #{sentiment_classifier_forward.2} parent=15 // pred_fallthru
        _
      // Predicated region
      $region25: #{sentiment_classifier_forward.2} parent=15 // pred_check
        %p606 = pneg %p98
      $region26: #{sentiment_classifier_forward.2} parent=15 // pred_check_branch
        %608 = sbr.rel (%p606) target = $region28
      $region27: #{sentiment_classifier_forward.2} parent=15 // pred_region
        %p609 = scmp.lt.s32.totalorder %s26, 1
        %s610 = scalar_select %p609, %s26, 1
        %s611 = scalar_lea.vmem %s2, %s610
      $region28: #{sentiment_classifier_forward.2} parent=15 // pred_fallthru
        _
      // Predicated region
      $region29: #{sentiment_classifier_forward.2} parent=15 // pred_check
        %p612 = pneg %p124
      $region30: #{sentiment_classifier_forward.2} parent=15 // pred_check_branch
        %614 = sbr.rel (%p612) target = $region32
      $region31: #{sentiment_classifier_forward.2} parent=15 // pred_region
        %p615 = scmp.lt.s32.totalorder %s26, 1
        %s616 = scalar_select %p615, %s26, 1
        %s617 = scalar_lea.vmem %s3, %s616
      $region32: #{sentiment_classifier_forward.2} parent=15 // pred_fallthru
        _
      // Predicated region
      $region33: #{sentiment_classifier_forward.2} parent=15 // pred_check
        %p618 = pneg %p150
      $region34: #{sentiment_classifier_forward.2} parent=15 // pred_check_branch
        %620 = sbr.rel (%p618) target = $region36
      $region35: #{sentiment_classifier_forward.2} parent=15 // pred_region
        %p621 = scmp.lt.s32.totalorder %s26, 1
        %s622 = scalar_select %p621, %s26, 1
        %s623 = smul.addr %s622, 8
        %s624 = smul.addr %s623, 8
        %s625 = scalar_lea.vmem %s4, %s624
      $region36: #{sentiment_classifier_forward.2} parent=15 // pred_fallthru
        _
      // Predicated region
      $region37: #{sentiment_classifier_forward.2} parent=15 // pred_check
        %p626 = pneg %p176
      $region38: #{sentiment_classifier_forward.2} parent=15 // pred_check_branch
        %628 = sbr.rel (%p626) target = $region40
      $region39: #{sentiment_classifier_forward.2} parent=15 // pred_region
        %p629 = scmp.lt.s32.totalorder %s26, 1
        %s630 = scalar_select %p629, %s26, 1
        %s631 = smul.addr %s630, 2
        %s632 = scalar_lea.vmem %s5, %s631
      $region40: #{sentiment_classifier_forward.2} parent=15 // pred_fallthru
        _
      // Predicated region
      $region41: #{sentiment_classifier_forward.2} parent=15 // pred_check
        %p633 = pneg %p202
      $region42: #{sentiment_classifier_forward.2} parent=15 // pred_check_branch
        %635 = sbr.rel (%p633) target = $region44
      $region43: #{sentiment_classifier_forward.2} parent=15 // pred_region
        %p636 = scmp.lt.s32.totalorder %s26, 1
        %s637 = scalar_select %p636, %s26, 1
        %s638 = smul.addr %s637, 8
        %s639 = smul.addr %s638, 8
        %s640 = scalar_lea.vmem %s6, %s639
      $region44: #{sentiment_classifier_forward.2} parent=15 // pred_fallthru
        _
      // Predicated region
      $region45: #{sentiment_classifier_forward.2} parent=15 // pred_check
        %p641 = pneg %p228
      $region46: #{sentiment_classifier_forward.2} parent=15 // pred_check_branch
        %643 = sbr.rel (%p641) target = $region48
      $region47: #{sentiment_classifier_forward.2} parent=15 // pred_region
        %p644 = scmp.lt.s32.totalorder %s26, 1
        %s645 = scalar_select %p644, %s26, 1
        %s646 = smul.addr %s645, 2
        %s647 = scalar_lea.vmem %s7, %s646
      $region48: #{sentiment_classifier_forward.2} parent=15 // pred_fallthru
        _
      // Predicated region
      $region49: #{sentiment_classifier_forward.2} parent=15 // pred_check
        %p648 = pneg %p254
      $region50: #{sentiment_classifier_forward.2} parent=15 // pred_check_branch
        %650 = sbr.rel (%p648) target = $region52
      $region51: #{sentiment_classifier_forward.2} parent=15 // pred_region
        %p651 = scmp.lt.s32.totalorder %s26, 1
        %s652 = scalar_select %p651, %s26, 1
        %s653 = smul.addr %s652, 2
        %s654 = scalar_lea.vmem %s8, %s653
      $region52: #{sentiment_classifier_forward.2} parent=15 // pred_fallthru
        _
      // Predicated region
      $region53: #{sentiment_classifier_forward.2} parent=15 // pred_check
        %p655 = pneg %p280
      $region54: #{sentiment_classifier_forward.2} parent=15 // pred_check_branch
        %657 = sbr.rel (%p655) target = $region56
      $region55: #{sentiment_classifier_forward.2} parent=15 // pred_region
        %p658 = scmp.lt.s32.totalorder %s26, 1
        %s659 = scalar_select %p658, %s26, 1
        %s660 = smul.addr %s659, 2
        %s661 = scalar_lea.vmem %s9, %s660
      $region56: #{sentiment_classifier_forward.2} parent=15 // pred_fallthru
        _
      // Predicated region
      $region57: #{sentiment_classifier_forward.2} parent=15 // pred_check
        %p662 = pneg %p306
      $region58: #{sentiment_classifier_forward.2} parent=15 // pred_check_branch
        %664 = sbr.rel (%p662) target = $region60
      $region59: #{sentiment_classifier_forward.2} parent=15 // pred_region
        %p665 = scmp.lt.s32.totalorder %s26, 1
        %s666 = scalar_select %p665, %s26, 1
        %s667 = smul.addr %s666, 8
        %s668 = smul.addr %s667, 8
        %s669 = scalar_lea.vmem %s10, %s668
      $region60: #{sentiment_classifier_forward.2} parent=15 // pred_fallthru
        _
      // Predicated region
      $region61: #{sentiment_classifier_forward.2} parent=15 // pred_check
        %p670 = pneg %p332
      $region62: #{sentiment_classifier_forward.2} parent=15 // pred_check_branch
        %672 = sbr.rel (%p670) target = $region64
      $region63: #{sentiment_classifier_forward.2} parent=15 // pred_region
        %p673 = scmp.lt.s32.totalorder %s26, 1
        %s674 = scalar_select %p673, %s26, 1
        %s675 = smul.addr %s674, 2
        %s676 = scalar_lea.vmem %s11, %s675
      $region64: #{sentiment_classifier_forward.2} parent=15 // pred_fallthru
        _
      // Predicated region
      $region65: #{sentiment_classifier_forward.2} parent=15 // pred_check
        %p677 = pneg %p358
      $region66: #{sentiment_classifier_forward.2} parent=15 // pred_check_branch
        %679 = sbr.rel (%p677) target = $region68
      $region67: #{sentiment_classifier_forward.2} parent=15 // pred_region
        %p680 = scmp.lt.s32.totalorder %s26, 1
        %s681 = scalar_select %p680, %s26, 1
        %s682 = smul.addr %s681, 32
        %s683 = smul.addr %s682, 8
        %s684 = scalar_lea.vmem %s12, %s683
      $region68: #{sentiment_classifier_forward.2} parent=15 // pred_fallthru
        _
      // Predicated region
      $region69: #{sentiment_classifier_forward.2} parent=15 // pred_check
        %p685 = pneg %p384
      $region70: #{sentiment_classifier_forward.2} parent=15 // pred_check_branch
        %687 = sbr.rel (%p685) target = $region72
      $region71: #{sentiment_classifier_forward.2} parent=15 // pred_region
        %p688 = scmp.lt.s32.totalorder %s26, 1
        %s689 = scalar_select %p688, %s26, 1
        %s690 = smul.addr %s689, 2
        %s691 = scalar_lea.vmem %s13, %s690
      $region72: #{sentiment_classifier_forward.2} parent=15 // pred_fallthru
        _
      // Predicated region
      $region73: #{sentiment_classifier_forward.2} parent=15 // pred_check
        %p692 = pneg %p410
      $region74: #{sentiment_classifier_forward.2} parent=15 // pred_check_branch
        %694 = sbr.rel (%p692) target = $region76
      $region75: #{sentiment_classifier_forward.2} parent=15 // pred_region
        %p695 = scmp.lt.s32.totalorder %s26, 1
        %s696 = scalar_select %p695, %s26, 1
        %s697 = smul.addr %s696, 2
        %s698 = scalar_lea.vmem %s14, %s697
      $region76: #{sentiment_classifier_forward.2} parent=15 // pred_fallthru
        _
      // Predicated region
      $region77: #{sentiment_classifier_forward.2} parent=15 // pred_check
        %p699 = pneg %p436
      $region78: #{sentiment_classifier_forward.2} parent=15 // pred_check_branch
        %701 = sbr.rel (%p699) target = $region80
      $region79: #{sentiment_classifier_forward.2} parent=15 // pred_region
        %p702 = scmp.lt.s32.totalorder %s26, 1
        %s703 = scalar_select %p702, %s26, 1
        %s704 = smul.addr %s703, 2
        %s705 = scalar_lea.vmem %s15, %s704
      $region80: #{sentiment_classifier_forward.2} parent=15 // pred_fallthru
        _
      // Predicated region
      $region81: #{sentiment_classifier_forward.2} parent=15 // pred_check
        %p706 = pneg %p462
      $region82: #{sentiment_classifier_forward.2} parent=15 // pred_check_branch
        %708 = sbr.rel (%p706) target = $region84
      $region83: #{sentiment_classifier_forward.2} parent=15 // pred_region
        %p709 = scmp.lt.s32.totalorder %s26, 1
        %s710 = scalar_select %p709, %s26, 1
        %s711 = smul.addr %s710, 4
        %s712 = smul.addr %s711, 8
        %s713 = scalar_lea.vmem %s16, %s712
      $region84: #{sentiment_classifier_forward.2} parent=15 // pred_fallthru
        _
      // Predicated region
      $region85: #{sentiment_classifier_forward.2} parent=15 // pred_check
        %p714 = pneg %p488
      $region86: #{sentiment_classifier_forward.2} parent=15 // pred_check_branch
        %716 = sbr.rel (%p714) target = $region88
      $region87: #{sentiment_classifier_forward.2} parent=15 // pred_region
        %p717 = scmp.lt.s32.totalorder %s26, 1
        %s718 = scalar_select %p717, %s26, 1
        %s719 = scalar_lea.vmem %s17, %s718
      $region88: #{sentiment_classifier_forward.2} parent=15 // pred_fallthru
        _
      // Predicated region
      $region89: #{sentiment_classifier_forward.2} parent=15 // pred_check
        %p720 = pneg %p514
      $region90: #{sentiment_classifier_forward.2} parent=15 // pred_check_branch
        %722 = sbr.rel (%p720) target = $region92
      $region91: #{sentiment_classifier_forward.2} parent=15 // pred_region
        %p723 = scmp.lt.s32.totalorder %s26, 1
        %s724 = scalar_select %p723, %s26, 1
        %s725 = smul.addr %s724, 4
        %s726 = smul.addr %s725, 8
        %s727 = scalar_lea.vmem %s18, %s726
      $region92: #{sentiment_classifier_forward.2} parent=15 // pred_fallthru
        _
      // Predicated region
      $region93: #{sentiment_classifier_forward.2} parent=15 // pred_check
        %p728 = pneg %p540
      $region94: #{sentiment_classifier_forward.2} parent=15 // pred_check_branch
        %730 = sbr.rel (%p728) target = $region96
      $region95: #{sentiment_classifier_forward.2} parent=15 // pred_region
        %p731 = scmp.lt.s32.totalorder %s26, 1
        %s732 = scalar_select %p731, %s26, 1
        %s733 = scalar_lea.vmem %s19, %s732
      $region96: #{sentiment_classifier_forward.2} parent=15 // pred_fallthru
        _
    $region16: #{sentiment_classifier_forward.2} parent=5 // pred_fallthru
      _
    %p734 = scmp.le.s32.totalorder 1, %s26
    %p735 = scmp.lt.s32.totalorder %s26, 3
    %p736 = pnand %p734, %p735
    %p737 = pneg %p736
    // Predicated region
    $region97: #{sentiment_classifier_forward.2} parent=5 // pred_check
      _
    $region98: #{sentiment_classifier_forward.2} parent=5 // pred_check_branch
      %739 = sbr.rel (%p736) target = $region100
    $region99: #{sentiment_classifier_forward.2} parent=5 // pred_region
      %s740 = ssub.s32 %s26, 1
      %p741 = scmp.lt.s32.totalorder %s31, 1
      %s742 = scalar_select %p741, %s31, 1
      %s743 = smul.addr %s742, 2
      %s744 = smul.addr %s743, 8
      %s745 = scalar_lea.vmem %s0, %s744
      %p746 = pneg %p52
      %p747 = pneg %p49
      %p748 = scmp.lt.s32.totalorder %s31, 1
      %s749 = scalar_select %p748, %s31, 1
      %s750 = smul.addr %s749, 2
      %s751 = scalar_lea.vmem %s1, %s750
      %p752 = pneg %p78
      %p753 = pneg %p75
      %p754 = scmp.lt.s32.totalorder %s31, 1
      %s755 = scalar_select %p754, %s31, 1
      %s756 = scalar_lea.vmem %s2, %s755
      %p757 = pneg %p104
      %p758 = pneg %p101
      %p759 = scmp.lt.s32.totalorder %s31, 1
      %s760 = scalar_select %p759, %s31, 1
      %s761 = scalar_lea.vmem %s3, %s760
      %p762 = pneg %p130
      %p763 = pneg %p127
      %p764 = scmp.lt.s32.totalorder %s31, 1
      %s765 = scalar_select %p764, %s31, 1
      %s766 = smul.addr %s765, 8
      %s767 = smul.addr %s766, 8
      %s768 = scalar_lea.vmem %s4, %s767
      %p769 = pneg %p156
      %p770 = pneg %p153
      %p771 = scmp.lt.s32.totalorder %s31, 1
      %s772 = scalar_select %p771, %s31, 1
      %s773 = smul.addr %s772, 2
      %s774 = scalar_lea.vmem %s5, %s773
      %p775 = pneg %p182
      %p776 = pneg %p179
      %p777 = scmp.lt.s32.totalorder %s31, 1
      %s778 = scalar_select %p777, %s31, 1
      %s779 = smul.addr %s778, 8
      %s780 = smul.addr %s779, 8
      %s781 = scalar_lea.vmem %s6, %s780
      %p782 = pneg %p208
      %p783 = pneg %p205
      %p784 = scmp.lt.s32.totalorder %s31, 1
      %s785 = scalar_select %p784, %s31, 1
      %s786 = smul.addr %s785, 2
      %s787 = scalar_lea.vmem %s7, %s786
      %p788 = pneg %p234
      %p789 = pneg %p231
      %p790 = scmp.lt.s32.totalorder %s31, 1
      %s791 = scalar_select %p790, %s31, 1
      %s792 = smul.addr %s791, 2
      %s793 = scalar_lea.vmem %s8, %s792
      %p794 = pneg %p260
      %p795 = pneg %p257
      %p796 = scmp.lt.s32.totalorder %s31, 1
      %s797 = scalar_select %p796, %s31, 1
      %s798 = smul.addr %s797, 2
      %s799 = scalar_lea.vmem %s9, %s798
      %p800 = pneg %p286
      %p801 = pneg %p283
      %p802 = scmp.lt.s32.totalorder %s31, 1
      %s803 = scalar_select %p802, %s31, 1
      %s804 = smul.addr %s803, 8
      %s805 = smul.addr %s804, 8
      %s806 = scalar_lea.vmem %s10, %s805
      %p807 = pneg %p312
      %p808 = pneg %p309
      %p809 = scmp.lt.s32.totalorder %s31, 1
      %s810 = scalar_select %p809, %s31, 1
      %s811 = smul.addr %s810, 2
      %s812 = scalar_lea.vmem %s11, %s811
      %p813 = pneg %p338
      %p814 = pneg %p335
      %p815 = scmp.lt.s32.totalorder %s31, 1
      %s816 = scalar_select %p815, %s31, 1
      %s817 = smul.addr %s816, 32
      %s818 = smul.addr %s817, 8
      %s819 = scalar_lea.vmem %s12, %s818
      %p820 = pneg %p364
      %p821 = pneg %p361
      %p822 = scmp.lt.s32.totalorder %s31, 1
      %s823 = scalar_select %p822, %s31, 1
      %s824 = smul.addr %s823, 2
      %s825 = scalar_lea.vmem %s13, %s824
      %p826 = pneg %p390
      %p827 = pneg %p387
      %p828 = scmp.lt.s32.totalorder %s31, 1
      %s829 = scalar_select %p828, %s31, 1
      %s830 = smul.addr %s829, 2
      %s831 = scalar_lea.vmem %s14, %s830
      %p832 = pneg %p416
      %p833 = pneg %p413
      %p834 = scmp.lt.s32.totalorder %s31, 1
      %s835 = scalar_select %p834, %s31, 1
      %s836 = smul.addr %s835, 2
      %s837 = scalar_lea.vmem %s15, %s836
      %p838 = pneg %p442
      %p839 = pneg %p439
      %p840 = scmp.lt.s32.totalorder %s31, 1
      %s841 = scalar_select %p840, %s31, 1
      %s842 = smul.addr %s841, 4
      %s843 = smul.addr %s842, 8
      %s844 = scalar_lea.vmem %s16, %s843
      %p845 = pneg %p468
      %p846 = pneg %p465
      %p847 = scmp.lt.s32.totalorder %s31, 1
      %s848 = scalar_select %p847, %s31, 1
      %s849 = scalar_lea.vmem %s17, %s848
      %p850 = pneg %p494
      %p851 = pneg %p491
      %p852 = scmp.lt.s32.totalorder %s31, 1
      %s853 = scalar_select %p852, %s31, 1
      %s854 = smul.addr %s853, 4
      %s855 = smul.addr %s854, 8
      %s856 = scalar_lea.vmem %s18, %s855
      %p857 = pneg %p520
      %p858 = pneg %p517
      %p859 = scmp.lt.s32.totalorder %s31, 1
      %s860 = scalar_select %p859, %s31, 1
      %s861 = scalar_lea.vmem %s19, %s860
      %p862 = pneg %p546
      %p863 = pneg %p543
      %p864 = pneg %p572
      %p865 = pneg %p569
      %p866 = scmp.lt.s32.totalorder %s31, 1
      %s867 = scalar_select %p866, %s31, 1
      %s868 = smul.addr %s867, 2
      %s869 = scalar_lea.vmem %s20, %s868
      %p870 = scmp.lt.s32.totalorder %s31, 1
      %s871 = scalar_select %p870, %s31, 1
      %s872 = smul.addr %s871, 2
      %s873 = smul.addr %s872, 8
      %s874 = scalar_lea.vmem %s0, %s873
      %p875 = scmp.lt.s32.totalorder %s31, 1
      %s876 = scalar_select %p875, %s31, 1
      %s877 = smul.addr %s876, 2
      %s878 = scalar_lea.vmem %s1, %s877
      %p879 = scmp.lt.s32.totalorder %s31, 1
      %s880 = scalar_select %p879, %s31, 1
      %s881 = scalar_lea.vmem %s2, %s880
      %p882 = scmp.lt.s32.totalorder %s31, 1
      %s883 = scalar_select %p882, %s31, 1
      %s884 = scalar_lea.vmem %s3, %s883
      %p885 = scmp.lt.s32.totalorder %s31, 1
      %s886 = scalar_select %p885, %s31, 1
      %s887 = smul.addr %s886, 8
      %s888 = smul.addr %s887, 8
      %s889 = scalar_lea.vmem %s4, %s888
      %p890 = scmp.lt.s32.totalorder %s31, 1
      %s891 = scalar_select %p890, %s31, 1
      %s892 = smul.addr %s891, 2
      %s893 = scalar_lea.vmem %s5, %s892
      %p894 = scmp.lt.s32.totalorder %s31, 1
      %s895 = scalar_select %p894, %s31, 1
      %s896 = smul.addr %s895, 8
      %s897 = smul.addr %s896, 8
      %s898 = scalar_lea.vmem %s6, %s897
      %p899 = scmp.lt.s32.totalorder %s31, 1
      %s900 = scalar_select %p899, %s31, 1
      %s901 = smul.addr %s900, 2
      %s902 = scalar_lea.vmem %s7, %s901
      %p903 = scmp.lt.s32.totalorder %s31, 1
      %s904 = scalar_select %p903, %s31, 1
      %s905 = smul.addr %s904, 2
      %s906 = scalar_lea.vmem %s8, %s905
      %p907 = scmp.lt.s32.totalorder %s31, 1
      %s908 = scalar_select %p907, %s31, 1
      %s909 = smul.addr %s908, 2
      %s910 = scalar_lea.vmem %s9, %s909
      %p911 = scmp.lt.s32.totalorder %s31, 1
      %s912 = scalar_select %p911, %s31, 1
      %s913 = smul.addr %s912, 8
      %s914 = smul.addr %s913, 8
      %s915 = scalar_lea.vmem %s10, %s914
      %p916 = scmp.lt.s32.totalorder %s31, 1
      %s917 = scalar_select %p916, %s31, 1
      %s918 = smul.addr %s917, 2
      %s919 = scalar_lea.vmem %s11, %s918
      %p920 = scmp.lt.s32.totalorder %s31, 1
      %s921 = scalar_select %p920, %s31, 1
      %s922 = smul.addr %s921, 32
      %s923 = smul.addr %s922, 8
      %s924 = scalar_lea.vmem %s12, %s923
      %p925 = scmp.lt.s32.totalorder %s31, 1
      %s926 = scalar_select %p925, %s31, 1
      %s927 = smul.addr %s926, 2
      %s928 = scalar_lea.vmem %s13, %s927
      %p929 = scmp.lt.s32.totalorder %s31, 1
      %s930 = scalar_select %p929, %s31, 1
      %s931 = smul.addr %s930, 2
      %s932 = scalar_lea.vmem %s14, %s931
      %p933 = scmp.lt.s32.totalorder %s31, 1
      %s934 = scalar_select %p933, %s31, 1
      %s935 = smul.addr %s934, 2
      %s936 = scalar_lea.vmem %s15, %s935
      %p937 = scmp.lt.s32.totalorder %s31, 1
      %s938 = scalar_select %p937, %s31, 1
      %s939 = smul.addr %s938, 4
      %s940 = smul.addr %s939, 8
      %s941 = scalar_lea.vmem %s16, %s940
      %p942 = scmp.lt.s32.totalorder %s31, 1
      %s943 = scalar_select %p942, %s31, 1
      %s944 = scalar_lea.vmem %s17, %s943
      %p945 = scmp.lt.s32.totalorder %s31, 1
      %s946 = scalar_select %p945, %s31, 1
      %s947 = smul.addr %s946, 4
      %s948 = smul.addr %s947, 8
      %s949 = scalar_lea.vmem %s18, %s948
      %p950 = scmp.lt.s32.totalorder %s31, 1
      %s951 = scalar_select %p950, %s31, 1
      %s952 = scalar_lea.vmem %s19, %s951
      %p953 = scmp.lt.s32.totalorder %s31, 1
      %s954 = scalar_select %p953, %s31, 1
      %s955 = smul.addr %s954, 2
      %s956 = scalar_lea.vmem %s20, %s955
      %v957 = vld [vmem:[%s878] sm:$0x1]
      %v958 = vld [vmem:[%s878 + $0x1] sm:$0x1]
      %v959 = vld [vmem:[%s874] sm:$0xff]
      %v960 = vld [vmem:[%s874 + $0x8] sm:$0xff]
      %v961 = vld [vmem:[%s881] sm:$0x1]
      %v962 = vld [vmem:[%s884] sm:$0x1]
      %vm963 = vcmask 261120
      %v964 = vsel %vm963, %v959, 0.0
      %965 = vadd.xlane.f32.xlu0 %v964
      %v966 = vpop.xlane.xlu0 %965
      %v967 = vsel %vm963, %v960, 0.0
      %968 = vadd.xlane.f32.xlu0 %v967
      %v969 = vpop.xlane.xlu0 %968
      %v970 = vrcp.pop 32.0
      %v971 = vmul.f32 %v966, %v970
      %v972 = vmul.f32 %v969, %v970
      %v973 = vsub.f32 %v959, %v971
      %v974 = vsub.f32 %v960, %v972
      %v975 = vmul.f32 %v973, %v973
      %v976 = vmul.f32 %v974, %v974
      %v977 = vsel %vm963, %v975, 0.0
      %978 = vadd.xlane.f32.xlu0 %v977
      %v979 = vpop.xlane.xlu0 %978
      %v980 = vsel %vm963, %v976, 0.0
      %981 = vadd.xlane.f32.xlu0 %v980
      %v982 = vpop.xlane.xlu0 %981
      %v983 = vmul.f32 %v979, %v970
      %v984 = vmul.f32 %v982, %v970
      %v985 = vadd.f32 %v983, 1e-12
      %v986 = vadd.f32 %v984, 1e-12
      %v987 = vrsqrt.pop %v985
      %v988 = vrsqrt.pop %v986
      %v989 = vmul.f32 %v973, %v987
      %v990 = vmul.f32 %v974, %v988
      %v992 = vlaneseq
      %v993 = vshrl.u32 %v992, 7
      %v994 = vsub.s32 0, %v993
      %v995 = vrot.slane %v961, %v994
      %v997 = vmul.f32 %v989, %v995
      %v998 = vmul.f32 %v990, %v995
      %v1000 = vlaneseq
      %v1001 = vshrl.u32 %v1000, 7
      %v1002 = vsub.s32 0, %v1001
      %v1003 = vrot.slane %v962, %v1002
      %v1005 = vadd.f32 %v997, %v1003
      %v1006 = vadd.f32 %v998, %v1003
      %v1007 = vld [vmem:[%s889] sm:$0xff]
      %v1008 = vld [vmem:[%s889 + $0x8] sm:$0xff]
      %v1009 = vld [vmem:[%s889 + $0x10] sm:$0xff]
      %v1010 = vld [vmem:[%s889 + $0x18] sm:$0xff]
      %v1011 = vld [vmem:[%s893] sm:$0x1]
      %v1013 = vlaneseq
      %v1014 = vshrl.u32 %v1013, 7
      %v1015 = vsub.s32 0, %v1014
      %v1016 = vrot.slane %v1011, %v1015
      %v1019 = vsel %vm963, %v1005, 0
      %v1022 = vsel %vm963, %v1006, 0
      %1024 = vmatprep.subr.mxu0 0.0
      %1025 = vmatpush1.msra.mxu0 %v1007
      %1026 = vmatprep.subr.mxu0 0.0
      %1027 = vmatpush1.msra.mxu0 %v1008
      %1028 = vmatprep.subr.mxu0 0.0
      %1029 = vmatpush1.msra.mxu0 %v1009
      %1030 = vmatprep.subr.mxu0 0.0
      %1031 = vmatpush1.msra.mxu0 %v1010
      %1032 = vmatprep.subr.mxu0 0.0
      %1033 = vmatpush1.msra.mxu0 0.0
      %1034 = vmatprep.subr.mxu0 0.0
      %1035 = vmatpush1.msra.mxu0 0.0
      %1036 = vmatprep.subr.mxu0 0.0
      %1037 = vmatpush1.msra.mxu0 0.0
      %1038 = vmatprep.subr.mxu0 0.0
      %1039 = vmatpush1.msra.mxu0 0.0
      %1040 = vmatprep.subr.mxu0 0.0
      %1041 = vmatpush1.msra.mxu0 0.0
      %1042 = vmatprep.subr.mxu0 0.0
      %1043 = vmatpush1.msra.mxu0 0.0
      %1044 = vmatprep.subr.mxu0 0.0
      %1045 = vmatpush1.msra.mxu0 0.0
      %1046 = vmatprep.subr.mxu0 0.0
      %1047 = vmatpush1.msra.mxu0 0.0
      %1048 = vmatprep.subr.mxu0 0.0
      %1049 = vmatpush1.msra.mxu0 0.0
      %1050 = vmatprep.subr.mxu0 0.0
      %1051 = vmatpush1.msra.mxu0 0.0
      %1052 = vmatprep.subr.mxu0 0.0
      %1053 = vmatpush1.msra.mxu0 0.0
      %1054 = vmatprep.subr.mxu0 0.0
      %1055 = vmatpush1.msra.mxu0 0.0
      %1056 = vmatprep.subr.mxu0 0.0
      %1057 = vmatpush1.msra.mxu0 0.0
      %1058 = vmatprep.subr.mxu0 0.0
      %1059 = vmatpush1.msra.mxu0 0.0
      %1060 = vmatprep.subr.mxu0 0.0
      %1061 = vmatpush1.msra.mxu0 0.0
      %1062 = vmatprep.subr.mxu0 0.0
      %1063 = vmatpush1.msra.mxu0 0.0
      %1064 = vmatprep.subr.mxu0 0.0
      %1065 = vmatpush1.msra.mxu0 0.0
      %1066 = vmatprep.subr.mxu0 0.0
      %1067 = vmatpush1.msra.mxu0 0.0
      %1068 = vmatprep.subr.mxu0 0.0
      %1069 = vmatpush1.msra.mxu0 0.0
      %1070 = vmatprep.subr.mxu0 0.0
      %1071 = vmatpush1.msra.mxu0 0.0
      %1072 = vmatprep.subr.mxu0 0.0
      %1073 = vmatpush1.msra.mxu0 0.0
      %1074 = vmatprep.subr.mxu0 0.0
      %1075 = vmatpush1.msra.mxu0 0.0
      %1076 = vmatprep.subr.mxu0 0.0
      %1077 = vmatpush1.msra.mxu0 0.0
      %1078 = vmatprep.subr.mxu0 0.0
      %1079 = vmatpush1.msra.mxu0 0.0
      %1080 = vmatprep.subr.mxu0 0.0
      %1081 = vmatpush1.msra.mxu0 0.0
      %1082 = vmatprep.subr.mxu0 0.0
      %1083 = vmatpush1.msra.mxu0 0.0
      %1084 = vmatprep.subr.mxu0 0.0
      %1085 = vmatpush1.msra.mxu0 0.0
      %1086 = vmatprep.subr.mxu0 0.0
      %1087 = vmatpush1.msra.mxu0 0.0
      %1088 = vmatprep.mubr.f32.mxu0 0.0
      %1089 = vmatmul.mubr.f32.gmra.mrb[0].mxu0 %v1019
      %v1090 = vpop.f32.mrb[0].mxu0
      %v1091 = vadd.f32 %v1016, %v1090
      %v1092 = vpop.f32.mrb[0].mxu0
      %1093 = vmatprep.mubr.f32.mxu0 0.0
      %1094 = vmatmul.mubr.f32.gmra.mrb[0].mxu0 %v1022
      %v1095 = vpop.f32.mrb[0].mxu0
      %v1096 = vadd.f32 %v1016, %v1095
      %v1097 = vpop.f32.mrb[0].mxu0
      %1098 = vdwg.mxu0
      %1100 = vrot.lane.b32.xlu0 %v1091, 96
      %v1101 = vpop.permute.xlu0 %1100
      %v1102 = vsel %vm963, %v1091, 0
      %v1104 = vsel %vm963, %v1101, 0
      %1106 = vmatprep.subr.mxu0 0.0
      %1107 = vmatpush1.xpose.msra.mxu0 %v1104
      %1108 = vmatprep.subr.mxu0 0.0
      %1109 = vmatpush1.xpose.msra.mxu0 0.0
      %1110 = vmatprep.subr.mxu0 0.0
      %1111 = vmatpush1.xpose.msra.mxu0 0.0
      %1112 = vmatprep.subr.mxu0 0.0
      %1113 = vmatpush1.xpose.msra.mxu0 0.0
      %1114 = vmatprep.subr.mxu0 0.0
      %1115 = vmatpush1.xpose.msra.mxu0 0.0
      %1116 = vmatprep.subr.mxu0 0.0
      %1117 = vmatpush1.xpose.msra.mxu0 0.0
      %1118 = vmatprep.subr.mxu0 0.0
      %1119 = vmatpush1.xpose.msra.mxu0 0.0
      %1120 = vmatprep.subr.mxu0 0.0
      %1121 = vmatpush1.xpose.msra.mxu0 0.0
      %1122 = vmatprep.subr.mxu0 0.0
      %1123 = vmatpush1.xpose.msra.mxu0 0.0
      %1124 = vmatprep.subr.mxu0 0.0
      %1125 = vmatpush1.xpose.msra.mxu0 0.0
      %1126 = vmatprep.subr.mxu0 0.0
      %1127 = vmatpush1.xpose.msra.mxu0 0.0
      %1128 = vmatprep.subr.mxu0 0.0
      %1129 = vmatpush1.xpose.msra.mxu0 0.0
      %1130 = vmatprep.subr.mxu0 0.0
      %1131 = vmatpush1.xpose.msra.mxu0 0.0
      %1132 = vmatprep.subr.mxu0 0.0
      %1133 = vmatpush1.xpose.msra.mxu0 0.0
      %1134 = vmatprep.subr.mxu0 0.0
      %1135 = vmatpush1.xpose.msra.mxu0 0.0
      %1136 = vmatprep.subr.mxu0 0.0
      %1137 = vmatpush1.xpose.msra.mxu0 0.0
      %1138 = vmatprep.subr.mxu0 0.0
      %1139 = vmatpush1.xpose.msra.mxu0 0.0
      %1140 = vmatprep.subr.mxu0 0.0
      %1141 = vmatpush1.xpose.msra.mxu0 0.0
      %1142 = vmatprep.subr.mxu0 0.0
      %1143 = vmatpush1.xpose.msra.mxu0 0.0
      %1144 = vmatprep.subr.mxu0 0.0
      %1145 = vmatpush1.xpose.msra.mxu0 0.0
      %1146 = vmatprep.subr.mxu0 0.0
      %1147 = vmatpush1.xpose.msra.mxu0 0.0
      %1148 = vmatprep.subr.mxu0 0.0
      %1149 = vmatpush1.xpose.msra.mxu0 0.0
      %1150 = vmatprep.subr.mxu0 0.0
      %1151 = vmatpush1.xpose.msra.mxu0 0.0
      %1152 = vmatprep.subr.mxu0 0.0
      %1153 = vmatpush1.xpose.msra.mxu0 0.0
      %1154 = vmatprep.subr.mxu0 0.0
      %1155 = vmatpush1.xpose.msra.mxu0 0.0
      %1156 = vmatprep.subr.mxu0 0.0
      %1157 = vmatpush1.xpose.msra.mxu0 0.0
      %1158 = vmatprep.subr.mxu0 0.0
      %1159 = vmatpush1.xpose.msra.mxu0 0.0
      %1160 = vmatprep.subr.mxu0 0.0
      %1161 = vmatpush1.xpose.msra.mxu0 0.0
      %1162 = vmatprep.subr.mxu0 0.0
      %1163 = vmatpush1.xpose.msra.mxu0 0.0
      %1164 = vmatprep.subr.mxu0 0.0
      %1165 = vmatpush1.xpose.msra.mxu0 0.0
      %1166 = vmatprep.subr.mxu0 0.0
      %1167 = vmatpush1.xpose.msra.mxu0 0.0
      %1168 = vmatprep.subr.mxu0 0.0
      %1169 = vmatpush1.xpose.msra.mxu0 0.0
      %1170 = vmatprep.mubr.f32.mxu0 0.0
      %1171 = vmatmul.mubr.f32.gmra.mrb[0].mxu0 %v1102
      %v1172 = vpop.f32.mrb[0].mxu0
      %v1173 = vadd.f32 0.0, %v1172
      %v1174 = vpop.f32.mrb[0].mxu0
      %1175 = vdwg.mxu0
      %1177 = vrot.lane.b32.xlu0 %v1096, 96
      %v1178 = vpop.permute.xlu0 %1177
      %v1179 = vsel %vm963, %v1096, 0
      %v1181 = vsel %vm963, %v1178, 0
      %1183 = vmatprep.subr.mxu0 0.0
      %1184 = vmatpush1.xpose.msra.mxu0 %v1181
      %1185 = vmatprep.subr.mxu0 0.0
      %1186 = vmatpush1.xpose.msra.mxu0 0.0
      %1187 = vmatprep.subr.mxu0 0.0
      %1188 = vmatpush1.xpose.msra.mxu0 0.0
      %1189 = vmatprep.subr.mxu0 0.0
      %1190 = vmatpush1.xpose.msra.mxu0 0.0
      %1191 = vmatprep.subr.mxu0 0.0
      %1192 = vmatpush1.xpose.msra.mxu0 0.0
      %1193 = vmatprep.subr.mxu0 0.0
      %1194 = vmatpush1.xpose.msra.mxu0 0.0
      %1195 = vmatprep.subr.mxu0 0.0
      %1196 = vmatpush1.xpose.msra.mxu0 0.0
      %1197 = vmatprep.subr.mxu0 0.0
      %1198 = vmatpush1.xpose.msra.mxu0 0.0
      %1199 = vmatprep.subr.mxu0 0.0
      %1200 = vmatpush1.xpose.msra.mxu0 0.0
      %1201 = vmatprep.subr.mxu0 0.0
      %1202 = vmatpush1.xpose.msra.mxu0 0.0
      %1203 = vmatprep.subr.mxu0 0.0
      %1204 = vmatpush1.xpose.msra.mxu0 0.0
      %1205 = vmatprep.subr.mxu0 0.0
      %1206 = vmatpush1.xpose.msra.mxu0 0.0
      %1207 = vmatprep.subr.mxu0 0.0
      %1208 = vmatpush1.xpose.msra.mxu0 0.0
      %1209 = vmatprep.subr.mxu0 0.0
      %1210 = vmatpush1.xpose.msra.mxu0 0.0
      %1211 = vmatprep.subr.mxu0 0.0
      %1212 = vmatpush1.xpose.msra.mxu0 0.0
      %1213 = vmatprep.subr.mxu0 0.0
      %1214 = vmatpush1.xpose.msra.mxu0 0.0
      %1215 = vmatprep.subr.mxu0 0.0
      %1216 = vmatpush1.xpose.msra.mxu0 0.0
      %1217 = vmatprep.subr.mxu0 0.0
      %1218 = vmatpush1.xpose.msra.mxu0 0.0
      %1219 = vmatprep.subr.mxu0 0.0
      %1220 = vmatpush1.xpose.msra.mxu0 0.0
      %1221 = vmatprep.subr.mxu0 0.0
      %1222 = vmatpush1.xpose.msra.mxu0 0.0
      %1223 = vmatprep.subr.mxu0 0.0
      %1224 = vmatpush1.xpose.msra.mxu0 0.0
      %1225 = vmatprep.subr.mxu0 0.0
      %1226 = vmatpush1.xpose.msra.mxu0 0.0
      %1227 = vmatprep.subr.mxu0 0.0
      %1228 = vmatpush1.xpose.msra.mxu0 0.0
      %1229 = vmatprep.subr.mxu0 0.0
      %1230 = vmatpush1.xpose.msra.mxu0 0.0
      %1231 = vmatprep.subr.mxu0 0.0
      %1232 = vmatpush1.xpose.msra.mxu0 0.0
      %1233 = vmatprep.subr.mxu0 0.0
      %1234 = vmatpush1.xpose.msra.mxu0 0.0
      %1235 = vmatprep.subr.mxu0 0.0
      %1236 = vmatpush1.xpose.msra.mxu0 0.0
      %1237 = vmatprep.subr.mxu0 0.0
      %1238 = vmatpush1.xpose.msra.mxu0 0.0
      %1239 = vmatprep.subr.mxu0 0.0
      %1240 = vmatpush1.xpose.msra.mxu0 0.0
      %1241 = vmatprep.subr.mxu0 0.0
      %1242 = vmatpush1.xpose.msra.mxu0 0.0
      %1243 = vmatprep.subr.mxu0 0.0
      %1244 = vmatpush1.xpose.msra.mxu0 0.0
      %1245 = vmatprep.subr.mxu0 0.0
      %1246 = vmatpush1.xpose.msra.mxu0 0.0
      %1247 = vmatprep.mubr.f32.mxu0 0.0
      %1248 = vmatmul.mubr.f32.gmra.mrb[0].mxu0 %v1179
      %v1249 = vpop.f32.mrb[0].mxu0
      %v1250 = vadd.f32 0.0, %v1249
      %v1251 = vpop.f32.mrb[0].mxu0
      %1252 = vdwg.mxu0
      %v1253 = vmul.f32 %v1173, 0.17677669
      %v1254 = vmul.f32 %v1250, 0.17677669
      %v1257 = vlaneseq
      %v1258 = vshrl.u32 %v1257, 7
      %v1259 = vsub.s32 0, %v1258
      %v1260 = vrot.slane %v957, %v1259
      %v1261 = vlaneseq
      %v1262 = vshrl.u32 %v1261, 7
      %v1263 = vsub.s32 0, %v1262
      %v1264 = vrot.slane %v958, %v1263
      %v1267 = vadd.f32 %v1253, %v1260
      %v1268 = vadd.f32 %v1254, %v1264
      %vm1269 = vcmask 64512
      %v1270 = vsel %vm1269, %v1267, -inf
      %1271 = vmax.xlane.f32.xlu0 %v1270
      %v1272 = vpop.xlane.xlu0 %1271
      %v1273 = vsel %vm1269, %v1268, -inf
      %1274 = vmax.xlane.f32.xlu0 %v1273
      %v1275 = vpop.xlane.xlu0 %1274
      %v1276 = vsub.f32 %v1267, %v1272
      %v1277 = vsub.f32 %v1268, %v1275
      %v1278 = vmul.f32 %v1276, 1.442695
      %v1279 = vpow.pop %v1278
      %v1280 = vmul.f32 %v1277, 1.442695
      %v1281 = vpow.pop %v1280
      %v1282 = vsel %vm1269, %v1279, 0.0
      %1283 = vadd.xlane.f32.xlu0 %v1282
      %v1284 = vpop.xlane.xlu0 %1283
      %v1285 = vsel %vm1269, %v1281, 0.0
      %1286 = vadd.xlane.f32.xlu0 %v1285
      %v1287 = vpop.xlane.xlu0 %1286
      %v1288 = vrcp.pop %v1284
      %v1289 = vrcp.pop %v1287
      %v1290 = vmul.f32 %v1279, %v1288
      %v1291 = vmul.f32 %v1281, %v1289
      %1292 = vrot.lane.b32.xlu0 %v1091, 64
      %v1293 = vpop.permute.xlu0 %1292
      %v1296 = vsel %vm1269, %v1290, 0
      %1298 = vmatprep.subr.mxu0 0.0
      %1299 = vmatpush1.msra.mxu0 %v1293
      %1300 = vmatprep.subr.mxu0 0.0
      %1301 = vmatpush1.msra.mxu0 0.0
      %1302 = vmatprep.subr.mxu0 0.0
      %1303 = vmatpush1.msra.mxu0 0.0
      %1304 = vmatprep.subr.mxu0 0.0
      %1305 = vmatpush1.msra.mxu0 0.0
      %1306 = vmatprep.subr.mxu0 0.0
      %1307 = vmatpush1.msra.mxu0 0.0
      %1308 = vmatprep.subr.mxu0 0.0
      %1309 = vmatpush1.msra.mxu0 0.0
      %1310 = vmatprep.subr.mxu0 0.0
      %1311 = vmatpush1.msra.mxu0 0.0
      %1312 = vmatprep.subr.mxu0 0.0
      %1313 = vmatpush1.msra.mxu0 0.0
      %1314 = vmatprep.subr.mxu0 0.0
      %1315 = vmatpush1.msra.mxu0 0.0
      %1316 = vmatprep.subr.mxu0 0.0
      %1317 = vmatpush1.msra.mxu0 0.0
      %1318 = vmatprep.subr.mxu0 0.0
      %1319 = vmatpush1.msra.mxu0 0.0
      %1320 = vmatprep.subr.mxu0 0.0
      %1321 = vmatpush1.msra.mxu0 0.0
      %1322 = vmatprep.subr.mxu0 0.0
      %1323 = vmatpush1.msra.mxu0 0.0
      %1324 = vmatprep.subr.mxu0 0.0
      %1325 = vmatpush1.msra.mxu0 0.0
      %1326 = vmatprep.subr.mxu0 0.0
      %1327 = vmatpush1.msra.mxu0 0.0
      %1328 = vmatprep.subr.mxu0 0.0
      %1329 = vmatpush1.msra.mxu0 0.0
      %1330 = vmatprep.subr.mxu0 0.0
      %1331 = vmatpush1.msra.mxu0 0.0
      %1332 = vmatprep.subr.mxu0 0.0
      %1333 = vmatpush1.msra.mxu0 0.0
      %1334 = vmatprep.subr.mxu0 0.0
      %1335 = vmatpush1.msra.mxu0 0.0
      %1336 = vmatprep.subr.mxu0 0.0
      %1337 = vmatpush1.msra.mxu0 0.0
      %1338 = vmatprep.subr.mxu0 0.0
      %1339 = vmatpush1.msra.mxu0 0.0
      %1340 = vmatprep.subr.mxu0 0.0
      %1341 = vmatpush1.msra.mxu0 0.0
      %1342 = vmatprep.subr.mxu0 0.0
      %1343 = vmatpush1.msra.mxu0 0.0
      %1344 = vmatprep.subr.mxu0 0.0
      %1345 = vmatpush1.msra.mxu0 0.0
      %1346 = vmatprep.subr.mxu0 0.0
      %1347 = vmatpush1.msra.mxu0 0.0
      %1348 = vmatprep.subr.mxu0 0.0
      %1349 = vmatpush1.msra.mxu0 0.0
      %1350 = vmatprep.subr.mxu0 0.0
      %1351 = vmatpush1.msra.mxu0 0.0
      %1352 = vmatprep.subr.mxu0 0.0
      %1353 = vmatpush1.msra.mxu0 0.0
      %1354 = vmatprep.subr.mxu0 0.0
      %1355 = vmatpush1.msra.mxu0 0.0
      %1356 = vmatprep.subr.mxu0 0.0
      %1357 = vmatpush1.msra.mxu0 0.0
      %1358 = vmatprep.subr.mxu0 0.0
      %1359 = vmatpush1.msra.mxu0 0.0
      %1360 = vmatprep.subr.mxu0 0.0
      %1361 = vmatpush1.msra.mxu0 0.0
      %1362 = vmatprep.mubr.f32.mxu0 0.0
      %1363 = vmatmul.mubr.f32.gmra.mrb[0].mxu0 %v1296
      %v1364 = vpop.f32.mrb[0].mxu0
      %v1365 = vadd.f32 0.0, %v1364
      %v1366 = vpop.f32.mrb[0].mxu0
      %1367 = vdwg.mxu0
      %1368 = vrot.lane.b32.xlu0 %v1096, 64
      %v1369 = vpop.permute.xlu0 %1368
      %v1372 = vsel %vm1269, %v1291, 0
      %1374 = vmatprep.subr.mxu0 0.0
      %1375 = vmatpush1.msra.mxu0 %v1369
      %1376 = vmatprep.subr.mxu0 0.0
      %1377 = vmatpush1.msra.mxu0 0.0
      %1378 = vmatprep.subr.mxu0 0.0
      %1379 = vmatpush1.msra.mxu0 0.0
      %1380 = vmatprep.subr.mxu0 0.0
      %1381 = vmatpush1.msra.mxu0 0.0
      %1382 = vmatprep.subr.mxu0 0.0
      %1383 = vmatpush1.msra.mxu0 0.0
      %1384 = vmatprep.subr.mxu0 0.0
      %1385 = vmatpush1.msra.mxu0 0.0
      %1386 = vmatprep.subr.mxu0 0.0
      %1387 = vmatpush1.msra.mxu0 0.0
      %1388 = vmatprep.subr.mxu0 0.0
      %1389 = vmatpush1.msra.mxu0 0.0
      %1390 = vmatprep.subr.mxu0 0.0
      %1391 = vmatpush1.msra.mxu0 0.0
      %1392 = vmatprep.subr.mxu0 0.0
      %1393 = vmatpush1.msra.mxu0 0.0
      %1394 = vmatprep.subr.mxu0 0.0
      %1395 = vmatpush1.msra.mxu0 0.0
      %1396 = vmatprep.subr.mxu0 0.0
      %1397 = vmatpush1.msra.mxu0 0.0
      %1398 = vmatprep.subr.mxu0 0.0
      %1399 = vmatpush1.msra.mxu0 0.0
      %1400 = vmatprep.subr.mxu0 0.0
      %1401 = vmatpush1.msra.mxu0 0.0
      %1402 = vmatprep.subr.mxu0 0.0
      %1403 = vmatpush1.msra.mxu0 0.0
      %1404 = vmatprep.subr.mxu0 0.0
      %1405 = vmatpush1.msra.mxu0 0.0
      %1406 = vmatprep.subr.mxu0 0.0
      %1407 = vmatpush1.msra.mxu0 0.0
      %1408 = vmatprep.subr.mxu0 0.0
      %1409 = vmatpush1.msra.mxu0 0.0
      %1410 = vmatprep.subr.mxu0 0.0
      %1411 = vmatpush1.msra.mxu0 0.0
      %1412 = vmatprep.subr.mxu0 0.0
      %1413 = vmatpush1.msra.mxu0 0.0
      %1414 = vmatprep.subr.mxu0 0.0
      %1415 = vmatpush1.msra.mxu0 0.0
      %1416 = vmatprep.subr.mxu0 0.0
      %1417 = vmatpush1.msra.mxu0 0.0
      %1418 = vmatprep.subr.mxu0 0.0
      %1419 = vmatpush1.msra.mxu0 0.0
      %1420 = vmatprep.subr.mxu0 0.0
      %1421 = vmatpush1.msra.mxu0 0.0
      %1422 = vmatprep.subr.mxu0 0.0
      %1423 = vmatpush1.msra.mxu0 0.0
      %1424 = vmatprep.subr.mxu0 0.0
      %1425 = vmatpush1.msra.mxu0 0.0
      %1426 = vmatprep.subr.mxu0 0.0
      %1427 = vmatpush1.msra.mxu0 0.0
      %1428 = vmatprep.subr.mxu0 0.0
      %1429 = vmatpush1.msra.mxu0 0.0
      %1430 = vmatprep.subr.mxu0 0.0
      %1431 = vmatpush1.msra.mxu0 0.0
      %1432 = vmatprep.subr.mxu0 0.0
      %1433 = vmatpush1.msra.mxu0 0.0
      %1434 = vmatprep.subr.mxu0 0.0
      %1435 = vmatpush1.msra.mxu0 0.0
      %1436 = vmatprep.subr.mxu0 0.0
      %1437 = vmatpush1.msra.mxu0 0.0
      %1438 = vmatprep.mubr.f32.mxu0 0.0
      %1439 = vmatmul.mubr.f32.gmra.mrb[0].mxu0 %v1372
      %v1440 = vpop.f32.mrb[0].mxu0
      %v1441 = vadd.f32 0.0, %v1440
      %v1442 = vpop.f32.mrb[0].mxu0
      %1443 = vdwg.mxu0
      %v1444 = vld [vmem:[%s898] sm:$0xff]
      %v1445 = vld [vmem:[%s898 + $0x8] sm:$0xff]
      %v1446 = vld [vmem:[%s898 + $0x10] sm:$0xff]
      %v1447 = vld [vmem:[%s898 + $0x18] sm:$0xff]
      %v1448 = vld [vmem:[%s902] sm:$0x1]
      %v1450 = vlaneseq
      %v1451 = vshrl.u32 %v1450, 7
      %v1452 = vsub.s32 0, %v1451
      %v1453 = vrot.slane %v1448, %v1452
      %v1456 = vsel %vm963, %v1365, 0
      %v1459 = vsel %vm963, %v1441, 0
      %1461 = vmatprep.subr.mxu0 0.0
      %1462 = vmatpush1.msra.mxu0 %v1444
      %1463 = vmatprep.subr.mxu0 0.0
      %1464 = vmatpush1.msra.mxu0 %v1445
      %1465 = vmatprep.subr.mxu0 0.0
      %1466 = vmatpush1.msra.mxu0 %v1446
      %1467 = vmatprep.subr.mxu0 0.0
      %1468 = vmatpush1.msra.mxu0 %v1447
      %1469 = vmatprep.subr.mxu0 0.0
      %1470 = vmatpush1.msra.mxu0 0.0
      %1471 = vmatprep.subr.mxu0 0.0
      %1472 = vmatpush1.msra.mxu0 0.0
      %1473 = vmatprep.subr.mxu0 0.0
      %1474 = vmatpush1.msra.mxu0 0.0
      %1475 = vmatprep.subr.mxu0 0.0
      %1476 = vmatpush1.msra.mxu0 0.0
      %1477 = vmatprep.subr.mxu0 0.0
      %1478 = vmatpush1.msra.mxu0 0.0
      %1479 = vmatprep.subr.mxu0 0.0
      %1480 = vmatpush1.msra.mxu0 0.0
      %1481 = vmatprep.subr.mxu0 0.0
      %1482 = vmatpush1.msra.mxu0 0.0
      %1483 = vmatprep.subr.mxu0 0.0
      %1484 = vmatpush1.msra.mxu0 0.0
      %1485 = vmatprep.subr.mxu0 0.0
      %1486 = vmatpush1.msra.mxu0 0.0
      %1487 = vmatprep.subr.mxu0 0.0
      %1488 = vmatpush1.msra.mxu0 0.0
      %1489 = vmatprep.subr.mxu0 0.0
      %1490 = vmatpush1.msra.mxu0 0.0
      %1491 = vmatprep.subr.mxu0 0.0
      %1492 = vmatpush1.msra.mxu0 0.0
      %1493 = vmatprep.subr.mxu0 0.0
      %1494 = vmatpush1.msra.mxu0 0.0
      %1495 = vmatprep.subr.mxu0 0.0
      %1496 = vmatpush1.msra.mxu0 0.0
      %1497 = vmatprep.subr.mxu0 0.0
      %1498 = vmatpush1.msra.mxu0 0.0
      %1499 = vmatprep.subr.mxu0 0.0
      %1500 = vmatpush1.msra.mxu0 0.0
      %1501 = vmatprep.subr.mxu0 0.0
      %1502 = vmatpush1.msra.mxu0 0.0
      %1503 = vmatprep.subr.mxu0 0.0
      %1504 = vmatpush1.msra.mxu0 0.0
      %1505 = vmatprep.subr.mxu0 0.0
      %1506 = vmatpush1.msra.mxu0 0.0
      %1507 = vmatprep.subr.mxu0 0.0
      %1508 = vmatpush1.msra.mxu0 0.0
      %1509 = vmatprep.subr.mxu0 0.0
      %1510 = vmatpush1.msra.mxu0 0.0
      %1511 = vmatprep.subr.mxu0 0.0
      %1512 = vmatpush1.msra.mxu0 0.0
      %1513 = vmatprep.subr.mxu0 0.0
      %1514 = vmatpush1.msra.mxu0 0.0
      %1515 = vmatprep.subr.mxu0 0.0
      %1516 = vmatpush1.msra.mxu0 0.0
      %1517 = vmatprep.subr.mxu0 0.0
      %1518 = vmatpush1.msra.mxu0 0.0
      %1519 = vmatprep.subr.mxu0 0.0
      %1520 = vmatpush1.msra.mxu0 0.0
      %1521 = vmatprep.subr.mxu0 0.0
      %1522 = vmatpush1.msra.mxu0 0.0
      %1523 = vmatprep.subr.mxu0 0.0
      %1524 = vmatpush1.msra.mxu0 0.0
      %1525 = vmatprep.mubr.f32.mxu0 0.0
      %1526 = vmatmul.mubr.f32.gmra.mrb[0].mxu0 %v1456
      %v1527 = vpop.f32.mrb[0].mxu0
      %v1528 = vadd.f32 %v1453, %v1527
      %v1529 = vpop.f32.mrb[0].mxu0
      %1530 = vmatprep.mubr.f32.mxu0 0.0
      %1531 = vmatmul.mubr.f32.gmra.mrb[0].mxu0 %v1459
      %v1532 = vpop.f32.mrb[0].mxu0
      %v1533 = vadd.f32 %v1453, %v1532
      %v1534 = vpop.f32.mrb[0].mxu0
      %1535 = vdwg.mxu0
      %v1536 = vadd.f32 %v1005, %v1528
      %v1537 = vadd.f32 %v1006, %v1533
      %v1538 = vld [vmem:[%s906] sm:$0x1]
      %v1539 = vld [vmem:[%s910] sm:$0x1]
      %v1540 = vsel %vm963, %v1536, 0.0
      %1541 = vadd.xlane.f32.xlu0 %v1540
      %v1542 = vpop.xlane.xlu0 %1541
      %v1543 = vsel %vm963, %v1537, 0.0
      %1544 = vadd.xlane.f32.xlu0 %v1543
      %v1545 = vpop.xlane.xlu0 %1544
      %v1546 = vmul.f32 %v1542, %v970
      %v1547 = vmul.f32 %v1545, %v970
      %v1548 = vsub.f32 %v1536, %v1546
      %v1549 = vsub.f32 %v1537, %v1547
      %v1550 = vmul.f32 %v1548, %v1548
      %v1551 = vmul.f32 %v1549, %v1549
      %v1552 = vsel %vm963, %v1550, 0.0
      %1553 = vadd.xlane.f32.xlu0 %v1552
      %v1554 = vpop.xlane.xlu0 %1553
      %v1555 = vsel %vm963, %v1551, 0.0
      %1556 = vadd.xlane.f32.xlu0 %v1555
      %v1557 = vpop.xlane.xlu0 %1556
      %v1558 = vmul.f32 %v1554, %v970
      %v1559 = vmul.f32 %v1557, %v970
      %v1560 = vadd.f32 %v1558, 1e-12
      %v1561 = vadd.f32 %v1559, 1e-12
      %v1562 = vrsqrt.pop %v1560
      %v1563 = vrsqrt.pop %v1561
      %v1564 = vmul.f32 %v1548, %v1562
      %v1565 = vmul.f32 %v1549, %v1563
      %v1567 = vlaneseq
      %v1568 = vshrl.u32 %v1567, 7
      %v1569 = vsub.s32 0, %v1568
      %v1570 = vrot.slane %v1538, %v1569
      %v1572 = vmul.f32 %v1564, %v1570
      %v1573 = vmul.f32 %v1565, %v1570
      %v1575 = vlaneseq
      %v1576 = vshrl.u32 %v1575, 7
      %v1577 = vsub.s32 0, %v1576
      %v1578 = vrot.slane %v1539, %v1577
      %v1580 = vadd.f32 %v1572, %v1578
      %v1581 = vadd.f32 %v1573, %v1578
      %v1582 = vld [vmem:[%s915] sm:$0xff]
      %v1583 = vld [vmem:[%s915 + $0x8] sm:$0xff]
      %v1584 = vld [vmem:[%s915 + $0x10] sm:$0xff]
      %v1585 = vld [vmem:[%s915 + $0x18] sm:$0xff]
      %v1586 = vld [vmem:[%s919] sm:$0x1]
      %v1588 = vlaneseq
      %v1589 = vshrl.u32 %v1588, 7
      %v1590 = vsub.s32 0, %v1589
      %v1591 = vrot.slane %v1586, %v1590
      %v1594 = vsel %vm963, %v1580, 0
      %v1597 = vsel %vm963, %v1581, 0
      %1599 = vmatprep.subr.mxu0 0.0
      %1600 = vmatpush1.msra.mxu0 %v1582
      %1601 = vmatprep.subr.mxu0 0.0
      %1602 = vmatpush1.msra.mxu0 %v1583
      %1603 = vmatprep.subr.mxu0 0.0
      %1604 = vmatpush1.msra.mxu0 %v1584
      %1605 = vmatprep.subr.mxu0 0.0
      %1606 = vmatpush1.msra.mxu0 %v1585
      %1607 = vmatprep.subr.mxu0 0.0
      %1608 = vmatpush1.msra.mxu0 0.0
      %1609 = vmatprep.subr.mxu0 0.0
      %1610 = vmatpush1.msra.mxu0 0.0
      %1611 = vmatprep.subr.mxu0 0.0
      %1612 = vmatpush1.msra.mxu0 0.0
      %1613 = vmatprep.subr.mxu0 0.0
      %1614 = vmatpush1.msra.mxu0 0.0
      %1615 = vmatprep.subr.mxu0 0.0
      %1616 = vmatpush1.msra.mxu0 0.0
      %1617 = vmatprep.subr.mxu0 0.0
      %1618 = vmatpush1.msra.mxu0 0.0
      %1619 = vmatprep.subr.mxu0 0.0
      %1620 = vmatpush1.msra.mxu0 0.0
      %1621 = vmatprep.subr.mxu0 0.0
      %1622 = vmatpush1.msra.mxu0 0.0
      %1623 = vmatprep.subr.mxu0 0.0
      %1624 = vmatpush1.msra.mxu0 0.0
      %1625 = vmatprep.subr.mxu0 0.0
      %1626 = vmatpush1.msra.mxu0 0.0
      %1627 = vmatprep.subr.mxu0 0.0
      %1628 = vmatpush1.msra.mxu0 0.0
      %1629 = vmatprep.subr.mxu0 0.0
      %1630 = vmatpush1.msra.mxu0 0.0
      %1631 = vmatprep.subr.mxu0 0.0
      %1632 = vmatpush1.msra.mxu0 0.0
      %1633 = vmatprep.subr.mxu0 0.0
      %1634 = vmatpush1.msra.mxu0 0.0
      %1635 = vmatprep.subr.mxu0 0.0
      %1636 = vmatpush1.msra.mxu0 0.0
      %1637 = vmatprep.subr.mxu0 0.0
      %1638 = vmatpush1.msra.mxu0 0.0
      %1639 = vmatprep.subr.mxu0 0.0
      %1640 = vmatpush1.msra.mxu0 0.0
      %1641 = vmatprep.subr.mxu0 0.0
      %1642 = vmatpush1.msra.mxu0 0.0
      %1643 = vmatprep.subr.mxu0 0.0
      %1644 = vmatpush1.msra.mxu0 0.0
      %1645 = vmatprep.subr.mxu0 0.0
      %1646 = vmatpush1.msra.mxu0 0.0
      %1647 = vmatprep.subr.mxu0 0.0
      %1648 = vmatpush1.msra.mxu0 0.0
      %1649 = vmatprep.subr.mxu0 0.0
      %1650 = vmatpush1.msra.mxu0 0.0
      %1651 = vmatprep.subr.mxu0 0.0
      %1652 = vmatpush1.msra.mxu0 0.0
      %1653 = vmatprep.subr.mxu0 0.0
      %1654 = vmatpush1.msra.mxu0 0.0
      %1655 = vmatprep.subr.mxu0 0.0
      %1656 = vmatpush1.msra.mxu0 0.0
      %1657 = vmatprep.subr.mxu0 0.0
      %1658 = vmatpush1.msra.mxu0 0.0
      %1659 = vmatprep.subr.mxu0 0.0
      %1660 = vmatpush1.msra.mxu0 0.0
      %1661 = vmatprep.subr.mxu0 0.0
      %1662 = vmatpush1.msra.mxu0 0.0
      %1663 = vmatprep.mubr.f32.mxu0 0.0
      %1664 = vmatmul.mubr.f32.gmra.mrb[0].mxu0 %v1594
      %v1665 = vpop.f32.mrb[0].mxu0
      %v1666 = vadd.f32 %v1591, %v1665
      %v1667 = vpop.f32.mrb[0].mxu0
      %1668 = vmatprep.mubr.f32.mxu0 0.0
      %1669 = vmatmul.mubr.f32.gmra.mrb[0].mxu0 %v1597
      %v1670 = vpop.f32.mrb[0].mxu0
      %v1671 = vadd.f32 %v1591, %v1670
      %v1672 = vpop.f32.mrb[0].mxu0
      %1673 = vdwg.mxu0
      %v1674 = vmul.f32 %v1666, 0.5
      %v1675 = vmul.f32 %v1671, 0.5
      %v1676 = vmul.f32 %v1666, 0.044715
      %v1677 = vmul.f32 %v1671, 0.044715
      %v1678 = vmul.f32 %v1676, %v1666
      %v1679 = vmul.f32 %v1677, %v1671
      %v1680 = vmul.f32 %v1678, %v1666
      %v1681 = vmul.f32 %v1679, %v1671
      %v1682 = vadd.f32 %v1666, %v1680
      %v1683 = vadd.f32 %v1671, %v1681
      %v1684 = vmul.f32 %v1682, 0.7978846
      %v1685 = vmul.f32 %v1683, 0.7978846
      %v1686 = vtanh.pop %v1684
      %v1687 = vtanh.pop %v1685
      %v1688 = vadd.f32 %v1686, 1.0
      %v1689 = vadd.f32 %v1687, 1.0
      %v1690 = vmul.f32 %v1674, %v1688
      %v1691 = vmul.f32 %v1675, %v1689
      %v1692 = vld [vmem:[%s924] sm:$0xff]
      %v1693 = vld [vmem:[%s924 + $0x8] sm:$0xff]
      %v1694 = vld [vmem:[%s924 + $0x10] sm:$0xff]
      %v1695 = vld [vmem:[%s924 + $0x18] sm:$0xff]
      %v1696 = vld [vmem:[%s924 + $0x20] sm:$0xff]
      %v1697 = vld [vmem:[%s924 + $0x28] sm:$0xff]
      %v1698 = vld [vmem:[%s924 + $0x30] sm:$0xff]
      %v1699 = vld [vmem:[%s924 + $0x38] sm:$0xff]
      %v1700 = vld [vmem:[%s924 + $0x40] sm:$0xff]
      %v1701 = vld [vmem:[%s924 + $0x48] sm:$0xff]
      %v1702 = vld [vmem:[%s924 + $0x50] sm:$0xff]
      %v1703 = vld [vmem:[%s924 + $0x58] sm:$0xff]
      %v1704 = vld [vmem:[%s924 + $0x60] sm:$0xff]
      %v1705 = vld [vmem:[%s924 + $0x68] sm:$0xff]
      %v1706 = vld [vmem:[%s924 + $0x70] sm:$0xff]
      %v1707 = vld [vmem:[%s924 + $0x78] sm:$0xff]
      %v1708 = vld [vmem:[%s928] sm:$0x1]
      %v1710 = vlaneseq
      %v1711 = vshrl.u32 %v1710, 7
      %v1712 = vsub.s32 0, %v1711
      %v1713 = vrot.slane %v1708, %v1712
      %1715 = vmatprep.subr.mxu0 0.0
      %1716 = vmatpush1.msra.mxu0 %v1692
      %1717 = vmatprep.subr.mxu0 0.0
      %1718 = vmatpush1.msra.mxu0 %v1693
      %1719 = vmatprep.subr.mxu0 0.0
      %1720 = vmatpush1.msra.mxu0 %v1694
      %1721 = vmatprep.subr.mxu0 0.0
      %1722 = vmatpush1.msra.mxu0 %v1695
      %1723 = vmatprep.subr.mxu0 0.0
      %1724 = vmatpush1.msra.mxu0 %v1696
      %1725 = vmatprep.subr.mxu0 0.0
      %1726 = vmatpush1.msra.mxu0 %v1697
      %1727 = vmatprep.subr.mxu0 0.0
      %1728 = vmatpush1.msra.mxu0 %v1698
      %1729 = vmatprep.subr.mxu0 0.0
      %1730 = vmatpush1.msra.mxu0 %v1699
      %1731 = vmatprep.subr.mxu0 0.0
      %1732 = vmatpush1.msra.mxu0 %v1700
      %1733 = vmatprep.subr.mxu0 0.0
      %1734 = vmatpush1.msra.mxu0 %v1701
      %1735 = vmatprep.subr.mxu0 0.0
      %1736 = vmatpush1.msra.mxu0 %v1702
      %1737 = vmatprep.subr.mxu0 0.0
      %1738 = vmatpush1.msra.mxu0 %v1703
      %1739 = vmatprep.subr.mxu0 0.0
      %1740 = vmatpush1.msra.mxu0 %v1704
      %1741 = vmatprep.subr.mxu0 0.0
      %1742 = vmatpush1.msra.mxu0 %v1705
      %1743 = vmatprep.subr.mxu0 0.0
      %1744 = vmatpush1.msra.mxu0 %v1706
      %1745 = vmatprep.subr.mxu0 0.0
      %1746 = vmatpush1.msra.mxu0 %v1707
      %1747 = vmatprep.subr.mxu0 0.0
      %1748 = vmatpush1.msra.mxu0 0.0
      %1749 = vmatprep.subr.mxu0 0.0
      %1750 = vmatpush1.msra.mxu0 0.0
      %1751 = vmatprep.subr.mxu0 0.0
      %1752 = vmatpush1.msra.mxu0 0.0
      %1753 = vmatprep.subr.mxu0 0.0
      %1754 = vmatpush1.msra.mxu0 0.0
      %1755 = vmatprep.subr.mxu0 0.0
      %1756 = vmatpush1.msra.mxu0 0.0
      %1757 = vmatprep.subr.mxu0 0.0
      %1758 = vmatpush1.msra.mxu0 0.0
      %1759 = vmatprep.subr.mxu0 0.0
      %1760 = vmatpush1.msra.mxu0 0.0
      %1761 = vmatprep.subr.mxu0 0.0
      %1762 = vmatpush1.msra.mxu0 0.0
      %1763 = vmatprep.subr.mxu0 0.0
      %1764 = vmatpush1.msra.mxu0 0.0
      %1765 = vmatprep.subr.mxu0 0.0
      %1766 = vmatpush1.msra.mxu0 0.0
      %1767 = vmatprep.subr.mxu0 0.0
      %1768 = vmatpush1.msra.mxu0 0.0
      %1769 = vmatprep.subr.mxu0 0.0
      %1770 = vmatpush1.msra.mxu0 0.0
      %1771 = vmatprep.subr.mxu0 0.0
      %1772 = vmatpush1.msra.mxu0 0.0
      %1773 = vmatprep.subr.mxu0 0.0
      %1774 = vmatpush1.msra.mxu0 0.0
      %1775 = vmatprep.subr.mxu0 0.0
      %1776 = vmatpush1.msra.mxu0 0.0
      %1777 = vmatprep.subr.mxu0 0.0
      %1778 = vmatpush1.msra.mxu0 0.0
      %1779 = vmatprep.mubr.f32.mxu0 0.0
      %1780 = vmatmul.mubr.f32.gmra.mrb[0].mxu0 %v1690
      %v1781 = vpop.f32.mrb[0].mxu0
      %v1782 = vadd.f32 %v1713, %v1781
      %v1783 = vpop.f32.mrb[0].mxu0
      %1784 = vmatprep.mubr.f32.mxu0 0.0
      %1785 = vmatmul.mubr.f32.gmra.mrb[0].mxu0 %v1691
      %v1786 = vpop.f32.mrb[0].mxu0
      %v1787 = vadd.f32 %v1713, %v1786
      %v1788 = vpop.f32.mrb[0].mxu0
      %1789 = vdwg.mxu0
      %v1790 = vadd.f32 %v1580, %v1782
      %v1791 = vadd.f32 %v1581, %v1787
      %v1792 = vld [vmem:[%s932] sm:$0x1]
      %v1793 = vld [vmem:[%s936] sm:$0x1]
      %v1794 = vsel %vm963, %v1790, 0.0
      %1795 = vadd.xlane.f32.xlu0 %v1794
      %v1796 = vpop.xlane.xlu0 %1795
      %v1797 = vsel %vm963, %v1791, 0.0
      %1798 = vadd.xlane.f32.xlu0 %v1797
      %v1799 = vpop.xlane.xlu0 %1798
      %v1800 = vmul.f32 %v1796, %v970
      %v1801 = vmul.f32 %v1799, %v970
      %v1802 = vsub.f32 %v1790, %v1800
      %v1803 = vsub.f32 %v1791, %v1801
      %v1804 = vmul.f32 %v1802, %v1802
      %v1805 = vmul.f32 %v1803, %v1803
      %v1806 = vsel %vm963, %v1804, 0.0
      %1807 = vadd.xlane.f32.xlu0 %v1806
      %v1808 = vpop.xlane.xlu0 %1807
      %v1809 = vsel %vm963, %v1805, 0.0
      %1810 = vadd.xlane.f32.xlu0 %v1809
      %v1811 = vpop.xlane.xlu0 %1810
      %v1812 = vmul.f32 %v1808, %v970
      %v1813 = vmul.f32 %v1811, %v970
      %v1814 = vadd.f32 %v1812, 1e-12
      %v1815 = vadd.f32 %v1813, 1e-12
      %v1816 = vrsqrt.pop %v1814
      %v1817 = vrsqrt.pop %v1815
      %v1818 = vmul.f32 %v1802, %v1816
      %v1819 = vmul.f32 %v1803, %v1817
      %v1821 = vlaneseq
      %v1822 = vshrl.u32 %v1821, 7
      %v1823 = vsub.s32 0, %v1822
      %v1824 = vrot.slane %v1792, %v1823
      %v1826 = vmul.f32 %v1818, %v1824
      %v1827 = vmul.f32 %v1819, %v1824
      %v1829 = vlaneseq
      %v1830 = vshrl.u32 %v1829, 7
      %v1831 = vsub.s32 0, %v1830
      %v1832 = vrot.slane %v1793, %v1831
      %v1834 = vadd.f32 %v1826, %v1832
      %v1835 = vadd.f32 %v1827, %v1832
      %s1836 = scalar_lea.vmem %s889, 32
      %v1837 = vld [vmem:[%s1836] sm:$0xff]
      %v1838 = vld [vmem:[%s1836 + $0x8] sm:$0xff]
      %v1839 = vld [vmem:[%s1836 + $0x10] sm:$0xff]
      %v1840 = vld [vmem:[%s1836 + $0x18] sm:$0xff]
      %s1841 = scalar_lea.vmem %s893, 1
      %v1842 = vld [vmem:[%s1841] sm:$0x1]
      %v1844 = vlaneseq
      %v1845 = vshrl.u32 %v1844, 7
      %v1846 = vsub.s32 0, %v1845
      %v1847 = vrot.slane %v1842, %v1846
      %v1850 = vsel %vm963, %v1834, 0
      %v1853 = vsel %vm963, %v1835, 0
      %1855 = vmatprep.subr.mxu0 0.0
      %1856 = vmatpush1.msra.mxu0 %v1837
      %1857 = vmatprep.subr.mxu0 0.0
      %1858 = vmatpush1.msra.mxu0 %v1838
      %1859 = vmatprep.subr.mxu0 0.0
      %1860 = vmatpush1.msra.mxu0 %v1839
      %1861 = vmatprep.subr.mxu0 0.0
      %1862 = vmatpush1.msra.mxu0 %v1840
      %1863 = vmatprep.subr.mxu0 0.0
      %1864 = vmatpush1.msra.mxu0 0.0
      %1865 = vmatprep.subr.mxu0 0.0
      %1866 = vmatpush1.msra.mxu0 0.0
      %1867 = vmatprep.subr.mxu0 0.0
      %1868 = vmatpush1.msra.mxu0 0.0
      %1869 = vmatprep.subr.mxu0 0.0
      %1870 = vmatpush1.msra.mxu0 0.0
      %1871 = vmatprep.subr.mxu0 0.0
      %1872 = vmatpush1.msra.mxu0 0.0
      %1873 = vmatprep.subr.mxu0 0.0
      %1874 = vmatpush1.msra.mxu0 0.0
      %1875 = vmatprep.subr.mxu0 0.0
      %1876 = vmatpush1.msra.mxu0 0.0
      %1877 = vmatprep.subr.mxu0 0.0
      %1878 = vmatpush1.msra.mxu0 0.0
      %1879 = vmatprep.subr.mxu0 0.0
      %1880 = vmatpush1.msra.mxu0 0.0
      %1881 = vmatprep.subr.mxu0 0.0
      %1882 = vmatpush1.msra.mxu0 0.0
      %1883 = vmatprep.subr.mxu0 0.0
      %1884 = vmatpush1.msra.mxu0 0.0
      %1885 = vmatprep.subr.mxu0 0.0
      %1886 = vmatpush1.msra.mxu0 0.0
      %1887 = vmatprep.subr.mxu0 0.0
      %1888 = vmatpush1.msra.mxu0 0.0
      %1889 = vmatprep.subr.mxu0 0.0
      %1890 = vmatpush1.msra.mxu0 0.0
      %1891 = vmatprep.subr.mxu0 0.0
      %1892 = vmatpush1.msra.mxu0 0.0
      %1893 = vmatprep.subr.mxu0 0.0
      %1894 = vmatpush1.msra.mxu0 0.0
      %1895 = vmatprep.subr.mxu0 0.0
      %1896 = vmatpush1.msra.mxu0 0.0
      %1897 = vmatprep.subr.mxu0 0.0
      %1898 = vmatpush1.msra.mxu0 0.0
      %1899 = vmatprep.subr.mxu0 0.0
      %1900 = vmatpush1.msra.mxu0 0.0
      %1901 = vmatprep.subr.mxu0 0.0
      %1902 = vmatpush1.msra.mxu0 0.0
      %1903 = vmatprep.subr.mxu0 0.0
      %1904 = vmatpush1.msra.mxu0 0.0
      %1905 = vmatprep.subr.mxu0 0.0
      %1906 = vmatpush1.msra.mxu0 0.0
      %1907 = vmatprep.subr.mxu0 0.0
      %1908 = vmatpush1.msra.mxu0 0.0
      %1909 = vmatprep.subr.mxu0 0.0
      %1910 = vmatpush1.msra.mxu0 0.0
      %1911 = vmatprep.subr.mxu0 0.0
      %1912 = vmatpush1.msra.mxu0 0.0
      %1913 = vmatprep.subr.mxu0 0.0
      %1914 = vmatpush1.msra.mxu0 0.0
      %1915 = vmatprep.subr.mxu0 0.0
      %1916 = vmatpush1.msra.mxu0 0.0
      %1917 = vmatprep.subr.mxu0 0.0
      %1918 = vmatpush1.msra.mxu0 0.0
      %1919 = vmatprep.mubr.f32.mxu0 0.0
      %1920 = vmatmul.mubr.f32.gmra.mrb[0].mxu0 %v1850
      %v1921 = vpop.f32.mrb[0].mxu0
      %v1922 = vadd.f32 %v1847, %v1921
      %v1923 = vpop.f32.mrb[0].mxu0
      %1924 = vmatprep.mubr.f32.mxu0 0.0
      %1925 = vmatmul.mubr.f32.gmra.mrb[0].mxu0 %v1853
      %v1926 = vpop.f32.mrb[0].mxu0
      %v1927 = vadd.f32 %v1847, %v1926
      %v1928 = vpop.f32.mrb[0].mxu0
      %1929 = vdwg.mxu0
      %1931 = vrot.lane.b32.xlu0 %v1922, 96
      %v1932 = vpop.permute.xlu0 %1931
      %v1933 = vsel %vm963, %v1922, 0
      %v1935 = vsel %vm963, %v1932, 0
      %1937 = vmatprep.subr.mxu0 0.0
      %1938 = vmatpush1.xpose.msra.mxu0 %v1935
      %1939 = vmatprep.subr.mxu0 0.0
      %1940 = vmatpush1.xpose.msra.mxu0 0.0
      %1941 = vmatprep.subr.mxu0 0.0
      %1942 = vmatpush1.xpose.msra.mxu0 0.0
      %1943 = vmatprep.subr.mxu0 0.0
      %1944 = vmatpush1.xpose.msra.mxu0 0.0
      %1945 = vmatprep.subr.mxu0 0.0
      %1946 = vmatpush1.xpose.msra.mxu0 0.0
      %1947 = vmatprep.subr.mxu0 0.0
      %1948 = vmatpush1.xpose.msra.mxu0 0.0
      %1949 = vmatprep.subr.mxu0 0.0
      %1950 = vmatpush1.xpose.msra.mxu0 0.0
      %1951 = vmatprep.subr.mxu0 0.0
      %1952 = vmatpush1.xpose.msra.mxu0 0.0
      %1953 = vmatprep.subr.mxu0 0.0
      %1954 = vmatpush1.xpose.msra.mxu0 0.0
      %1955 = vmatprep.subr.mxu0 0.0
      %1956 = vmatpush1.xpose.msra.mxu0 0.0
      %1957 = vmatprep.subr.mxu0 0.0
      %1958 = vmatpush1.xpose.msra.mxu0 0.0
      %1959 = vmatprep.subr.mxu0 0.0
      %1960 = vmatpush1.xpose.msra.mxu0 0.0
      %1961 = vmatprep.subr.mxu0 0.0
      %1962 = vmatpush1.xpose.msra.mxu0 0.0
      %1963 = vmatprep.subr.mxu0 0.0
      %1964 = vmatpush1.xpose.msra.mxu0 0.0
      %1965 = vmatprep.subr.mxu0 0.0
      %1966 = vmatpush1.xpose.msra.mxu0 0.0
      %1967 = vmatprep.subr.mxu0 0.0
      %1968 = vmatpush1.xpose.msra.mxu0 0.0
      %1969 = vmatprep.subr.mxu0 0.0
      %1970 = vmatpush1.xpose.msra.mxu0 0.0
      %1971 = vmatprep.subr.mxu0 0.0
      %1972 = vmatpush1.xpose.msra.mxu0 0.0
      %1973 = vmatprep.subr.mxu0 0.0
      %1974 = vmatpush1.xpose.msra.mxu0 0.0
      %1975 = vmatprep.subr.mxu0 0.0
      %1976 = vmatpush1.xpose.msra.mxu0 0.0
      %1977 = vmatprep.subr.mxu0 0.0
      %1978 = vmatpush1.xpose.msra.mxu0 0.0
      %1979 = vmatprep.subr.mxu0 0.0
      %1980 = vmatpush1.xpose.msra.mxu0 0.0
      %1981 = vmatprep.subr.mxu0 0.0
      %1982 = vmatpush1.xpose.msra.mxu0 0.0
      %1983 = vmatprep.subr.mxu0 0.0
      %1984 = vmatpush1.xpose.msra.mxu0 0.0
      %1985 = vmatprep.subr.mxu0 0.0
      %1986 = vmatpush1.xpose.msra.mxu0 0.0
      %1987 = vmatprep.subr.mxu0 0.0
      %1988 = vmatpush1.xpose.msra.mxu0 0.0
      %1989 = vmatprep.subr.mxu0 0.0
      %1990 = vmatpush1.xpose.msra.mxu0 0.0
      %1991 = vmatprep.subr.mxu0 0.0
      %1992 = vmatpush1.xpose.msra.mxu0 0.0
      %1993 = vmatprep.subr.mxu0 0.0
      %1994 = vmatpush1.xpose.msra.mxu0 0.0
      %1995 = vmatprep.subr.mxu0 0.0
      %1996 = vmatpush1.xpose.msra.mxu0 0.0
      %1997 = vmatprep.subr.mxu0 0.0
      %1998 = vmatpush1.xpose.msra.mxu0 0.0
      %1999 = vmatprep.subr.mxu0 0.0
      %2000 = vmatpush1.xpose.msra.mxu0 0.0
      %2001 = vmatprep.mubr.f32.mxu0 0.0
      %2002 = vmatmul.mubr.f32.gmra.mrb[0].mxu0 %v1933
      %v2003 = vpop.f32.mrb[0].mxu0
      %v2004 = vadd.f32 0.0, %v2003
      %v2005 = vpop.f32.mrb[0].mxu0
      %2006 = vdwg.mxu0
      %2008 = vrot.lane.b32.xlu0 %v1927, 96
      %v2009 = vpop.permute.xlu0 %2008
      %v2010 = vsel %vm963, %v1927, 0
      %v2012 = vsel %vm963, %v2009, 0
      %2014 = vmatprep.subr.mxu0 0.0
      %2015 = vmatpush1.xpose.msra.mxu0 %v2012
      %2016 = vmatprep.subr.mxu0 0.0
      %2017 = vmatpush1.xpose.msra.mxu0 0.0
      %2018 = vmatprep.subr.mxu0 0.0
      %2019 = vmatpush1.xpose.msra.mxu0 0.0
      %2020 = vmatprep.subr.mxu0 0.0
      %2021 = vmatpush1.xpose.msra.mxu0 0.0
      %2022 = vmatprep.subr.mxu0 0.0
      %2023 = vmatpush1.xpose.msra.mxu0 0.0
      %2024 = vmatprep.subr.mxu0 0.0
      %2025 = vmatpush1.xpose.msra.mxu0 0.0
      %2026 = vmatprep.subr.mxu0 0.0
      %2027 = vmatpush1.xpose.msra.mxu0 0.0
      %2028 = vmatprep.subr.mxu0 0.0
      %2029 = vmatpush1.xpose.msra.mxu0 0.0
      %2030 = vmatprep.subr.mxu0 0.0
      %2031 = vmatpush1.xpose.msra.mxu0 0.0
      %2032 = vmatprep.subr.mxu0 0.0
      %2033 = vmatpush1.xpose.msra.mxu0 0.0
      %2034 = vmatprep.subr.mxu0 0.0
      %2035 = vmatpush1.xpose.msra.mxu0 0.0
      %2036 = vmatprep.subr.mxu0 0.0
      %2037 = vmatpush1.xpose.msra.mxu0 0.0
      %2038 = vmatprep.subr.mxu0 0.0
      %2039 = vmatpush1.xpose.msra.mxu0 0.0
      %2040 = vmatprep.subr.mxu0 0.0
      %2041 = vmatpush1.xpose.msra.mxu0 0.0
      %2042 = vmatprep.subr.mxu0 0.0
      %2043 = vmatpush1.xpose.msra.mxu0 0.0
      %2044 = vmatprep.subr.mxu0 0.0
      %2045 = vmatpush1.xpose.msra.mxu0 0.0
      %2046 = vmatprep.subr.mxu0 0.0
      %2047 = vmatpush1.xpose.msra.mxu0 0.0
      %2048 = vmatprep.subr.mxu0 0.0
      %2049 = vmatpush1.xpose.msra.mxu0 0.0
      %2050 = vmatprep.subr.mxu0 0.0
      %2051 = vmatpush1.xpose.msra.mxu0 0.0
      %2052 = vmatprep.subr.mxu0 0.0
      %2053 = vmatpush1.xpose.msra.mxu0 0.0
      %2054 = vmatprep.subr.mxu0 0.0
      %2055 = vmatpush1.xpose.msra.mxu0 0.0
      %2056 = vmatprep.subr.mxu0 0.0
      %2057 = vmatpush1.xpose.msra.mxu0 0.0
      %2058 = vmatprep.subr.mxu0 0.0
      %2059 = vmatpush1.xpose.msra.mxu0 0.0
      %2060 = vmatprep.subr.mxu0 0.0
      %2061 = vmatpush1.xpose.msra.mxu0 0.0
      %2062 = vmatprep.subr.mxu0 0.0
      %2063 = vmatpush1.xpose.msra.mxu0 0.0
      %2064 = vmatprep.subr.mxu0 0.0
      %2065 = vmatpush1.xpose.msra.mxu0 0.0
      %2066 = vmatprep.subr.mxu0 0.0
      %2067 = vmatpush1.xpose.msra.mxu0 0.0
      %2068 = vmatprep.subr.mxu0 0.0
      %2069 = vmatpush1.xpose.msra.mxu0 0.0
      %2070 = vmatprep.subr.mxu0 0.0
      %2071 = vmatpush1.xpose.msra.mxu0 0.0
      %2072 = vmatprep.subr.mxu0 0.0
      %2073 = vmatpush1.xpose.msra.mxu0 0.0
      %2074 = vmatprep.subr.mxu0 0.0
      %2075 = vmatpush1.xpose.msra.mxu0 0.0
      %2076 = vmatprep.subr.mxu0 0.0
      %2077 = vmatpush1.xpose.msra.mxu0 0.0
      %2078 = vmatprep.mubr.f32.mxu0 0.0
      %2079 = vmatmul.mubr.f32.gmra.mrb[0].mxu0 %v2010
      %v2080 = vpop.f32.mrb[0].mxu0
      %v2081 = vadd.f32 0.0, %v2080
      %v2082 = vpop.f32.mrb[0].mxu0
      %2083 = vdwg.mxu0
      %v2084 = vmul.f32 %v2004, 0.17677669
      %v2085 = vmul.f32 %v2081, 0.17677669
      %v2086 = vadd.f32 %v2084, %v1260
      %v2087 = vadd.f32 %v2085, %v1264
      %v2088 = vsel %vm1269, %v2086, -inf
      %2089 = vmax.xlane.f32.xlu0 %v2088
      %v2090 = vpop.xlane.xlu0 %2089
      %v2091 = vsel %vm1269, %v2087, -inf
      %2092 = vmax.xlane.f32.xlu0 %v2091
      %v2093 = vpop.xlane.xlu0 %2092
      %v2094 = vsub.f32 %v2086, %v2090
      %v2095 = vsub.f32 %v2087, %v2093
      %v2096 = vmul.f32 %v2094, 1.442695
      %v2097 = vpow.pop %v2096
      %v2098 = vmul.f32 %v2095, 1.442695
      %v2099 = vpow.pop %v2098
      %v2100 = vsel %vm1269, %v2097, 0.0
      %2101 = vadd.xlane.f32.xlu0 %v2100
      %v2102 = vpop.xlane.xlu0 %2101
      %v2103 = vsel %vm1269, %v2099, 0.0
      %2104 = vadd.xlane.f32.xlu0 %v2103
      %v2105 = vpop.xlane.xlu0 %2104
      %v2106 = vrcp.pop %v2102
      %v2107 = vrcp.pop %v2105
      %v2108 = vmul.f32 %v2097, %v2106
      %v2109 = vmul.f32 %v2099, %v2107
      %2110 = vrot.lane.b32.xlu0 %v1922, 64
      %v2111 = vpop.permute.xlu0 %2110
      %v2114 = vsel %vm1269, %v2108, 0
      %2116 = vmatprep.subr.mxu0 0.0
      %2117 = vmatpush1.msra.mxu0 %v2111
      %2118 = vmatprep.subr.mxu0 0.0
      %2119 = vmatpush1.msra.mxu0 0.0
      %2120 = vmatprep.subr.mxu0 0.0
      %2121 = vmatpush1.msra.mxu0 0.0
      %2122 = vmatprep.subr.mxu0 0.0
      %2123 = vmatpush1.msra.mxu0 0.0
      %2124 = vmatprep.subr.mxu0 0.0
      %2125 = vmatpush1.msra.mxu0 0.0
      %2126 = vmatprep.subr.mxu0 0.0
      %2127 = vmatpush1.msra.mxu0 0.0
      %2128 = vmatprep.subr.mxu0 0.0
      %2129 = vmatpush1.msra.mxu0 0.0
      %2130 = vmatprep.subr.mxu0 0.0
      %2131 = vmatpush1.msra.mxu0 0.0
      %2132 = vmatprep.subr.mxu0 0.0
      %2133 = vmatpush1.msra.mxu0 0.0
      %2134 = vmatprep.subr.mxu0 0.0
      %2135 = vmatpush1.msra.mxu0 0.0
      %2136 = vmatprep.subr.mxu0 0.0
      %2137 = vmatpush1.msra.mxu0 0.0
      %2138 = vmatprep.subr.mxu0 0.0
      %2139 = vmatpush1.msra.mxu0 0.0
      %2140 = vmatprep.subr.mxu0 0.0
      %2141 = vmatpush1.msra.mxu0 0.0
      %2142 = vmatprep.subr.mxu0 0.0
      %2143 = vmatpush1.msra.mxu0 0.0
      %2144 = vmatprep.subr.mxu0 0.0
      %2145 = vmatpush1.msra.mxu0 0.0
      %2146 = vmatprep.subr.mxu0 0.0
      %2147 = vmatpush1.msra.mxu0 0.0
      %2148 = vmatprep.subr.mxu0 0.0
      %2149 = vmatpush1.msra.mxu0 0.0
      %2150 = vmatprep.subr.mxu0 0.0
      %2151 = vmatpush1.msra.mxu0 0.0
      %2152 = vmatprep.subr.mxu0 0.0
      %2153 = vmatpush1.msra.mxu0 0.0
      %2154 = vmatprep.subr.mxu0 0.0
      %2155 = vmatpush1.msra.mxu0 0.0
      %2156 = vmatprep.subr.mxu0 0.0
      %2157 = vmatpush1.msra.mxu0 0.0
      %2158 = vmatprep.subr.mxu0 0.0
      %2159 = vmatpush1.msra.mxu0 0.0
      %2160 = vmatprep.subr.mxu0 0.0
      %2161 = vmatpush1.msra.mxu0 0.0
      %2162 = vmatprep.subr.mxu0 0.0
      %2163 = vmatpush1.msra.mxu0 0.0
      %2164 = vmatprep.subr.mxu0 0.0
      %2165 = vmatpush1.msra.mxu0 0.0
      %2166 = vmatprep.subr.mxu0 0.0
      %2167 = vmatpush1.msra.mxu0 0.0
      %2168 = vmatprep.subr.mxu0 0.0
      %2169 = vmatpush1.msra.mxu0 0.0
      %2170 = vmatprep.subr.mxu0 0.0
      %2171 = vmatpush1.msra.mxu0 0.0
      %2172 = vmatprep.subr.mxu0 0.0
      %2173 = vmatpush1.msra.mxu0 0.0
      %2174 = vmatprep.subr.mxu0 0.0
      %2175 = vmatpush1.msra.mxu0 0.0
      %2176 = vmatprep.subr.mxu0 0.0
      %2177 = vmatpush1.msra.mxu0 0.0
      %2178 = vmatprep.subr.mxu0 0.0
      %2179 = vmatpush1.msra.mxu0 0.0
      %2180 = vmatprep.mubr.f32.mxu0 0.0
      %2181 = vmatmul.mubr.f32.gmra.mrb[0].mxu0 %v2114
      %v2182 = vpop.f32.mrb[0].mxu0
      %v2183 = vadd.f32 0.0, %v2182
      %v2184 = vpop.f32.mrb[0].mxu0
      %2185 = vdwg.mxu0
      %2186 = vrot.lane.b32.xlu0 %v1927, 64
      %v2187 = vpop.permute.xlu0 %2186
      %v2190 = vsel %vm1269, %v2109, 0
      %2192 = vmatprep.subr.mxu0 0.0
      %2193 = vmatpush1.msra.mxu0 %v2187
      %2194 = vmatprep.subr.mxu0 0.0
      %2195 = vmatpush1.msra.mxu0 0.0
      %2196 = vmatprep.subr.mxu0 0.0
      %2197 = vmatpush1.msra.mxu0 0.0
      %2198 = vmatprep.subr.mxu0 0.0
      %2199 = vmatpush1.msra.mxu0 0.0
      %2200 = vmatprep.subr.mxu0 0.0
      %2201 = vmatpush1.msra.mxu0 0.0
      %2202 = vmatprep.subr.mxu0 0.0
      %2203 = vmatpush1.msra.mxu0 0.0
      %2204 = vmatprep.subr.mxu0 0.0
      %2205 = vmatpush1.msra.mxu0 0.0
      %2206 = vmatprep.subr.mxu0 0.0
      %2207 = vmatpush1.msra.mxu0 0.0
      %2208 = vmatprep.subr.mxu0 0.0
      %2209 = vmatpush1.msra.mxu0 0.0
      %2210 = vmatprep.subr.mxu0 0.0
      %2211 = vmatpush1.msra.mxu0 0.0
      %2212 = vmatprep.subr.mxu0 0.0
      %2213 = vmatpush1.msra.mxu0 0.0
      %2214 = vmatprep.subr.mxu0 0.0
      %2215 = vmatpush1.msra.mxu0 0.0
      %2216 = vmatprep.subr.mxu0 0.0
      %2217 = vmatpush1.msra.mxu0 0.0
      %2218 = vmatprep.subr.mxu0 0.0
      %2219 = vmatpush1.msra.mxu0 0.0
      %2220 = vmatprep.subr.mxu0 0.0
      %2221 = vmatpush1.msra.mxu0 0.0
      %2222 = vmatprep.subr.mxu0 0.0
      %2223 = vmatpush1.msra.mxu0 0.0
      %2224 = vmatprep.subr.mxu0 0.0
      %2225 = vmatpush1.msra.mxu0 0.0
      %2226 = vmatprep.subr.mxu0 0.0
      %2227 = vmatpush1.msra.mxu0 0.0
      %2228 = vmatprep.subr.mxu0 0.0
      %2229 = vmatpush1.msra.mxu0 0.0
      %2230 = vmatprep.subr.mxu0 0.0
      %2231 = vmatpush1.msra.mxu0 0.0
      %2232 = vmatprep.subr.mxu0 0.0
      %2233 = vmatpush1.msra.mxu0 0.0
      %2234 = vmatprep.subr.mxu0 0.0
      %2235 = vmatpush1.msra.mxu0 0.0
      %2236 = vmatprep.subr.mxu0 0.0
      %2237 = vmatpush1.msra.mxu0 0.0
      %2238 = vmatprep.subr.mxu0 0.0
      %2239 = vmatpush1.msra.mxu0 0.0
      %2240 = vmatprep.subr.mxu0 0.0
      %2241 = vmatpush1.msra.mxu0 0.0
      %2242 = vmatprep.subr.mxu0 0.0
      %2243 = vmatpush1.msra.mxu0 0.0
      %2244 = vmatprep.subr.mxu0 0.0
      %2245 = vmatpush1.msra.mxu0 0.0
      %2246 = vmatprep.subr.mxu0 0.0
      %2247 = vmatpush1.msra.mxu0 0.0
      %2248 = vmatprep.subr.mxu0 0.0
      %2249 = vmatpush1.msra.mxu0 0.0
      %2250 = vmatprep.subr.mxu0 0.0
      %2251 = vmatpush1.msra.mxu0 0.0
      %2252 = vmatprep.subr.mxu0 0.0
      %2253 = vmatpush1.msra.mxu0 0.0
      %2254 = vmatprep.subr.mxu0 0.0
      %2255 = vmatpush1.msra.mxu0 0.0
      %2256 = vmatprep.mubr.f32.mxu0 0.0
      %2257 = vmatmul.mubr.f32.gmra.mrb[0].mxu0 %v2190
      %v2258 = vpop.f32.mrb[0].mxu0
      %v2259 = vadd.f32 0.0, %v2258
      %v2260 = vpop.f32.mrb[0].mxu0
      %2261 = vdwg.mxu0
      %s2262 = scalar_lea.vmem %s898, 32
      %v2263 = vld [vmem:[%s2262] sm:$0xff]
      %v2264 = vld [vmem:[%s2262 + $0x8] sm:$0xff]
      %v2265 = vld [vmem:[%s2262 + $0x10] sm:$0xff]
      %v2266 = vld [vmem:[%s2262 + $0x18] sm:$0xff]
      %s2267 = scalar_lea.vmem %s902, 1
      %v2268 = vld [vmem:[%s2267] sm:$0x1]
      %v2270 = vlaneseq
      %v2271 = vshrl.u32 %v2270, 7
      %v2272 = vsub.s32 0, %v2271
      %v2273 = vrot.slane %v2268, %v2272
      %v2276 = vsel %vm963, %v2183, 0
      %v2279 = vsel %vm963, %v2259, 0
      %2281 = vmatprep.subr.mxu0 0.0
      %2282 = vmatpush1.msra.mxu0 %v2263
      %2283 = vmatprep.subr.mxu0 0.0
      %2284 = vmatpush1.msra.mxu0 %v2264
      %2285 = vmatprep.subr.mxu0 0.0
      %2286 = vmatpush1.msra.mxu0 %v2265
      %2287 = vmatprep.subr.mxu0 0.0
      %2288 = vmatpush1.msra.mxu0 %v2266
      %2289 = vmatprep.subr.mxu0 0.0
      %2290 = vmatpush1.msra.mxu0 0.0
      %2291 = vmatprep.subr.mxu0 0.0
      %2292 = vmatpush1.msra.mxu0 0.0
      %2293 = vmatprep.subr.mxu0 0.0
      %2294 = vmatpush1.msra.mxu0 0.0
      %2295 = vmatprep.subr.mxu0 0.0
      %2296 = vmatpush1.msra.mxu0 0.0
      %2297 = vmatprep.subr.mxu0 0.0
      %2298 = vmatpush1.msra.mxu0 0.0
      %2299 = vmatprep.subr.mxu0 0.0
      %2300 = vmatpush1.msra.mxu0 0.0
      %2301 = vmatprep.subr.mxu0 0.0
      %2302 = vmatpush1.msra.mxu0 0.0
      %2303 = vmatprep.subr.mxu0 0.0
      %2304 = vmatpush1.msra.mxu0 0.0
      %2305 = vmatprep.subr.mxu0 0.0
      %2306 = vmatpush1.msra.mxu0 0.0
      %2307 = vmatprep.subr.mxu0 0.0
      %2308 = vmatpush1.msra.mxu0 0.0
      %2309 = vmatprep.subr.mxu0 0.0
      %2310 = vmatpush1.msra.mxu0 0.0
      %2311 = vmatprep.subr.mxu0 0.0
      %2312 = vmatpush1.msra.mxu0 0.0
      %2313 = vmatprep.subr.mxu0 0.0
      %2314 = vmatpush1.msra.mxu0 0.0
      %2315 = vmatprep.subr.mxu0 0.0
      %2316 = vmatpush1.msra.mxu0 0.0
      %2317 = vmatprep.subr.mxu0 0.0
      %2318 = vmatpush1.msra.mxu0 0.0
      %2319 = vmatprep.subr.mxu0 0.0
      %2320 = vmatpush1.msra.mxu0 0.0
      %2321 = vmatprep.subr.mxu0 0.0
      %2322 = vmatpush1.msra.mxu0 0.0
      %2323 = vmatprep.subr.mxu0 0.0
      %2324 = vmatpush1.msra.mxu0 0.0
      %2325 = vmatprep.subr.mxu0 0.0
      %2326 = vmatpush1.msra.mxu0 0.0
      %2327 = vmatprep.subr.mxu0 0.0
      %2328 = vmatpush1.msra.mxu0 0.0
      %2329 = vmatprep.subr.mxu0 0.0
      %2330 = vmatpush1.msra.mxu0 0.0
      %2331 = vmatprep.subr.mxu0 0.0
      %2332 = vmatpush1.msra.mxu0 0.0
      %2333 = vmatprep.subr.mxu0 0.0
      %2334 = vmatpush1.msra.mxu0 0.0
      %2335 = vmatprep.subr.mxu0 0.0
      %2336 = vmatpush1.msra.mxu0 0.0
      %2337 = vmatprep.subr.mxu0 0.0
      %2338 = vmatpush1.msra.mxu0 0.0
      %2339 = vmatprep.subr.mxu0 0.0
      %2340 = vmatpush1.msra.mxu0 0.0
      %2341 = vmatprep.subr.mxu0 0.0
      %2342 = vmatpush1.msra.mxu0 0.0
      %2343 = vmatprep.subr.mxu0 0.0
      %2344 = vmatpush1.msra.mxu0 0.0
      %2345 = vmatprep.mubr.f32.mxu0 0.0
      %2346 = vmatmul.mubr.f32.gmra.mrb[0].mxu0 %v2276
      %v2347 = vpop.f32.mrb[0].mxu0
      %v2348 = vadd.f32 %v2273, %v2347
      %v2349 = vpop.f32.mrb[0].mxu0
      %2350 = vmatprep.mubr.f32.mxu0 0.0
      %2351 = vmatmul.mubr.f32.gmra.mrb[0].mxu0 %v2279
      %v2352 = vpop.f32.mrb[0].mxu0
      %v2353 = vadd.f32 %v2273, %v2352
      %v2354 = vpop.f32.mrb[0].mxu0
      %2355 = vdwg.mxu0
      %v2356 = vadd.f32 %v1834, %v2348
      %v2357 = vadd.f32 %v1835, %v2353
      %s2358 = scalar_lea.vmem %s906, 1
      %v2359 = vld [vmem:[%s2358] sm:$0x1]
      %s2360 = scalar_lea.vmem %s910, 1
      %v2361 = vld [vmem:[%s2360] sm:$0x1]
      %v2362 = vsel %vm963, %v2356, 0.0
      %2363 = vadd.xlane.f32.xlu0 %v2362
      %v2364 = vpop.xlane.xlu0 %2363
      %v2365 = vsel %vm963, %v2357, 0.0
      %2366 = vadd.xlane.f32.xlu0 %v2365
      %v2367 = vpop.xlane.xlu0 %2366
      %v2368 = vmul.f32 %v2364, %v970
      %v2369 = vmul.f32 %v2367, %v970
      %v2370 = vsub.f32 %v2356, %v2368
      %v2371 = vsub.f32 %v2357, %v2369
      %v2372 = vmul.f32 %v2370, %v2370
      %v2373 = vmul.f32 %v2371, %v2371
      %v2374 = vsel %vm963, %v2372, 0.0
      %2375 = vadd.xlane.f32.xlu0 %v2374
      %v2376 = vpop.xlane.xlu0 %2375
      %v2377 = vsel %vm963, %v2373, 0.0
      %2378 = vadd.xlane.f32.xlu0 %v2377
      %v2379 = vpop.xlane.xlu0 %2378
      %v2380 = vmul.f32 %v2376, %v970
      %v2381 = vmul.f32 %v2379, %v970
      %v2382 = vadd.f32 %v2380, 1e-12
      %v2383 = vadd.f32 %v2381, 1e-12
      %v2384 = vrsqrt.pop %v2382
      %v2385 = vrsqrt.pop %v2383
      %v2386 = vmul.f32 %v2370, %v2384
      %v2387 = vmul.f32 %v2371, %v2385
      %v2389 = vlaneseq
      %v2390 = vshrl.u32 %v2389, 7
      %v2391 = vsub.s32 0, %v2390
      %v2392 = vrot.slane %v2359, %v2391
      %v2394 = vmul.f32 %v2386, %v2392
      %v2395 = vmul.f32 %v2387, %v2392
      %v2397 = vlaneseq
      %v2398 = vshrl.u32 %v2397, 7
      %v2399 = vsub.s32 0, %v2398
      %v2400 = vrot.slane %v2361, %v2399
      %v2402 = vadd.f32 %v2394, %v2400
      %v2403 = vadd.f32 %v2395, %v2400
      %s2404 = scalar_lea.vmem %s915, 32
      %v2405 = vld [vmem:[%s2404] sm:$0xff]
      %v2406 = vld [vmem:[%s2404 + $0x8] sm:$0xff]
      %v2407 = vld [vmem:[%s2404 + $0x10] sm:$0xff]
      %v2408 = vld [vmem:[%s2404 + $0x18] sm:$0xff]
      %s2409 = scalar_lea.vmem %s919, 1
      %v2410 = vld [vmem:[%s2409] sm:$0x1]
      %v2412 = vlaneseq
      %v2413 = vshrl.u32 %v2412, 7
      %v2414 = vsub.s32 0, %v2413
      %v2415 = vrot.slane %v2410, %v2414
      %v2418 = vsel %vm963, %v2402, 0
      %v2421 = vsel %vm963, %v2403, 0
      %2423 = vmatprep.subr.mxu0 0.0
      %2424 = vmatpush1.msra.mxu0 %v2405
      %2425 = vmatprep.subr.mxu0 0.0
      %2426 = vmatpush1.msra.mxu0 %v2406
      %2427 = vmatprep.subr.mxu0 0.0
      %2428 = vmatpush1.msra.mxu0 %v2407
      %2429 = vmatprep.subr.mxu0 0.0
      %2430 = vmatpush1.msra.mxu0 %v2408
      %2431 = vmatprep.subr.mxu0 0.0
      %2432 = vmatpush1.msra.mxu0 0.0
      %2433 = vmatprep.subr.mxu0 0.0
      %2434 = vmatpush1.msra.mxu0 0.0
      %2435 = vmatprep.subr.mxu0 0.0
      %2436 = vmatpush1.msra.mxu0 0.0
      %2437 = vmatprep.subr.mxu0 0.0
      %2438 = vmatpush1.msra.mxu0 0.0
      %2439 = vmatprep.subr.mxu0 0.0
      %2440 = vmatpush1.msra.mxu0 0.0
      %2441 = vmatprep.subr.mxu0 0.0
      %2442 = vmatpush1.msra.mxu0 0.0
      %2443 = vmatprep.subr.mxu0 0.0
      %2444 = vmatpush1.msra.mxu0 0.0
      %2445 = vmatprep.subr.mxu0 0.0
      %2446 = vmatpush1.msra.mxu0 0.0
      %2447 = vmatprep.subr.mxu0 0.0
      %2448 = vmatpush1.msra.mxu0 0.0
      %2449 = vmatprep.subr.mxu0 0.0
      %2450 = vmatpush1.msra.mxu0 0.0
      %2451 = vmatprep.subr.mxu0 0.0
      %2452 = vmatpush1.msra.mxu0 0.0
      %2453 = vmatprep.subr.mxu0 0.0
      %2454 = vmatpush1.msra.mxu0 0.0
      %2455 = vmatprep.subr.mxu0 0.0
      %2456 = vmatpush1.msra.mxu0 0.0
      %2457 = vmatprep.subr.mxu0 0.0
      %2458 = vmatpush1.msra.mxu0 0.0
      %2459 = vmatprep.subr.mxu0 0.0
      %2460 = vmatpush1.msra.mxu0 0.0
      %2461 = vmatprep.subr.mxu0 0.0
      %2462 = vmatpush1.msra.mxu0 0.0
      %2463 = vmatprep.subr.mxu0 0.0
      %2464 = vmatpush1.msra.mxu0 0.0
      %2465 = vmatprep.subr.mxu0 0.0
      %2466 = vmatpush1.msra.mxu0 0.0
      %2467 = vmatprep.subr.mxu0 0.0
      %2468 = vmatpush1.msra.mxu0 0.0
      %2469 = vmatprep.subr.mxu0 0.0
      %2470 = vmatpush1.msra.mxu0 0.0
      %2471 = vmatprep.subr.mxu0 0.0
      %2472 = vmatpush1.msra.mxu0 0.0
      %2473 = vmatprep.subr.mxu0 0.0
      %2474 = vmatpush1.msra.mxu0 0.0
      %2475 = vmatprep.subr.mxu0 0.0
      %2476 = vmatpush1.msra.mxu0 0.0
      %2477 = vmatprep.subr.mxu0 0.0
      %2478 = vmatpush1.msra.mxu0 0.0
      %2479 = vmatprep.subr.mxu0 0.0
      %2480 = vmatpush1.msra.mxu0 0.0
      %2481 = vmatprep.subr.mxu0 0.0
      %2482 = vmatpush1.msra.mxu0 0.0
      %2483 = vmatprep.subr.mxu0 0.0
      %2484 = vmatpush1.msra.mxu0 0.0
      %2485 = vmatprep.subr.mxu0 0.0
      %2486 = vmatpush1.msra.mxu0 0.0
      %2487 = vmatprep.mubr.f32.mxu0 0.0
      %2488 = vmatmul.mubr.f32.gmra.mrb[0].mxu0 %v2418
      %v2489 = vpop.f32.mrb[0].mxu0
      %v2490 = vadd.f32 %v2415, %v2489
      %v2491 = vpop.f32.mrb[0].mxu0
      %2492 = vmatprep.mubr.f32.mxu0 0.0
      %2493 = vmatmul.mubr.f32.gmra.mrb[0].mxu0 %v2421
      %v2494 = vpop.f32.mrb[0].mxu0
      %v2495 = vadd.f32 %v2415, %v2494
      %v2496 = vpop.f32.mrb[0].mxu0
      %2497 = vdwg.mxu0
      %v2498 = vmul.f32 %v2490, 0.5
      %v2499 = vmul.f32 %v2495, 0.5
      %v2500 = vmul.f32 %v2490, 0.044715
      %v2501 = vmul.f32 %v2495, 0.044715
      %v2502 = vmul.f32 %v2500, %v2490
      %v2503 = vmul.f32 %v2501, %v2495
      %v2504 = vmul.f32 %v2502, %v2490
      %v2505 = vmul.f32 %v2503, %v2495
      %v2506 = vadd.f32 %v2490, %v2504
      %v2507 = vadd.f32 %v2495, %v2505
      %v2508 = vmul.f32 %v2506, 0.7978846
      %v2509 = vmul.f32 %v2507, 0.7978846
      %v2510 = vtanh.pop %v2508
      %v2511 = vtanh.pop %v2509
      %v2512 = vadd.f32 %v2510, 1.0
      %v2513 = vadd.f32 %v2511, 1.0
      %v2514 = vmul.f32 %v2498, %v2512
      %v2515 = vmul.f32 %v2499, %v2513
      %s2516 = scalar_lea.vmem %s924, 128
      %v2517 = vld [vmem:[%s2516] sm:$0xff]
      %v2518 = vld [vmem:[%s2516 + $0x8] sm:$0xff]
      %v2519 = vld [vmem:[%s2516 + $0x10] sm:$0xff]
      %v2520 = vld [vmem:[%s2516 + $0x18] sm:$0xff]
      %v2521 = vld [vmem:[%s2516 + $0x20] sm:$0xff]
      %v2522 = vld [vmem:[%s2516 + $0x28] sm:$0xff]
      %v2523 = vld [vmem:[%s2516 + $0x30] sm:$0xff]
      %v2524 = vld [vmem:[%s2516 + $0x38] sm:$0xff]
      %v2525 = vld [vmem:[%s2516 + $0x40] sm:$0xff]
      %v2526 = vld [vmem:[%s2516 + $0x48] sm:$0xff]
      %v2527 = vld [vmem:[%s2516 + $0x50] sm:$0xff]
      %v2528 = vld [vmem:[%s2516 + $0x58] sm:$0xff]
      %v2529 = vld [vmem:[%s2516 + $0x60] sm:$0xff]
      %v2530 = vld [vmem:[%s2516 + $0x68] sm:$0xff]
      %v2531 = vld [vmem:[%s2516 + $0x70] sm:$0xff]
      %v2532 = vld [vmem:[%s2516 + $0x78] sm:$0xff]
      %s2533 = scalar_lea.vmem %s928, 1
      %v2534 = vld [vmem:[%s2533] sm:$0x1]
      %v2536 = vlaneseq
      %v2537 = vshrl.u32 %v2536, 7
      %v2538 = vsub.s32 0, %v2537
      %v2539 = vrot.slane %v2534, %v2538
      %2541 = vmatprep.subr.mxu0 0.0
      %2542 = vmatpush1.msra.mxu0 %v2517
      %2543 = vmatprep.subr.mxu0 0.0
      %2544 = vmatpush1.msra.mxu0 %v2518
      %2545 = vmatprep.subr.mxu0 0.0
      %2546 = vmatpush1.msra.mxu0 %v2519
      %2547 = vmatprep.subr.mxu0 0.0
      %2548 = vmatpush1.msra.mxu0 %v2520
      %2549 = vmatprep.subr.mxu0 0.0
      %2550 = vmatpush1.msra.mxu0 %v2521
      %2551 = vmatprep.subr.mxu0 0.0
      %2552 = vmatpush1.msra.mxu0 %v2522
      %2553 = vmatprep.subr.mxu0 0.0
      %2554 = vmatpush1.msra.mxu0 %v2523
      %2555 = vmatprep.subr.mxu0 0.0
      %2556 = vmatpush1.msra.mxu0 %v2524
      %2557 = vmatprep.subr.mxu0 0.0
      %2558 = vmatpush1.msra.mxu0 %v2525
      %2559 = vmatprep.subr.mxu0 0.0
      %2560 = vmatpush1.msra.mxu0 %v2526
      %2561 = vmatprep.subr.mxu0 0.0
      %2562 = vmatpush1.msra.mxu0 %v2527
      %2563 = vmatprep.subr.mxu0 0.0
      %2564 = vmatpush1.msra.mxu0 %v2528
      %2565 = vmatprep.subr.mxu0 0.0
      %2566 = vmatpush1.msra.mxu0 %v2529
      %2567 = vmatprep.subr.mxu0 0.0
      %2568 = vmatpush1.msra.mxu0 %v2530
      %2569 = vmatprep.subr.mxu0 0.0
      %2570 = vmatpush1.msra.mxu0 %v2531
      %2571 = vmatprep.subr.mxu0 0.0
      %2572 = vmatpush1.msra.mxu0 %v2532
      %2573 = vmatprep.subr.mxu0 0.0
      %2574 = vmatpush1.msra.mxu0 0.0
      %2575 = vmatprep.subr.mxu0 0.0
      %2576 = vmatpush1.msra.mxu0 0.0
      %2577 = vmatprep.subr.mxu0 0.0
      %2578 = vmatpush1.msra.mxu0 0.0
      %2579 = vmatprep.subr.mxu0 0.0
      %2580 = vmatpush1.msra.mxu0 0.0
      %2581 = vmatprep.subr.mxu0 0.0
      %2582 = vmatpush1.msra.mxu0 0.0
      %2583 = vmatprep.subr.mxu0 0.0
      %2584 = vmatpush1.msra.mxu0 0.0
      %2585 = vmatprep.subr.mxu0 0.0
      %2586 = vmatpush1.msra.mxu0 0.0
      %2587 = vmatprep.subr.mxu0 0.0
      %2588 = vmatpush1.msra.mxu0 0.0
      %2589 = vmatprep.subr.mxu0 0.0
      %2590 = vmatpush1.msra.mxu0 0.0
      %2591 = vmatprep.subr.mxu0 0.0
      %2592 = vmatpush1.msra.mxu0 0.0
      %2593 = vmatprep.subr.mxu0 0.0
      %2594 = vmatpush1.msra.mxu0 0.0
      %2595 = vmatprep.subr.mxu0 0.0
      %2596 = vmatpush1.msra.mxu0 0.0
      %2597 = vmatprep.subr.mxu0 0.0
      %2598 = vmatpush1.msra.mxu0 0.0
      %2599 = vmatprep.subr.mxu0 0.0
      %2600 = vmatpush1.msra.mxu0 0.0
      %2601 = vmatprep.subr.mxu0 0.0
      %2602 = vmatpush1.msra.mxu0 0.0
      %2603 = vmatprep.subr.mxu0 0.0
      %2604 = vmatpush1.msra.mxu0 0.0
      %2605 = vmatprep.mubr.f32.mxu0 0.0
      %2606 = vmatmul.mubr.f32.gmra.mrb[0].mxu0 %v2514
      %v2607 = vpop.f32.mrb[0].mxu0
      %v2608 = vadd.f32 %v2539, %v2607
      %v2609 = vpop.f32.mrb[0].mxu0
      %2610 = vmatprep.mubr.f32.mxu0 0.0
      %2611 = vmatmul.mubr.f32.gmra.mrb[0].mxu0 %v2515
      %v2612 = vpop.f32.mrb[0].mxu0
      %v2613 = vadd.f32 %v2539, %v2612
      %v2614 = vpop.f32.mrb[0].mxu0
      %2615 = vdwg.mxu0
      %v2616 = vadd.f32 %v2402, %v2608
      %v2617 = vadd.f32 %v2403, %v2613
      %s2618 = scalar_lea.vmem %s932, 1
      %v2619 = vld [vmem:[%s2618] sm:$0x1]
      %s2620 = scalar_lea.vmem %s936, 1
      %v2621 = vld [vmem:[%s2620] sm:$0x1]
      %v2622 = vsel %vm963, %v2616, 0.0
      %2623 = vadd.xlane.f32.xlu0 %v2622
      %v2624 = vpop.xlane.xlu0 %2623
      %v2625 = vsel %vm963, %v2617, 0.0
      %2626 = vadd.xlane.f32.xlu0 %v2625
      %v2627 = vpop.xlane.xlu0 %2626
      %v2628 = vmul.f32 %v2624, %v970
      %v2629 = vmul.f32 %v2627, %v970
      %v2630 = vsub.f32 %v2616, %v2628
      %v2631 = vsub.f32 %v2617, %v2629
      %v2632 = vmul.f32 %v2630, %v2630
      %v2633 = vmul.f32 %v2631, %v2631
      %v2634 = vsel %vm963, %v2632, 0.0
      %2635 = vadd.xlane.f32.xlu0 %v2634
      %v2636 = vpop.xlane.xlu0 %2635
      %v2637 = vsel %vm963, %v2633, 0.0
      %2638 = vadd.xlane.f32.xlu0 %v2637
      %v2639 = vpop.xlane.xlu0 %2638
      %v2640 = vmul.f32 %v2636, %v970
      %v2641 = vmul.f32 %v2639, %v970
      %v2642 = vadd.f32 %v2640, 1e-12
      %v2643 = vadd.f32 %v2641, 1e-12
      %v2644 = vrsqrt.pop %v2642
      %v2645 = vrsqrt.pop %v2643
      %v2646 = vmul.f32 %v2630, %v2644
      %v2647 = vmul.f32 %v2631, %v2645
      %v2649 = vlaneseq
      %v2650 = vshrl.u32 %v2649, 7
      %v2651 = vsub.s32 0, %v2650
      %v2652 = vrot.slane %v2619, %v2651
      %v2654 = vmul.f32 %v2646, %v2652
      %v2655 = vmul.f32 %v2647, %v2652
      %v2657 = vlaneseq
      %v2658 = vshrl.u32 %v2657, 7
      %v2659 = vsub.s32 0, %v2658
      %v2660 = vrot.slane %v2621, %v2659
      %v2662 = vadd.f32 %v2654, %v2660
      %v2663 = vadd.f32 %v2655, %v2660
      %v2664 = vld [vmem:[%s941] sm:$0xff]
      %v2665 = vld [vmem:[%s941 + $0x8] sm:$0xff]
      %v2666 = vld [vmem:[%s941 + $0x10] sm:$0xff]
      %v2667 = vld [vmem:[%s941 + $0x18] sm:$0xff]
      %v2668 = vld [vmem:[%s944] sm:$0x1]
      %v2670 = vlaneseq
      %v2671 = vshrl.u32 %v2670, 7
      %v2672 = vsub.s32 0, %v2671
      %v2673 = vrot.slane %v2668, %v2672
      %v2677 = vrot.slane %v2663, 7
      %vm2678 = vcmask 1041409
      %v2679 = vsel %vm2678, %v2677, %v2662
      %v2680 = vsel %vm963, %v2679, 0
      %2682 = vmatprep.subr.mxu0 0.0
      %2683 = vmatpush1.msra.mxu0 %v2664
      %2684 = vmatprep.subr.mxu0 0.0
      %2685 = vmatpush1.msra.mxu0 %v2665
      %2686 = vmatprep.subr.mxu0 0.0
      %2687 = vmatpush1.msra.mxu0 %v2666
      %2688 = vmatprep.subr.mxu0 0.0
      %2689 = vmatpush1.msra.mxu0 %v2667
      %2690 = vmatprep.subr.mxu0 0.0
      %2691 = vmatpush1.msra.mxu0 0.0
      %2692 = vmatprep.subr.mxu0 0.0
      %2693 = vmatpush1.msra.mxu0 0.0
      %2694 = vmatprep.subr.mxu0 0.0
      %2695 = vmatpush1.msra.mxu0 0.0
      %2696 = vmatprep.subr.mxu0 0.0
      %2697 = vmatpush1.msra.mxu0 0.0
      %2698 = vmatprep.subr.mxu0 0.0
      %2699 = vmatpush1.msra.mxu0 0.0
      %2700 = vmatprep.subr.mxu0 0.0
      %2701 = vmatpush1.msra.mxu0 0.0
      %2702 = vmatprep.subr.mxu0 0.0
      %2703 = vmatpush1.msra.mxu0 0.0
      %2704 = vmatprep.subr.mxu0 0.0
      %2705 = vmatpush1.msra.mxu0 0.0
      %2706 = vmatprep.subr.mxu0 0.0
      %2707 = vmatpush1.msra.mxu0 0.0
      %2708 = vmatprep.subr.mxu0 0.0
      %2709 = vmatpush1.msra.mxu0 0.0
      %2710 = vmatprep.subr.mxu0 0.0
      %2711 = vmatpush1.msra.mxu0 0.0
      %2712 = vmatprep.subr.mxu0 0.0
      %2713 = vmatpush1.msra.mxu0 0.0
      %2714 = vmatprep.subr.mxu0 0.0
      %2715 = vmatpush1.msra.mxu0 0.0
      %2716 = vmatprep.subr.mxu0 0.0
      %2717 = vmatpush1.msra.mxu0 0.0
      %2718 = vmatprep.subr.mxu0 0.0
      %2719 = vmatpush1.msra.mxu0 0.0
      %2720 = vmatprep.subr.mxu0 0.0
      %2721 = vmatpush1.msra.mxu0 0.0
      %2722 = vmatprep.subr.mxu0 0.0
      %2723 = vmatpush1.msra.mxu0 0.0
      %2724 = vmatprep.subr.mxu0 0.0
      %2725 = vmatpush1.msra.mxu0 0.0
      %2726 = vmatprep.subr.mxu0 0.0
      %2727 = vmatpush1.msra.mxu0 0.0
      %2728 = vmatprep.subr.mxu0 0.0
      %2729 = vmatpush1.msra.mxu0 0.0
      %2730 = vmatprep.subr.mxu0 0.0
      %2731 = vmatpush1.msra.mxu0 0.0
      %2732 = vmatprep.subr.mxu0 0.0
      %2733 = vmatpush1.msra.mxu0 0.0
      %2734 = vmatprep.subr.mxu0 0.0
      %2735 = vmatpush1.msra.mxu0 0.0
      %2736 = vmatprep.subr.mxu0 0.0
      %2737 = vmatpush1.msra.mxu0 0.0
      %2738 = vmatprep.subr.mxu0 0.0
      %2739 = vmatpush1.msra.mxu0 0.0
      %2740 = vmatprep.subr.mxu0 0.0
      %2741 = vmatpush1.msra.mxu0 0.0
      %2742 = vmatprep.subr.mxu0 0.0
      %2743 = vmatpush1.msra.mxu0 0.0
      %2744 = vmatprep.subr.mxu0 0.0
      %2745 = vmatpush1.msra.mxu0 0.0
      %2746 = vmatprep.mubr.f32.mxu0 0.0
      %2747 = vmatmul.mubr.f32.gmra.mrb[0].mxu0 %v2680
      %v2748 = vpop.f32.mrb[0].mxu0
      %v2749 = vadd.f32 %v2673, %v2748
      %v2750 = vpop.f32.mrb[0].mxu0
      %2751 = vdwg.mxu0
      %p2752 = scmp.eq.s32.totalorder %s31, 0
      %v2753 = vmax.f32 %v2749, 0.0
      %v2754 = vtanh.pop %v2749
      %s2755 = scalar_select %p2752, 1, 0
      %v2756 = vstv %s2755
      %vm2757 = vcmp.eq.s32.totalorder %v2756, 1
      %v2758 = vsel %vm2757, %v2753, %v2754
      %v2759 = vld [vmem:[%s949] sm:$0xff]
      %v2760 = vld [vmem:[%s949 + $0x8] sm:$0xff]
      %v2761 = vld [vmem:[%s949 + $0x10] sm:$0xff]
      %v2762 = vld [vmem:[%s949 + $0x18] sm:$0xff]
      %v2763 = vld [vmem:[%s952] sm:$0x1]
      %v2765 = vlaneseq
      %v2766 = vshrl.u32 %v2765, 7
      %v2767 = vsub.s32 0, %v2766
      %v2768 = vrot.slane %v2763, %v2767
      %v2771 = vsel %vm963, %v2758, 0
      %2773 = vmatprep.subr.mxu0 0.0
      %2774 = vmatpush1.msra.mxu0 %v2759
      %2775 = vmatprep.subr.mxu0 0.0
      %2776 = vmatpush1.msra.mxu0 %v2760
      %2777 = vmatprep.subr.mxu0 0.0
      %2778 = vmatpush1.msra.mxu0 %v2761
      %2779 = vmatprep.subr.mxu0 0.0
      %2780 = vmatpush1.msra.mxu0 %v2762
      %2781 = vmatprep.subr.mxu0 0.0
      %2782 = vmatpush1.msra.mxu0 0.0
      %2783 = vmatprep.subr.mxu0 0.0
      %2784 = vmatpush1.msra.mxu0 0.0
      %2785 = vmatprep.subr.mxu0 0.0
      %2786 = vmatpush1.msra.mxu0 0.0
      %2787 = vmatprep.subr.mxu0 0.0
      %2788 = vmatpush1.msra.mxu0 0.0
      %2789 = vmatprep.subr.mxu0 0.0
      %2790 = vmatpush1.msra.mxu0 0.0
      %2791 = vmatprep.subr.mxu0 0.0
      %2792 = vmatpush1.msra.mxu0 0.0
      %2793 = vmatprep.subr.mxu0 0.0
      %2794 = vmatpush1.msra.mxu0 0.0
      %2795 = vmatprep.subr.mxu0 0.0
      %2796 = vmatpush1.msra.mxu0 0.0
      %2797 = vmatprep.subr.mxu0 0.0
      %2798 = vmatpush1.msra.mxu0 0.0
      %2799 = vmatprep.subr.mxu0 0.0
      %2800 = vmatpush1.msra.mxu0 0.0
      %2801 = vmatprep.subr.mxu0 0.0
      %2802 = vmatpush1.msra.mxu0 0.0
      %2803 = vmatprep.subr.mxu0 0.0
      %2804 = vmatpush1.msra.mxu0 0.0
      %2805 = vmatprep.subr.mxu0 0.0
      %2806 = vmatpush1.msra.mxu0 0.0
      %2807 = vmatprep.subr.mxu0 0.0
      %2808 = vmatpush1.msra.mxu0 0.0
      %2809 = vmatprep.subr.mxu0 0.0
      %2810 = vmatpush1.msra.mxu0 0.0
      %2811 = vmatprep.subr.mxu0 0.0
      %2812 = vmatpush1.msra.mxu0 0.0
      %2813 = vmatprep.subr.mxu0 0.0
      %2814 = vmatpush1.msra.mxu0 0.0
      %2815 = vmatprep.subr.mxu0 0.0
      %2816 = vmatpush1.msra.mxu0 0.0
      %2817 = vmatprep.subr.mxu0 0.0
      %2818 = vmatpush1.msra.mxu0 0.0
      %2819 = vmatprep.subr.mxu0 0.0
      %2820 = vmatpush1.msra.mxu0 0.0
      %2821 = vmatprep.subr.mxu0 0.0
      %2822 = vmatpush1.msra.mxu0 0.0
      %2823 = vmatprep.subr.mxu0 0.0
      %2824 = vmatpush1.msra.mxu0 0.0
      %2825 = vmatprep.subr.mxu0 0.0
      %2826 = vmatpush1.msra.mxu0 0.0
      %2827 = vmatprep.subr.mxu0 0.0
      %2828 = vmatpush1.msra.mxu0 0.0
      %2829 = vmatprep.subr.mxu0 0.0
      %2830 = vmatpush1.msra.mxu0 0.0
      %2831 = vmatprep.subr.mxu0 0.0
      %2832 = vmatpush1.msra.mxu0 0.0
      %2833 = vmatprep.subr.mxu0 0.0
      %2834 = vmatpush1.msra.mxu0 0.0
      %2835 = vmatprep.subr.mxu0 0.0
      %2836 = vmatpush1.msra.mxu0 0.0
      %2837 = vmatprep.mubr.f32.mxu0 0.0
      %2838 = vmatmul.mubr.f32.gmra.mrb[0].mxu0 %v2771
      %v2839 = vpop.f32.mrb[0].mxu0
      %v2840 = vadd.f32 %v2768, %v2839
      %v2841 = vpop.f32.mrb[0].mxu0
      %2842 = vdwg.mxu0
      %vm2843 = vcmask 254976
      %2844 = vst.msk [vmem:[%s956] sm:$0x3] %vm2843, %v2840
      %p2845 = scmp.lt.s32.totalorder %s31, 1
      %s2846 = scalar_select %p2845, %s31, 1
      %s2847 = smul.addr %s2846, 2
      %s2848 = scalar_lea.vmem %s20, %s2847
      // Predicated region
      $region101: #{sentiment_classifier_forward.2} parent=99 // pred_check
        %p2849 = pneg %p569
      $region102: #{sentiment_classifier_forward.2} parent=99 // pred_check_branch
        %2851 = sbr.rel (%p2849) target = $region104
      $region103: #{sentiment_classifier_forward.2} parent=99 // pred_region
        _
      $region104: #{sentiment_classifier_forward.2} parent=99 // pred_fallthru
        _
    $region100: #{sentiment_classifier_forward.2} parent=5 // pred_fallthru
      _
    %p2852 = scmp.le.s32.totalorder 2, %s26
    // Predicated region
    $region105: #{sentiment_classifier_forward.2} parent=5 // pred_check
      %p2853 = pneg %p2852
    $region106: #{sentiment_classifier_forward.2} parent=5 // pred_check_branch
      %2855 = sbr.rel (%p2853) target = $region108
    $region107: #{sentiment_classifier_forward.2} parent=5 // pred_region
      %s2856 = ssub.s32 %s26, 2
      // Predicated region
      $region109: #{sentiment_classifier_forward.2} parent=107 // pred_check
        %p2857 = pneg %p575
      $region110: #{sentiment_classifier_forward.2} parent=107 // pred_check_branch
        %2859 = sbr.rel (%p2857) target = $region112
      $region111: #{sentiment_classifier_forward.2} parent=107 // pred_region
        %p2860 = scmp.lt.s32.totalorder %s32, 1
        %s2861 = scalar_select %p2860, %s32, 1
        %s2862 = smul.addr %s2861, 2
        %s2863 = scalar_lea.vmem %s20, %s2862
      $region112: #{sentiment_classifier_forward.2} parent=107 // pred_fallthru
        _
    $region108: #{sentiment_classifier_forward.2} parent=5 // pred_fallthru
      _
  $region6: #{sentiment_classifier_forward.2} parent=0 // loop_footer
    %s30 = sadd.s32 1, %s26
  $region7: #{sentiment_classifier_forward.2} parent=0 // loop_footer_branch
    %25 = sbr.rel target = $region3
  $region8: #{sentiment_classifier_forward.2} parent=0 // loop_exit
    _

</llo_original>
